<compile_context>
chip_gen: v5e
topology: v5e:2x2
jax: 0.10.0
libtpu: 0.0.40
codegen_flags: <defaults>
</compile_context>

<pallas_src>
import jax
import jax.numpy as jnp
from jax import lax
from jax.experimental import pallas as pl
from jax.experimental.pallas import tpu as pltpu


# ---------------------------------------------------------------------------
# Helpers
# ---------------------------------------------------------------------------
def _bn_fold(gamma, beta, mean, var, eps=1e-5):
    scale = gamma / jnp.sqrt(var + eps)
    return scale, beta - mean * scale


# ---------------------------------------------------------------------------
# Fused bottleneck_IR_SE kernel (one image per grid step)
# ---------------------------------------------------------------------------
def _make_kernel(H, W, Cin, D, stride, has_proj):
    Ho = (H - 1) // stride + 1
    Wo = (W - 1) // stride + 1
    strided = stride != 1

    def kernel(*refs):
        (x_ref, bn1s_ref, bn1b_ref, w1_ref, alpha_ref, w2_ref, bn2b_ref,
         sew1_ref, sew2_ref) = refs[:9]
        i = 9
        if strided:
            sel_ref = refs[i]
            i += 1
        if has_proj:
            wsc_ref = refs[i]
            scb_ref = refs[i + 1]
            i += 2
        out_ref, pad1_ref, pad2_ref = refs[i], refs[i + 1], refs[i + 2]

        # ---- BatchNorm2d(in_channel), inference form (kept in-kernel so the
        #      zero padding of conv1 stays exact at the borders) ----
        x = x_ref[0]                                         # (H, W, Cin)
        y = x * bn1s_ref[...] + bn1b_ref[...]

        # ---- zero ONLY the 1-pixel halo; interior is fully overwritten ----
        pad1_ref[pl.ds(0, 1), :, :] = jnp.zeros((1, W + 2, Cin), jnp.float32)
        pad1_ref[pl.ds(H + 1, 1), :, :] = jnp.zeros((1, W + 2, Cin), jnp.float32)
        pad1_ref[:, pl.ds(0, 1), :] = jnp.zeros((H + 2, 1, Cin), jnp.float32)
        pad1_ref[:, pl.ds(W + 1, 1), :] = jnp.zeros((H + 2, 1, Cin), jnp.float32)
        pad1_ref[pl.ds(1, H), pl.ds(1, W), :] = y

        # ---- Conv2d(Cin, D, 3x3, s=1, p=1): im2col the 9 taps along K and do
        #      ONE (H*W, 9*Cin) x (9*Cin, D) MXU matmul ----
        cols = []
        for dh in range(3):
            for dw in range(3):
                p = pad1_ref[pl.ds(dh, H), pl.ds(dw, W), :]   # (H, W, Cin)
                cols.append(p.reshape(H * W, Cin))
        lhs1 = jnp.concatenate(cols, axis=1)                  # (H*W, 9*Cin)
        acc1 = jnp.dot(lhs1, w1_ref[...], preferred_element_type=jnp.float32)

        # ---- PReLU(depth) ----
        act = jnp.where(acc1 > 0, acc1, acc1 * alpha_ref[...])  # (H*W, D)

        # ---- Conv2d(D, D, 3x3, p=1); BN2 scale already folded into w2 ----
        pad2_ref[pl.ds(0, 1), :, :] = jnp.zeros((1, W + 2, D), jnp.float32)
        pad2_ref[pl.ds(H + 1, 1), :, :] = jnp.zeros((1, W + 2, D), jnp.float32)
        pad2_ref[:, pl.ds(0, 1), :] = jnp.zeros((H + 2, 1, D), jnp.float32)
        pad2_ref[:, pl.ds(W + 1, 1), :] = jnp.zeros((H + 2, 1, D), jnp.float32)
        pad2_ref[pl.ds(1, H), pl.ds(1, W), :] = act.reshape(H, W, D)

        cols2 = []
        for dh in range(3):
            for dw in range(3):
                p = pad2_ref[pl.ds(dh, H), pl.ds(dw, W), :]   # (H, W, D)
                cols2.append(p.reshape(H * W, D))
        lhs2 = jnp.concatenate(cols2, axis=1)                 # (H*W, 9*D)
        res_dense = jnp.dot(lhs2, w2_ref[...],
                            preferred_element_type=jnp.float32)

        # ---- fold the block stride in-kernel: 0/1 selection matmul gathers
        #      the strided output rows + strided shortcut input (no HBM round
        #      trip, no XLA slice pass) ----
        x_flat = x.reshape(H * W, Cin)
        if strided:
            sel = sel_ref[...]                                # (Ho*Wo, H*W)
            res = jnp.dot(sel, res_dense, preferred_element_type=jnp.float32)
            x_sc = jnp.dot(sel, x_flat, preferred_element_type=jnp.float32)
        else:
            res = res_dense
            x_sc = x_flat
        res = res + bn2b_ref[...]                             # BN2 bias

        # ---- SEModule(depth, 16) ----
        pooled = jnp.mean(res, axis=0, keepdims=True)         # (1, D)
        h1 = jnp.maximum(
            jnp.dot(pooled, sew1_ref[...],
                    preferred_element_type=jnp.float32), 0.0)
        gate = jax.nn.sigmoid(
            jnp.dot(h1, sew2_ref[...], preferred_element_type=jnp.float32))

        # ---- shortcut: MaxPool2d(1, stride) == strided subsample, or
        #      Conv1x1(stride) + BN with BN folded into wsc / scb ----
        if has_proj:
            sc = jnp.dot(x_sc, wsc_ref[...],
                         preferred_element_type=jnp.float32) + scb_ref[...]
        else:
            sc = x_sc                                         # Cin == D

        out_ref[0] = res * gate + sc                          # (Ho*Wo, D)

    return kernel


# ---------------------------------------------------------------------------
# Parameter init (PyTorch layouts, synthesized deterministically)
# ---------------------------------------------------------------------------
def init_params(key, in_channel, depth):
    ks = jax.random.split(key, 19)

    def rn(k, shape, s=0.1):
        return s * jax.random.normal(k, shape, jnp.float32)

    p = {
        'bn1_gamma': 1.0 + rn(ks[0], (in_channel,)),
        'bn1_beta': rn(ks[1], (in_channel,)),
        'bn1_mean': rn(ks[2], (in_channel,)),
        'bn1_var': jnp.abs(1.0 + rn(ks[3], (in_channel,))),
        'conv1_w': rn(ks[4], (depth, in_channel, 3, 3)),        # OIHW
        'prelu_alpha': 0.25 + rn(ks[5], (depth,), 0.01),
        'conv2_w': rn(ks[6], (depth, depth, 3, 3)),             # OIHW
        'bn2_gamma': 1.0 + rn(ks[7], (depth,)),
        'bn2_beta': rn(ks[8], (depth,)),
        'bn2_mean': rn(ks[9], (depth,)),
        'bn2_var': jnp.abs(1.0 + rn(ks[10], (depth,))),
        'se_fc1_w': rn(ks[11], (depth // 16, depth, 1, 1)),     # OI11
        'se_fc2_w': rn(ks[12], (depth, depth // 16, 1, 1)),     # OI11
    }
    if in_channel != depth:
        p['sc_w'] = rn(ks[13], (depth, in_channel, 1, 1))       # OI11
        p['sc_gamma'] = 1.0 + rn(ks[14], (depth,))
        p['sc_beta'] = rn(ks[15], (depth,))
        p['sc_mean'] = rn(ks[16], (depth,))
        p['sc_var'] = jnp.abs(1.0 + rn(ks[17], (depth,)))
    return p


# ---------------------------------------------------------------------------
# Forward wrapper (NCHW in / NCHW out, matching the PyTorch module)
# ---------------------------------------------------------------------------
def bottleneck_ir_se_forward(x_nchw, params, in_channel, depth, stride):
    N, C, H, W = x_nchw.shape
    assert C == in_channel
    Ho = (H - 1) // stride + 1
    Wo = (W - 1) // stride + 1
    has_proj = in_channel != depth
    strided = stride != 1

    x = jnp.transpose(x_nchw, (0, 2, 3, 1)).astype(jnp.float32)  # NHWC

    bn1_s, bn1_b = _bn_fold(params['bn1_gamma'], params['bn1_beta'],
                            params['bn1_mean'], params['bn1_var'])
    bn2_s, bn2_b = _bn_fold(params['bn2_gamma'], params['bn2_beta'],
                            params['bn2_mean'], params['bn2_var'])

    # OIHW -> HWIO -> (9*Cin, D); BN2 scale folded into w2 (exact).
    w1 = jnp.transpose(params['conv1_w'], (2, 3, 1, 0)).reshape(
        9 * in_channel, depth)
    w2 = (jnp.transpose(params['conv2_w'], (2, 3, 1, 0)) *
          bn2_s[None, None, None, :]).reshape(9 * depth, depth)

    se_w1 = jnp.transpose(params['se_fc1_w'][:, :, 0, 0], (1, 0))  # (D, D//16)
    se_w2 = jnp.transpose(params['se_fc2_w'][:, :, 0, 0], (1, 0))  # (D//16, D)

    inputs = [
        x,
        bn1_s.reshape(1, 1, in_channel), bn1_b.reshape(1, 1, in_channel),
        w1, params['prelu_alpha'].reshape(1, depth),
        w2, bn2_b.reshape(1, depth),
        se_w1, se_w2,
    ]
    in_specs = [
        pl.BlockSpec((1, H, W, in_channel), lambda n: (n, 0, 0, 0)),
        pl.BlockSpec((1, 1, in_channel), lambda n: (0, 0, 0)),
        pl.BlockSpec((1, 1, in_channel), lambda n: (0, 0, 0)),
        pl.BlockSpec((9 * in_channel, depth), lambda n: (0, 0)),
        pl.BlockSpec((1, depth), lambda n: (0, 0)),
        pl.BlockSpec((9 * depth, depth), lambda n: (0, 0)),
        pl.BlockSpec((1, depth), lambda n: (0, 0)),
        pl.BlockSpec((depth, depth // 16), lambda n: (0, 0)),
        pl.BlockSpec((depth // 16, depth), lambda n: (0, 0)),
    ]

    if strided:
        # 0/1 selection matrix picking the strided spatial positions.
        rows = (jnp.arange(Ho)[:, None] * stride * W +
                jnp.arange(Wo)[None, :] * stride).reshape(-1)     # (Ho*Wo,)
        sel = (jnp.arange(H * W)[None, :] == rows[:, None]).astype(jnp.float32)
        inputs.append(sel)
        in_specs.append(pl.BlockSpec((Ho * Wo, H * W), lambda n: (0, 0)))

    if has_proj:
        sc_s, sc_b = _bn_fold(params['sc_gamma'], params['sc_beta'],
                              params['sc_mean'], params['sc_var'])
        wsc = (jnp.transpose(params['sc_w'][:, :, 0, 0], (1, 0)) *
               sc_s[None, :])                                     # (Cin, D)
        inputs += [wsc, sc_b.reshape(1, depth)]
        in_specs += [pl.BlockSpec((in_channel, depth), lambda n: (0, 0)),
                     pl.BlockSpec((1, depth), lambda n: (0, 0))]

    kernel = _make_kernel(H, W, in_channel, depth, stride, has_proj)

    out = pl.pallas_call(
        kernel,
        out_shape=jax.ShapeDtypeStruct((N, Ho * Wo, depth), jnp.float32),
        grid=(N,),
        in_specs=in_specs,
        out_specs=pl.BlockSpec((1, Ho * Wo, depth), lambda n: (n, 0, 0)),
        scratch_shapes=[
            pltpu.VMEM((H + 2, W + 2, in_channel), jnp.float32),
            pltpu.VMEM((H + 2, W + 2, depth), jnp.float32),
        ],
        compiler_params=pltpu.CompilerParams(
            dimension_semantics=("parallel",)),
    )(*inputs)

    out = out.reshape(N, Ho, Wo, depth)
    return jnp.transpose(out, (0, 3, 1, 2))                       # NCHW


# ---------------------------------------------------------------------------
# Pure-JAX reference (for correctness check)
# ---------------------------------------------------------------------------
def reference_forward(x_nchw, params, in_channel, depth, stride):
    x = jnp.transpose(x_nchw, (0, 2, 3, 1)).astype(jnp.float32)
    bn1_s, bn1_b = _bn_fold(params['bn1_gamma'], params['bn1_beta'],
                            params['bn1_mean'], params['bn1_var'])
    y = x * bn1_s + bn1_b
    w1 = jnp.transpose(params['conv1_w'], (2, 3, 1, 0))
    c1 = lax.conv_general_dilated(y, w1, (1, 1), ((1, 1), (1, 1)),
                                  dimension_numbers=('NHWC', 'HWIO', 'NHWC'))
    alpha = params['prelu_alpha'][None, None, None, :]
    a = jnp.where(c1 > 0, c1, alpha * c1)
    w2 = jnp.transpose(params['conv2_w'], (2, 3, 1, 0))
    c2 = lax.conv_general_dilated(a, w2, (stride, stride), ((1, 1), (1, 1)),
                                  dimension_numbers=('NHWC', 'HWIO', 'NHWC'))
    bn2_s, bn2_b = _bn_fold(params['bn2_gamma'], params['bn2_beta'],
                            params['bn2_mean'], params['bn2_var'])
    r = c2 * bn2_s + bn2_b
    pooled = jnp.mean(r, axis=(1, 2))
    h = jnp.maximum(pooled @ params['se_fc1_w'][:, :, 0, 0].T, 0.0)
    g = jax.nn.sigmoid(h @ params['se_fc2_w'][:, :, 0, 0].T)
    r = r * g[:, None, None, :]
    if in_channel == depth:
        sc = x[:, ::stride, ::stride, :]
    else:
        xsub = x[:, ::stride, ::stride, :]
        sc_s, sc_b = _bn_fold(params['sc_gamma'], params['sc_beta'],
                              params['sc_mean'], params['sc_var'])
        sc = (xsub @ params['sc_w'][:, :, 0, 0].T) * sc_s + sc_b
    return jnp.transpose(r + sc, (0, 3, 1, 2))


if __name__ == "__main__":
    key = jax.random.PRNGKey(0)
    kx, kpa, kpb = jax.random.split(key, 3)

    # Config A: in_channel != depth (Conv1x1+BN shortcut), stride 2.
    in_channel, depth, stride = 16, 32, 2
    x_a = jax.random.normal(kx, (2, in_channel, 16, 16), jnp.float32)
    params_a = init_params(kpa, in_channel, depth)
    out_a = jax.block_until_ready(
        bottleneck_ir_se_forward(x_a, params_a, in_channel, depth, stride))
    ref_a = reference_forward(x_a, params_a, in_channel, depth, stride)
    assert out_a.shape == (2, depth, 8, 8)
    assert bool(jnp.allclose(out_a, ref_a, atol=2e-2, rtol=2e-2))

    # Config B: in_channel == depth (MaxPool2d(1, stride) shortcut), stride 1.
    in_channel, depth, stride = 32, 32, 1
    x_b = jax.random.normal(jax.random.fold_in(kx, 1),
                            (2, in_channel, 16, 16), jnp.float32)
    params_b = init_params(kpb, in_channel, depth)
    out_b = jax.block_until_ready(
        bottleneck_ir_se_forward(x_b, params_b, in_channel, depth, stride))
    ref_b = reference_forward(x_b, params_b, in_channel, depth, stride)
    assert out_b.shape == (2, depth, 16, 16)
    assert bool(jnp.allclose(out_b, ref_b, atol=2e-2, rtol=2e-2))

    print("KERNEL_OK")
</pallas_src>

<mosaic_0001>
module attributes {stable_mosaic.version = 11 : i64} {
  func.func @kernel(%arg0: i32, %arg1: memref<1x16x16x16xf32, #tpu.memory_space<vmem>>, %arg2: memref<1x1x16xf32, #tpu.memory_space<vmem>>, %arg3: memref<1x1x16xf32, #tpu.memory_space<vmem>>, %arg4: memref<144x32xf32, #tpu.memory_space<vmem>>, %arg5: memref<1x32xf32, #tpu.memory_space<vmem>>, %arg6: memref<288x32xf32, #tpu.memory_space<vmem>>, %arg7: memref<1x32xf32, #tpu.memory_space<vmem>>, %arg8: memref<32x2xf32, #tpu.memory_space<vmem>>, %arg9: memref<2x32xf32, #tpu.memory_space<vmem>>, %arg10: memref<64x256xf32, #tpu.memory_space<vmem>>, %arg11: memref<16x32xf32, #tpu.memory_space<vmem>>, %arg12: memref<1x32xf32, #tpu.memory_space<vmem>>, %arg13: memref<1x64x32xf32, #tpu.memory_space<vmem>>, %arg14: memref<18x18x16xf32, #tpu.memory_space<vmem>>, %arg15: memref<18x18x32xf32, #tpu.memory_space<vmem>>) attributes {dimension_semantics = [#tpu.dimension_semantics<parallel>], iteration_bounds = array<i64: 2>, scalar_prefetch = 0 : i64, scratch_operands = 2 : i64, tpu.core_type = #tpu.core_type<tc>, window_params = [{transform_indices = @transform_0, window_bounds = array<i64: 1, 16, 16, 16>}, {pipeline_mode = #tpu.pipeline_mode<synchronous>, transform_indices = @transform_1, window_bounds = array<i64: 1, 1, 16>}, {pipeline_mode = #tpu.pipeline_mode<synchronous>, transform_indices = @transform_2, window_bounds = array<i64: 1, 1, 16>}, {pipeline_mode = #tpu.pipeline_mode<synchronous>, transform_indices = @transform_3, window_bounds = array<i64: 144, 32>}, {pipeline_mode = #tpu.pipeline_mode<synchronous>, transform_indices = @transform_4, window_bounds = array<i64: 1, 32>}, {pipeline_mode = #tpu.pipeline_mode<synchronous>, transform_indices = @transform_5, window_bounds = array<i64: 288, 32>}, {pipeline_mode = #tpu.pipeline_mode<synchronous>, transform_indices = @transform_6, window_bounds = array<i64: 1, 32>}, {pipeline_mode = #tpu.pipeline_mode<synchronous>, transform_indices = @transform_7, window_bounds = array<i64: 32, 2>}, {pipeline_mode = #tpu.pipeline_mode<synchronous>, transform_indices = @transform_8, window_bounds = array<i64: 2, 32>}, {pipeline_mode = #tpu.pipeline_mode<synchronous>, transform_indices = @transform_9, window_bounds = array<i64: 64, 256>}, {pipeline_mode = #tpu.pipeline_mode<synchronous>, transform_indices = @transform_10, window_bounds = array<i64: 16, 32>}, {pipeline_mode = #tpu.pipeline_mode<synchronous>, transform_indices = @transform_11, window_bounds = array<i64: 1, 32>}, {transform_indices = @transform_12, window_bounds = array<i64: 1, 64, 32>}]} {
    %c0 = arith.constant 0 : index
    %c0_0 = arith.constant 0 : index
    %c0_1 = arith.constant 0 : index
    %c0_2 = arith.constant 0 : index
    %0 = vector.load %arg1[%c0, %c0_0, %c0_1, %c0_2] : memref<1x16x16x16xf32, #tpu.memory_space<vmem>>, vector<1x16x16x16xf32>
    %1 = vector.shape_cast %0 : vector<1x16x16x16xf32> to vector<16x16x16xf32>
    %c0_3 = arith.constant 0 : index
    %c0_4 = arith.constant 0 : index
    %c0_5 = arith.constant 0 : index
    %2 = vector.load %arg2[%c0_3, %c0_4, %c0_5] : memref<1x1x16xf32, #tpu.memory_space<vmem>>, vector<1x1x16xf32>
    %3 = vector.broadcast %2 : vector<1x1x16xf32> to vector<16x16x16xf32>
    %4 = arith.mulf %1, %3 : vector<16x16x16xf32>
    %c0_6 = arith.constant 0 : index
    %c0_7 = arith.constant 0 : index
    %c0_8 = arith.constant 0 : index
    %5 = vector.load %arg3[%c0_6, %c0_7, %c0_8] : memref<1x1x16xf32, #tpu.memory_space<vmem>>, vector<1x1x16xf32>
    %6 = vector.broadcast %5 : vector<1x1x16xf32> to vector<16x16x16xf32>
    %7 = arith.addf %4, %6 : vector<16x16x16xf32>
    %cst = arith.constant 0.000000e+00 : f32
    %8 = vector.broadcast %cst : f32 to vector<1x18x16xf32>
    %c0_9 = arith.constant 0 : index
    %c0_10 = arith.constant 0 : index
    %c0_11 = arith.constant 0 : index
    %9 = vector.load %arg14[%c0_9, %c0_10, %c0_11] : memref<18x18x16xf32, #tpu.memory_space<vmem>>, vector<1x18x16xf32>
    tpu.vector_store %arg14[%c0_9, %c0_10, %c0_11], %8 {strides = array<i32>} : memref<18x18x16xf32, #tpu.memory_space<vmem>>, vector<1x18x16xf32>,
    %cst_12 = arith.constant 0.000000e+00 : f32
    %10 = vector.broadcast %cst_12 : f32 to vector<1x18x16xf32>
    %c17 = arith.constant 17 : index
    %c0_13 = arith.constant 0 : index
    %c0_14 = arith.constant 0 : index
    %11 = vector.load %arg14[%c17, %c0_13, %c0_14] : memref<18x18x16xf32, #tpu.memory_space<vmem>>, vector<1x18x16xf32>
    tpu.vector_store %arg14[%c17, %c0_13, %c0_14], %10 {strides = array<i32>} : memref<18x18x16xf32, #tpu.memory_space<vmem>>, vector<1x18x16xf32>,
    %cst_15 = arith.constant 0.000000e+00 : f32
    %12 = vector.broadcast %cst_15 : f32 to vector<18x1x16xf32>
    %c0_16 = arith.constant 0 : index
    %c0_17 = arith.constant 0 : index
    %c0_18 = arith.constant 0 : index
    %13 = vector.load %arg14[%c0_16, %c0_17, %c0_18] : memref<18x18x16xf32, #tpu.memory_space<vmem>>, vector<18x1x16xf32>
    tpu.vector_store %arg14[%c0_16, %c0_17, %c0_18], %12 {strides = array<i32>} : memref<18x18x16xf32, #tpu.memory_space<vmem>>, vector<18x1x16xf32>,
    %cst_19 = arith.constant 0.000000e+00 : f32
    %14 = vector.broadcast %cst_19 : f32 to vector<18x1x16xf32>
    %c0_20 = arith.constant 0 : index
    %c17_21 = arith.constant 17 : index
    %c0_22 = arith.constant 0 : index
    %15 = vector.load %arg14[%c0_20, %c17_21, %c0_22] : memref<18x18x16xf32, #tpu.memory_space<vmem>>, vector<18x1x16xf32>
    tpu.vector_store %arg14[%c0_20, %c17_21, %c0_22], %14 {strides = array<i32>} : memref<18x18x16xf32, #tpu.memory_space<vmem>>, vector<18x1x16xf32>,
    %c1 = arith.constant 1 : index
    %c1_23 = arith.constant 1 : index
    %c0_24 = arith.constant 0 : index
    %16 = vector.load %arg14[%c1, %c1_23, %c0_24] : memref<18x18x16xf32, #tpu.memory_space<vmem>>, vector<16x16x16xf32>
    tpu.vector_store %arg14[%c1, %c1_23, %c0_24], %7 {strides = array<i32>} : memref<18x18x16xf32, #tpu.memory_space<vmem>>, vector<16x16x16xf32>,
    %c0_25 = arith.constant 0 : index
    %c0_26 = arith.constant 0 : index
    %c0_27 = arith.constant 0 : index
    %17 = vector.load %arg14[%c0_25, %c0_26, %c0_27] : memref<18x18x16xf32, #tpu.memory_space<vmem>>, vector<16x16x16xf32>
    %18 = vector.shape_cast %17 : vector<16x16x16xf32> to vector<256x16xf32>
    %c0_28 = arith.constant 0 : index
    %c1_29 = arith.constant 1 : index
    %c0_30 = arith.constant 0 : index
    %19 = vector.load %arg14[%c0_28, %c1_29, %c0_30] : memref<18x18x16xf32, #tpu.memory_space<vmem>>, vector<16x16x16xf32>
    %20 = vector.shape_cast %19 : vector<16x16x16xf32> to vector<256x16xf32>
    %c0_31 = arith.constant 0 : index
    %c2 = arith.constant 2 : index
    %c0_32 = arith.constant 0 : index
    %21 = vector.load %arg14[%c0_31, %c2, %c0_32] : memref<18x18x16xf32, #tpu.memory_space<vmem>>, vector<16x16x16xf32>
    %22 = vector.shape_cast %21 : vector<16x16x16xf32> to vector<256x16xf32>
    %c1_33 = arith.constant 1 : index
    %c0_34 = arith.constant 0 : index
    %c0_35 = arith.constant 0 : index
    %23 = vector.load %arg14[%c1_33, %c0_34, %c0_35] : memref<18x18x16xf32, #tpu.memory_space<vmem>>, vector<16x16x16xf32>
    %24 = vector.shape_cast %23 : vector<16x16x16xf32> to vector<256x16xf32>
    %c1_36 = arith.constant 1 : index
    %c1_37 = arith.constant 1 : index
    %c0_38 = arith.constant 0 : index
    %25 = vector.load %arg14[%c1_36, %c1_37, %c0_38] : memref<18x18x16xf32, #tpu.memory_space<vmem>>, vector<16x16x16xf32>
    %26 = vector.shape_cast %25 : vector<16x16x16xf32> to vector<256x16xf32>
    %c1_39 = arith.constant 1 : index
    %c2_40 = arith.constant 2 : index
    %c0_41 = arith.constant 0 : index
    %27 = vector.load %arg14[%c1_39, %c2_40, %c0_41] : memref<18x18x16xf32, #tpu.memory_space<vmem>>, vector<16x16x16xf32>
    %28 = vector.shape_cast %27 : vector<16x16x16xf32> to vector<256x16xf32>
    %c2_42 = arith.constant 2 : index
    %c0_43 = arith.constant 0 : index
    %c0_44 = arith.constant 0 : index
    %29 = vector.load %arg14[%c2_42, %c0_43, %c0_44] : memref<18x18x16xf32, #tpu.memory_space<vmem>>, vector<16x16x16xf32>
    %30 = vector.shape_cast %29 : vector<16x16x16xf32> to vector<256x16xf32>
    %c2_45 = arith.constant 2 : index
    %c1_46 = arith.constant 1 : index
    %c0_47 = arith.constant 0 : index
    %31 = vector.load %arg14[%c2_45, %c1_46, %c0_47] : memref<18x18x16xf32, #tpu.memory_space<vmem>>, vector<16x16x16xf32>
    %32 = vector.shape_cast %31 : vector<16x16x16xf32> to vector<256x16xf32>
    %c2_48 = arith.constant 2 : index
    %c2_49 = arith.constant 2 : index
    %c0_50 = arith.constant 0 : index
    %33 = vector.load %arg14[%c2_48, %c2_49, %c0_50] : memref<18x18x16xf32, #tpu.memory_space<vmem>>, vector<16x16x16xf32>
    %34 = vector.shape_cast %33 : vector<16x16x16xf32> to vector<256x16xf32>
    %35 = tpu.concatenate %18, %20, %22, %24, %26, %28, %30, %32, %34 in 1 : vector<256x16xf32>, vector<256x16xf32>, vector<256x16xf32>, vector<256x16xf32>, vector<256x16xf32>, vector<256x16xf32>, vector<256x16xf32>, vector<256x16xf32>, vector<256x16xf32> -> vector<256x144xf32>
    %c0_51 = arith.constant 0 : index
    %c0_52 = arith.constant 0 : index
    %36 = vector.load %arg4[%c0_51, %c0_52] : memref<144x32xf32, #tpu.memory_space<vmem>>, vector<144x32xf32>
    %cst_53 = arith.constant dense<0.000000e+00> : vector<256x32xf32>
    %37 = tpu.matmul %35, %36, %cst_53 {dimension_numbers = #tpu.dot_dimension_numbers<[1], [0], [0], [1], [0, 0, 1, 1], [], []>} : vector<256x144xf32>, vector<144x32xf32>, vector<256x32xf32> -> vector<256x32xf32>
    %cst_54 = arith.constant 0.000000e+00 : f32
    %38 = vector.broadcast %cst_54 : f32 to vector<256x32xf32>
    %39 = arith.cmpf ogt, %37, %38 : vector<256x32xf32>
    %c0_55 = arith.constant 0 : index
    %c0_56 = arith.constant 0 : index
    %40 = vector.load %arg5[%c0_55, %c0_56] : memref<1x32xf32, #tpu.memory_space<vmem>>, vector<1x32xf32>
    %41 = vector.broadcast %40 : vector<1x32xf32> to vector<256x32xf32>
    %42 = arith.mulf %37, %41 : vector<256x32xf32>
    %43 = arith.select %39, %37, %42 : vector<256x32xi1>, vector<256x32xf32>
    %cst_57 = arith.constant 0.000000e+00 : f32
    %44 = vector.broadcast %cst_57 : f32 to vector<1x18x32xf32>
    %c0_58 = arith.constant 0 : index
    %c0_59 = arith.constant 0 : index
    %c0_60 = arith.constant 0 : index
    %45 = vector.load %arg15[%c0_58, %c0_59, %c0_60] : memref<18x18x32xf32, #tpu.memory_space<vmem>>, vector<1x18x32xf32>
    tpu.vector_store %arg15[%c0_58, %c0_59, %c0_60], %44 {strides = array<i32>} : memref<18x18x32xf32, #tpu.memory_space<vmem>>, vector<1x18x32xf32>,
    %cst_61 = arith.constant 0.000000e+00 : f32
    %46 = vector.broadcast %cst_61 : f32 to vector<1x18x32xf32>
    %c17_62 = arith.constant 17 : index
    %c0_63 = arith.constant 0 : index
    %c0_64 = arith.constant 0 : index
    %47 = vector.load %arg15[%c17_62, %c0_63, %c0_64] : memref<18x18x32xf32, #tpu.memory_space<vmem>>, vector<1x18x32xf32>
    tpu.vector_store %arg15[%c17_62, %c0_63, %c0_64], %46 {strides = array<i32>} : memref<18x18x32xf32, #tpu.memory_space<vmem>>, vector<1x18x32xf32>,
    %cst_65 = arith.constant 0.000000e+00 : f32
    %48 = vector.broadcast %cst_65 : f32 to vector<18x1x32xf32>
    %c0_66 = arith.constant 0 : index
    %c0_67 = arith.constant 0 : index
    %c0_68 = arith.constant 0 : index
    %49 = vector.load %arg15[%c0_66, %c0_67, %c0_68] : memref<18x18x32xf32, #tpu.memory_space<vmem>>, vector<18x1x32xf32>
    tpu.vector_store %arg15[%c0_66, %c0_67, %c0_68], %48 {strides = array<i32>} : memref<18x18x32xf32, #tpu.memory_space<vmem>>, vector<18x1x32xf32>,
    %cst_69 = arith.constant 0.000000e+00 : f32
    %50 = vector.broadcast %cst_69 : f32 to vector<18x1x32xf32>
    %c0_70 = arith.constant 0 : index
    %c17_71 = arith.constant 17 : index
    %c0_72 = arith.constant 0 : index
    %51 = vector.load %arg15[%c0_70, %c17_71, %c0_72] : memref<18x18x32xf32, #tpu.memory_space<vmem>>, vector<18x1x32xf32>
    tpu.vector_store %arg15[%c0_70, %c17_71, %c0_72], %50 {strides = array<i32>} : memref<18x18x32xf32, #tpu.memory_space<vmem>>, vector<18x1x32xf32>,
    %52 = vector.shape_cast %43 : vector<256x32xf32> to vector<16x16x32xf32>
    %c1_73 = arith.constant 1 : index
    %c1_74 = arith.constant 1 : index
    %c0_75 = arith.constant 0 : index
    %53 = vector.load %arg15[%c1_73, %c1_74, %c0_75] : memref<18x18x32xf32, #tpu.memory_space<vmem>>, vector<16x16x32xf32>
    tpu.vector_store %arg15[%c1_73, %c1_74, %c0_75], %52 {strides = array<i32>} : memref<18x18x32xf32, #tpu.memory_space<vmem>>, vector<16x16x32xf32>,
    %c0_76 = arith.constant 0 : index
    %c0_77 = arith.constant 0 : index
    %c0_78 = arith.constant 0 : index
    %54 = vector.load %arg15[%c0_76, %c0_77, %c0_78] : memref<18x18x32xf32, #tpu.memory_space<vmem>>, vector<16x16x32xf32>
    %55 = vector.shape_cast %54 : vector<16x16x32xf32> to vector<256x32xf32>
    %c0_79 = arith.constant 0 : index
    %c1_80 = arith.constant 1 : index
    %c0_81 = arith.constant 0 : index
    %56 = vector.load %arg15[%c0_79, %c1_80, %c0_81] : memref<18x18x32xf32, #tpu.memory_space<vmem>>, vector<16x16x32xf32>
    %57 = vector.shape_cast %56 : vector<16x16x32xf32> to vector<256x32xf32>
    %c0_82 = arith.constant 0 : index
    %c2_83 = arith.constant 2 : index
    %c0_84 = arith.constant 0 : index
    %58 = vector.load %arg15[%c0_82, %c2_83, %c0_84] : memref<18x18x32xf32, #tpu.memory_space<vmem>>, vector<16x16x32xf32>
    %59 = vector.shape_cast %58 : vector<16x16x32xf32> to vector<256x32xf32>
    %c1_85 = arith.constant 1 : index
    %c0_86 = arith.constant 0 : index
    %c0_87 = arith.constant 0 : index
    %60 = vector.load %arg15[%c1_85, %c0_86, %c0_87] : memref<18x18x32xf32, #tpu.memory_space<vmem>>, vector<16x16x32xf32>
    %61 = vector.shape_cast %60 : vector<16x16x32xf32> to vector<256x32xf32>
    %c1_88 = arith.constant 1 : index
    %c1_89 = arith.constant 1 : index
    %c0_90 = arith.constant 0 : index
    %62 = vector.load %arg15[%c1_88, %c1_89, %c0_90] : memref<18x18x32xf32, #tpu.memory_space<vmem>>, vector<16x16x32xf32>
    %63 = vector.shape_cast %62 : vector<16x16x32xf32> to vector<256x32xf32>
    %c1_91 = arith.constant 1 : index
    %c2_92 = arith.constant 2 : index
    %c0_93 = arith.constant 0 : index
    %64 = vector.load %arg15[%c1_91, %c2_92, %c0_93] : memref<18x18x32xf32, #tpu.memory_space<vmem>>, vector<16x16x32xf32>
    %65 = vector.shape_cast %64 : vector<16x16x32xf32> to vector<256x32xf32>
    %c2_94 = arith.constant 2 : index
    %c0_95 = arith.constant 0 : index
    %c0_96 = arith.constant 0 : index
    %66 = vector.load %arg15[%c2_94, %c0_95, %c0_96] : memref<18x18x32xf32, #tpu.memory_space<vmem>>, vector<16x16x32xf32>
    %67 = vector.shape_cast %66 : vector<16x16x32xf32> to vector<256x32xf32>
    %c2_97 = arith.constant 2 : index
    %c1_98 = arith.constant 1 : index
    %c0_99 = arith.constant 0 : index
    %68 = vector.load %arg15[%c2_97, %c1_98, %c0_99] : memref<18x18x32xf32, #tpu.memory_space<vmem>>, vector<16x16x32xf32>
    %69 = vector.shape_cast %68 : vector<16x16x32xf32> to vector<256x32xf32>
    %c2_100 = arith.constant 2 : index
    %c2_101 = arith.constant 2 : index
    %c0_102 = arith.constant 0 : index
    %70 = vector.load %arg15[%c2_100, %c2_101, %c0_102] : memref<18x18x32xf32, #tpu.memory_space<vmem>>, vector<16x16x32xf32>
    %71 = vector.shape_cast %70 : vector<16x16x32xf32> to vector<256x32xf32>
    %72 = tpu.concatenate %55, %57, %59, %61, %63, %65, %67, %69, %71 in 1 : vector<256x32xf32>, vector<256x32xf32>, vector<256x32xf32>, vector<256x32xf32>, vector<256x32xf32>, vector<256x32xf32>, vector<256x32xf32>, vector<256x32xf32>, vector<256x32xf32> -> vector<256x288xf32>
    %c0_103 = arith.constant 0 : index
    %c0_104 = arith.constant 0 : index
    %73 = vector.load %arg6[%c0_103, %c0_104] : memref<288x32xf32, #tpu.memory_space<vmem>>, vector<288x32xf32>
    %cst_105 = arith.constant dense<0.000000e+00> : vector<256x32xf32>
    %74 = tpu.matmul %72, %73, %cst_105 {dimension_numbers = #tpu.dot_dimension_numbers<[1], [0], [0], [1], [0, 0, 1, 1], [], []>} : vector<256x288xf32>, vector<288x32xf32>, vector<256x32xf32> -> vector<256x32xf32>
    %75 = vector.shape_cast %1 : vector<16x16x16xf32> to vector<256x16xf32>
    %c0_106 = arith.constant 0 : index
    %c0_107 = arith.constant 0 : index
    %76 = vector.load %arg10[%c0_106, %c0_107] : memref<64x256xf32, #tpu.memory_space<vmem>>, vector<64x256xf32>
    %cst_108 = arith.constant dense<0.000000e+00> : vector<64x32xf32>
    %77 = tpu.matmul %76, %74, %cst_108 {dimension_numbers = #tpu.dot_dimension_numbers<[1], [0], [0], [1], [0, 0, 1, 1], [], []>} : vector<64x256xf32>, vector<256x32xf32>, vector<64x32xf32> -> vector<64x32xf32>
    %cst_109 = arith.constant dense<0.000000e+00> : vector<64x16xf32>
    %78 = tpu.matmul %76, %75, %cst_109 {dimension_numbers = #tpu.dot_dimension_numbers<[1], [0], [0], [1], [0, 0, 1, 1], [], []>} : vector<64x256xf32>, vector<256x16xf32>, vector<64x16xf32> -> vector<64x16xf32>
    %c0_110 = arith.constant 0 : index
    %c0_111 = arith.constant 0 : index
    %79 = vector.load %arg7[%c0_110, %c0_111] : memref<1x32xf32, #tpu.memory_space<vmem>>, vector<1x32xf32>
    %80 = vector.broadcast %79 : vector<1x32xf32> to vector<64x32xf32>
    %81 = arith.addf %77, %80 : vector<64x32xf32>
    %cst_112 = arith.constant dense<0.000000e+00> : vector<32xf32>
    %82 = vector.multi_reduction <add>, %81, %cst_112 [0] : vector<64x32xf32> to vector<32xf32>
    %83 = vector.shape_cast %82 : vector<32xf32> to vector<1x32xf32>
    %cst_113 = arith.constant 6.400000e+01 : f32
    %84 = vector.broadcast %cst_113 : f32 to vector<1x32xf32>
    %85 = arith.divf %83, %84 : vector<1x32xf32>
    %c0_114 = arith.constant 0 : index
    %c0_115 = arith.constant 0 : index
    %86 = vector.load %arg8[%c0_114, %c0_115] : memref<32x2xf32, #tpu.memory_space<vmem>>, vector<32x2xf32>
    %cst_116 = arith.constant dense<0.000000e+00> : vector<1x2xf32>
    %87 = tpu.matmul %85, %86, %cst_116 {dimension_numbers = #tpu.dot_dimension_numbers<[1], [0], [0], [1], [0, 0, 1, 1], [], []>} : vector<1x32xf32>, vector<32x2xf32>, vector<1x2xf32> -> vector<1x2xf32>
    %cst_117 = arith.constant 0.000000e+00 : f32
    %88 = vector.broadcast %cst_117 : f32 to vector<1x2xf32>
    %89 = arith.maximumf %87, %88 : vector<1x2xf32>
    %c0_118 = arith.constant 0 : index
    %c0_119 = arith.constant 0 : index
    %90 = vector.load %arg9[%c0_118, %c0_119] : memref<2x32xf32, #tpu.memory_space<vmem>>, vector<2x32xf32>
    %cst_120 = arith.constant dense<0.000000e+00> : vector<1x32xf32>
    %91 = tpu.matmul %89, %90, %cst_120 {dimension_numbers = #tpu.dot_dimension_numbers<[1], [0], [0], [1], [0, 0, 1, 1], [], []>} : vector<1x2xf32>, vector<2x32xf32>, vector<1x32xf32> -> vector<1x32xf32>
    %92 = arith.negf %91 : vector<1x32xf32>
    %93 = math.exp %92 : vector<1x32xf32>
    %cst_121 = arith.constant 1.000000e+00 : f32
    %94 = vector.broadcast %cst_121 : f32 to vector<1x32xf32>
    %95 = arith.addf %94, %93 : vector<1x32xf32>
    %96 = arith.divf %94, %95 : vector<1x32xf32>
    %c0_122 = arith.constant 0 : index
    %c0_123 = arith.constant 0 : index
    %97 = vector.load %arg11[%c0_122, %c0_123] : memref<16x32xf32, #tpu.memory_space<vmem>>, vector<16x32xf32>
    %cst_124 = arith.constant dense<0.000000e+00> : vector<64x32xf32>
    %98 = tpu.matmul %78, %97, %cst_124 {dimension_numbers = #tpu.dot_dimension_numbers<[1], [0], [0], [1], [0, 0, 1, 1], [], []>} : vector<64x16xf32>, vector<16x32xf32>, vector<64x32xf32> -> vector<64x32xf32>
    %c0_125 = arith.constant 0 : index
    %c0_126 = arith.constant 0 : index
    %99 = vector.load %arg12[%c0_125, %c0_126] : memref<1x32xf32, #tpu.memory_space<vmem>>, vector<1x32xf32>
    %100 = vector.broadcast %99 : vector<1x32xf32> to vector<64x32xf32>
    %101 = arith.addf %98, %100 : vector<64x32xf32>
    %102 = vector.broadcast %96 : vector<1x32xf32> to vector<64x32xf32>
    %103 = arith.mulf %81, %102 : vector<64x32xf32>
    %104 = arith.addf %103, %101 : vector<64x32xf32>
    %c0_127 = arith.constant 0 : index
    %c0_128 = arith.constant 0 : index
    %c0_129 = arith.constant 0 : index
    %105 = vector.load %arg13[%c0_127, %c0_128, %c0_129] : memref<1x64x32xf32, #tpu.memory_space<vmem>>, vector<1x64x32xf32>
    %106 = vector.shape_cast %105 : vector<1x64x32xf32> to vector<64x32xf32>
    %107 = vector.shape_cast %104 : vector<64x32xf32> to vector<1x64x32xf32>
    tpu.vector_store %arg13[%c0_127, %c0_128, %c0_129], %107 {strides = array<i32>} : memref<1x64x32xf32, #tpu.memory_space<vmem>>, vector<1x64x32xf32>,
    return
  }
  func.func @transform_0(%arg0: i32) -> (i32, i32, i32, i32) {
    %c0_i32 = arith.constant 0 : i32
    %c0_i32_0 = arith.constant 0 : i32
    %c0_i32_1 = arith.constant 0 : i32
    %c0_i32_2 = arith.constant 0 : i32
    return %arg0, %c0_i32, %c0_i32_0, %c0_i32_1 : i32, i32, i32, i32
  }
  func.func @transform_1(%arg0: i32) -> (i32, i32, i32) {
    %c0_i32 = arith.constant 0 : i32
    %c0_i32_0 = arith.constant 0 : i32
    %c0_i32_1 = arith.constant 0 : i32
    %c0_i32_2 = arith.constant 0 : i32
    return %c0_i32, %c0_i32_0, %c0_i32_1 : i32, i32, i32
  }
  func.func @transform_2(%arg0: i32) -> (i32, i32, i32) {
    %c0_i32 = arith.constant 0 : i32
    %c0_i32_0 = arith.constant 0 : i32
    %c0_i32_1 = arith.constant 0 : i32
    %c0_i32_2 = arith.constant 0 : i32
    return %c0_i32, %c0_i32_0, %c0_i32_1 : i32, i32, i32
  }
  func.func @transform_3(%arg0: i32) -> (i32, i32) {
    %c0_i32 = arith.constant 0 : i32
    %c0_i32_0 = arith.constant 0 : i32
    %c0_i32_1 = arith.constant 0 : i32
    return %c0_i32, %c0_i32_0 : i32, i32
  }
  func.func @transform_4(%arg0: i32) -> (i32, i32) {
    %c0_i32 = arith.constant 0 : i32
    %c0_i32_0 = arith.constant 0 : i32
    %c0_i32_1 = arith.constant 0 : i32
    return %c0_i32, %c0_i32_0 : i32, i32
  }
  func.func @transform_5(%arg0: i32) -> (i32, i32) {
    %c0_i32 = arith.constant 0 : i32
    %c0_i32_0 = arith.constant 0 : i32
    %c0_i32_1 = arith.constant 0 : i32
    return %c0_i32, %c0_i32_0 : i32, i32
  }
  func.func @transform_6(%arg0: i32) -> (i32, i32) {
    %c0_i32 = arith.constant 0 : i32
    %c0_i32_0 = arith.constant 0 : i32
    %c0_i32_1 = arith.constant 0 : i32
    return %c0_i32, %c0_i32_0 : i32, i32
  }
  func.func @transform_7(%arg0: i32) -> (i32, i32) {
    %c0_i32 = arith.constant 0 : i32
    %c0_i32_0 = arith.constant 0 : i32
    %c0_i32_1 = arith.constant 0 : i32
    return %c0_i32, %c0_i32_0 : i32, i32
  }
  func.func @transform_8(%arg0: i32) -> (i32, i32) {
    %c0_i32 = arith.constant 0 : i32
    %c0_i32_0 = arith.constant 0 : i32
    %c0_i32_1 = arith.constant 0 : i32
    return %c0_i32, %c0_i32_0 : i32, i32
  }
  func.func @transform_9(%arg0: i32) -> (i32, i32) {
    %c0_i32 = arith.constant 0 : i32
    %c0_i32_0 = arith.constant 0 : i32
    %c0_i32_1 = arith.constant 0 : i32
    return %c0_i32, %c0_i32_0 : i32, i32
  }
  func.func @transform_10(%arg0: i32) -> (i32, i32) {
    %c0_i32 = arith.constant 0 : i32
    %c0_i32_0 = arith.constant 0 : i32
    %c0_i32_1 = arith.constant 0 : i32
    return %c0_i32, %c0_i32_0 : i32, i32
  }
  func.func @transform_11(%arg0: i32) -> (i32, i32) {
    %c0_i32 = arith.constant 0 : i32
    %c0_i32_0 = arith.constant 0 : i32
    %c0_i32_1 = arith.constant 0 : i32
    return %c0_i32, %c0_i32_0 : i32, i32
  }
  func.func @transform_12(%arg0: i32) -> (i32, i32, i32) {
    %c0_i32 = arith.constant 0 : i32
    %c0_i32_0 = arith.constant 0 : i32
    %c0_i32_1 = arith.constant 0 : i32
    return %arg0, %c0_i32, %c0_i32_0 : i32, i32, i32
  }
}

</mosaic_0001>

<llo_original>
// kernel: tpu_custom_call.1
$region0: #{tpu_custom_call.1}
  #allocation0 [shape = 'u32[]', space=smem, size = 0x4, offset = 0x4, fixed_abs, tag = 'smem constant byte address 0x4 - core index']
  #allocation1 [shape = 'u32[72,128]{1,0:T(1,128)}', space=vmem, size = 0x9000, scoped, tag = 'internal scratch']
  #allocation2 [shape = 'f32[18,18,16]{2,1,0:T(8,128)}', space=vmem, size = 0x36000, scoped, tag = 'scratch operand']
  #allocation3 [shape = 'f32[18,18,32]{2,1,0:T(8,128)}', space=vmem, size = 0x36000, scoped, tag = 'scratch operand']
  %s0 = inlined_call_operand.hbm [shape: f32[2,16,16,16], index: 0, kind: input, shape index: {}]
  %s1 = inlined_call_operand.vmem [shape: f32[1,1,16], index: 1, kind: input, shape index: {}]
  %s2 = inlined_call_operand.vmem [shape: f32[1,1,16], index: 2, kind: input, shape index: {}]
  %s3 = inlined_call_operand.vmem [shape: f32[144,32], index: 3, kind: input, shape index: {}]
  %s4 = inlined_call_operand.vmem [shape: f32[1,32], index: 4, kind: input, shape index: {}]
  %s5 = inlined_call_operand.vmem [shape: f32[288,32], index: 5, kind: input, shape index: {}]
  %s6 = inlined_call_operand.vmem [shape: f32[1,32], index: 6, kind: input, shape index: {}]
  %s7 = inlined_call_operand.vmem [shape: f32[32,2], index: 7, kind: input, shape index: {}]
  %s8 = inlined_call_operand.vmem [shape: f32[2,32], index: 8, kind: input, shape index: {}]
  %s9 = inlined_call_operand.vmem [shape: f32[64,256], index: 9, kind: input, shape index: {}]
  %s10 = inlined_call_operand.vmem [shape: f32[16,32], index: 10, kind: input, shape index: {}]
  %s11 = inlined_call_operand.vmem [shape: f32[1,32], index: 11, kind: input, shape index: {}]
  %s12 = inlined_call_operand.vmem [shape: f32[2,64,32], index: 12, kind: output, shape index: {}]
  %s13 = sld [smem:[#allocation0]]
  $region85: #{tpu_custom_call.1} parent=0
    _
  %s15 = ssub.s32 1, %s13
  %s16 = scalar_select 0, %s15, %s13
  $region1: #{tpu_custom_call.1} parent=0
    #allocation4 [shape = 'u8[262144]{0}', space=vmem, size = 0x40000, scoped, tag = 'input window, operand 0']
    #allocation5 [shape = 's32[2]{0}', space=sflag, size = 0x8, scoped, tag = 'scoped memory for tpu_custom_call.1']
    %17 = vsyncpa [#allocation5], 0
    %s18 = scalar_lea.sflag [#allocation5], 1
    %19 = vsyncpa %s18, 0
    loop: start=0, step=1, limit=4
    $region2: #{tpu_custom_call.1} parent=1 // loop_pre_header
      _
    $region3: #{tpu_custom_call.1} parent=1 // loop_header
      %s21 = sphi 0, %s25
      %p22 = scmp.ge.s32.totalorder %s21, 4
      %s31 = sphi 0, %s33
      %s34 = sphi 0, %s31
      %s35 = sphi 0, %s34
      %s51 = sphi 0, %s35
      %s55 = sphi 0, %s55
      %s57 = sphi 0, %s55
      %s58 = sphi 0, %s57
      %s72 = sphi 0, %s58
      %s76 = sphi 0, %s76
      %s78 = sphi 0, %s76
      %s79 = sphi 0, %s78
      %s93 = sphi 0, %s79
      %s97 = sphi 0, %s97
      %s99 = sphi 0, %s97
      %s100 = sphi 0, %s99
      %s114 = sphi 0, %s100
      %s118 = sphi 0, %s118
      %s120 = sphi 0, %s118
      %s121 = sphi 0, %s120
      %s135 = sphi 0, %s121
      %s139 = sphi 0, %s139
      %s141 = sphi 0, %s139
      %s142 = sphi 0, %s141
      %s156 = sphi 0, %s142
      %s160 = sphi 0, %s160
      %s162 = sphi 0, %s160
      %s163 = sphi 0, %s162
      %s177 = sphi 0, %s163
      %s181 = sphi 0, %s181
      %s183 = sphi 0, %s181
      %s184 = sphi 0, %s183
      %s198 = sphi 0, %s184
      %s202 = sphi 0, %s202
      %s204 = sphi 0, %s202
      %s205 = sphi 0, %s204
      %s219 = sphi 0, %s205
      %s223 = sphi 0, %s223
      %s225 = sphi 0, %s223
      %s226 = sphi 0, %s225
      %s240 = sphi 0, %s226
      %s244 = sphi 0, %s244
      %s246 = sphi 0, %s244
      %s247 = sphi 0, %s246
      %s261 = sphi 0, %s247
      %s265 = sphi 0, %s265
      %s267 = sphi 0, %s265
      %s268 = sphi 0, %s267
      %s282 = sphi 0, %s268
      %s288 = sphi 0, %s290
      %s291 = sphi 0, %s288
      %s292 = sphi 0, %s291
      %s308 = sphi 0, %s292
    $region4: #{tpu_custom_call.1} parent=1 // loop_header_branch
      %24 = sbr.rel (%p22) target = $region8
    $region5: #{tpu_custom_call.1} parent=1 // loop_body
      %s26 = ssub.s32 %s21, 1
      %s27 = ssub.s32 %s21, 2
      %s28 = sadd.s32 %s21, 1
      %s29 = ssub.s32 %s21, %s28
      %p30 = scmp.eq.s32.totalorder %s29, 0
      %s32 = sadd.s32 %s31, 1
      %s33 = scalar_select %p30, %s31, %s32
      %p36 = pneg %p30
      %p37 = scmp.eq.s32.totalorder %s21, 1
      %p38 = por %p36, %p37
      %p39 = scmp.ne.s32.totalorder %s31, %s34
      %p40 = scmp.eq.s32.totalorder %s21, 0
      %p41 = por %p39, %p40
      %p42 = scmp.ne.s32.totalorder %s31, %s34
      %p43 = scmp.eq.s32.totalorder %s26, 1
      %p44 = por %p42, %p43
      %p45 = scmp.ne.s32.totalorder %s34, %s35
      %p46 = scmp.eq.s32.totalorder %s26, 0
      %p47 = por %p45, %p46
      %p48 = scmp.ne.s32.totalorder %s34, %s35
      %p49 = scmp.eq.s32.totalorder %s27, 1
      %p50 = por %p48, %p49
      %p52 = scmp.ne.s32.totalorder %s35, %s51
      %p53 = scmp.eq.s32.totalorder %s27, 0
      %p54 = por %p52, %p53
      %s56 = sadd.s32 %s55, 1
      %p59 = scmp.eq.s32.totalorder %s21, 1
      %p60 = scmp.ne.s32.totalorder %s55, %s57
      %p61 = scmp.eq.s32.totalorder %s21, 0
      %p62 = por %p60, %p61
      %p63 = scmp.ne.s32.totalorder %s55, %s57
      %p64 = scmp.eq.s32.totalorder %s26, 1
      %p65 = por %p63, %p64
      %p66 = scmp.ne.s32.totalorder %s57, %s58
      %p67 = scmp.eq.s32.totalorder %s26, 0
      %p68 = por %p66, %p67
      %p69 = scmp.ne.s32.totalorder %s57, %s58
      %p70 = scmp.eq.s32.totalorder %s27, 1
      %p71 = por %p69, %p70
      %p73 = scmp.ne.s32.totalorder %s58, %s72
      %p74 = scmp.eq.s32.totalorder %s27, 0
      %p75 = por %p73, %p74
      %s77 = sadd.s32 %s76, 1
      %p80 = scmp.eq.s32.totalorder %s21, 1
      %p81 = scmp.ne.s32.totalorder %s76, %s78
      %p82 = scmp.eq.s32.totalorder %s21, 0
      %p83 = por %p81, %p82
      %p84 = scmp.ne.s32.totalorder %s76, %s78
      %p85 = scmp.eq.s32.totalorder %s26, 1
      %p86 = por %p84, %p85
      %p87 = scmp.ne.s32.totalorder %s78, %s79
      %p88 = scmp.eq.s32.totalorder %s26, 0
      %p89 = por %p87, %p88
      %p90 = scmp.ne.s32.totalorder %s78, %s79
      %p91 = scmp.eq.s32.totalorder %s27, 1
      %p92 = por %p90, %p91
      %p94 = scmp.ne.s32.totalorder %s79, %s93
      %p95 = scmp.eq.s32.totalorder %s27, 0
      %p96 = por %p94, %p95
      %s98 = sadd.s32 %s97, 1
      %p101 = scmp.eq.s32.totalorder %s21, 1
      %p102 = scmp.ne.s32.totalorder %s97, %s99
      %p103 = scmp.eq.s32.totalorder %s21, 0
      %p104 = por %p102, %p103
      %p105 = scmp.ne.s32.totalorder %s97, %s99
      %p106 = scmp.eq.s32.totalorder %s26, 1
      %p107 = por %p105, %p106
      %p108 = scmp.ne.s32.totalorder %s99, %s100
      %p109 = scmp.eq.s32.totalorder %s26, 0
      %p110 = por %p108, %p109
      %p111 = scmp.ne.s32.totalorder %s99, %s100
      %p112 = scmp.eq.s32.totalorder %s27, 1
      %p113 = por %p111, %p112
      %p115 = scmp.ne.s32.totalorder %s100, %s114
      %p116 = scmp.eq.s32.totalorder %s27, 0
      %p117 = por %p115, %p116
      %s119 = sadd.s32 %s118, 1
      %p122 = scmp.eq.s32.totalorder %s21, 1
      %p123 = scmp.ne.s32.totalorder %s118, %s120
      %p124 = scmp.eq.s32.totalorder %s21, 0
      %p125 = por %p123, %p124
      %p126 = scmp.ne.s32.totalorder %s118, %s120
      %p127 = scmp.eq.s32.totalorder %s26, 1
      %p128 = por %p126, %p127
      %p129 = scmp.ne.s32.totalorder %s120, %s121
      %p130 = scmp.eq.s32.totalorder %s26, 0
      %p131 = por %p129, %p130
      %p132 = scmp.ne.s32.totalorder %s120, %s121
      %p133 = scmp.eq.s32.totalorder %s27, 1
      %p134 = por %p132, %p133
      %p136 = scmp.ne.s32.totalorder %s121, %s135
      %p137 = scmp.eq.s32.totalorder %s27, 0
      %p138 = por %p136, %p137
      %s140 = sadd.s32 %s139, 1
      %p143 = scmp.eq.s32.totalorder %s21, 1
      %p144 = scmp.ne.s32.totalorder %s139, %s141
      %p145 = scmp.eq.s32.totalorder %s21, 0
      %p146 = por %p144, %p145
      %p147 = scmp.ne.s32.totalorder %s139, %s141
      %p148 = scmp.eq.s32.totalorder %s26, 1
      %p149 = por %p147, %p148
      %p150 = scmp.ne.s32.totalorder %s141, %s142
      %p151 = scmp.eq.s32.totalorder %s26, 0
      %p152 = por %p150, %p151
      %p153 = scmp.ne.s32.totalorder %s141, %s142
      %p154 = scmp.eq.s32.totalorder %s27, 1
      %p155 = por %p153, %p154
      %p157 = scmp.ne.s32.totalorder %s142, %s156
      %p158 = scmp.eq.s32.totalorder %s27, 0
      %p159 = por %p157, %p158
      %s161 = sadd.s32 %s160, 1
      %p164 = scmp.eq.s32.totalorder %s21, 1
      %p165 = scmp.ne.s32.totalorder %s160, %s162
      %p166 = scmp.eq.s32.totalorder %s21, 0
      %p167 = por %p165, %p166
      %p168 = scmp.ne.s32.totalorder %s160, %s162
      %p169 = scmp.eq.s32.totalorder %s26, 1
      %p170 = por %p168, %p169
      %p171 = scmp.ne.s32.totalorder %s162, %s163
      %p172 = scmp.eq.s32.totalorder %s26, 0
      %p173 = por %p171, %p172
      %p174 = scmp.ne.s32.totalorder %s162, %s163
      %p175 = scmp.eq.s32.totalorder %s27, 1
      %p176 = por %p174, %p175
      %p178 = scmp.ne.s32.totalorder %s163, %s177
      %p179 = scmp.eq.s32.totalorder %s27, 0
      %p180 = por %p178, %p179
      %s182 = sadd.s32 %s181, 1
      %p185 = scmp.eq.s32.totalorder %s21, 1
      %p186 = scmp.ne.s32.totalorder %s181, %s183
      %p187 = scmp.eq.s32.totalorder %s21, 0
      %p188 = por %p186, %p187
      %p189 = scmp.ne.s32.totalorder %s181, %s183
      %p190 = scmp.eq.s32.totalorder %s26, 1
      %p191 = por %p189, %p190
      %p192 = scmp.ne.s32.totalorder %s183, %s184
      %p193 = scmp.eq.s32.totalorder %s26, 0
      %p194 = por %p192, %p193
      %p195 = scmp.ne.s32.totalorder %s183, %s184
      %p196 = scmp.eq.s32.totalorder %s27, 1
      %p197 = por %p195, %p196
      %p199 = scmp.ne.s32.totalorder %s184, %s198
      %p200 = scmp.eq.s32.totalorder %s27, 0
      %p201 = por %p199, %p200
      %s203 = sadd.s32 %s202, 1
      %p206 = scmp.eq.s32.totalorder %s21, 1
      %p207 = scmp.ne.s32.totalorder %s202, %s204
      %p208 = scmp.eq.s32.totalorder %s21, 0
      %p209 = por %p207, %p208
      %p210 = scmp.ne.s32.totalorder %s202, %s204
      %p211 = scmp.eq.s32.totalorder %s26, 1
      %p212 = por %p210, %p211
      %p213 = scmp.ne.s32.totalorder %s204, %s205
      %p214 = scmp.eq.s32.totalorder %s26, 0
      %p215 = por %p213, %p214
      %p216 = scmp.ne.s32.totalorder %s204, %s205
      %p217 = scmp.eq.s32.totalorder %s27, 1
      %p218 = por %p216, %p217
      %p220 = scmp.ne.s32.totalorder %s205, %s219
      %p221 = scmp.eq.s32.totalorder %s27, 0
      %p222 = por %p220, %p221
      %s224 = sadd.s32 %s223, 1
      %p227 = scmp.eq.s32.totalorder %s21, 1
      %p228 = scmp.ne.s32.totalorder %s223, %s225
      %p229 = scmp.eq.s32.totalorder %s21, 0
      %p230 = por %p228, %p229
      %p231 = scmp.ne.s32.totalorder %s223, %s225
      %p232 = scmp.eq.s32.totalorder %s26, 1
      %p233 = por %p231, %p232
      %p234 = scmp.ne.s32.totalorder %s225, %s226
      %p235 = scmp.eq.s32.totalorder %s26, 0
      %p236 = por %p234, %p235
      %p237 = scmp.ne.s32.totalorder %s225, %s226
      %p238 = scmp.eq.s32.totalorder %s27, 1
      %p239 = por %p237, %p238
      %p241 = scmp.ne.s32.totalorder %s226, %s240
      %p242 = scmp.eq.s32.totalorder %s27, 0
      %p243 = por %p241, %p242
      %s245 = sadd.s32 %s244, 1
      %p248 = scmp.eq.s32.totalorder %s21, 1
      %p249 = scmp.ne.s32.totalorder %s244, %s246
      %p250 = scmp.eq.s32.totalorder %s21, 0
      %p251 = por %p249, %p250
      %p252 = scmp.ne.s32.totalorder %s244, %s246
      %p253 = scmp.eq.s32.totalorder %s26, 1
      %p254 = por %p252, %p253
      %p255 = scmp.ne.s32.totalorder %s246, %s247
      %p256 = scmp.eq.s32.totalorder %s26, 0
      %p257 = por %p255, %p256
      %p258 = scmp.ne.s32.totalorder %s246, %s247
      %p259 = scmp.eq.s32.totalorder %s27, 1
      %p260 = por %p258, %p259
      %p262 = scmp.ne.s32.totalorder %s247, %s261
      %p263 = scmp.eq.s32.totalorder %s27, 0
      %p264 = por %p262, %p263
      %s266 = sadd.s32 %s265, 1
      %p269 = scmp.eq.s32.totalorder %s21, 1
      %p270 = scmp.ne.s32.totalorder %s265, %s267
      %p271 = scmp.eq.s32.totalorder %s21, 0
      %p272 = por %p270, %p271
      %p273 = scmp.ne.s32.totalorder %s265, %s267
      %p274 = scmp.eq.s32.totalorder %s26, 1
      %p275 = por %p273, %p274
      %p276 = scmp.ne.s32.totalorder %s267, %s268
      %p277 = scmp.eq.s32.totalorder %s26, 0
      %p278 = por %p276, %p277
      %p279 = scmp.ne.s32.totalorder %s267, %s268
      %p280 = scmp.eq.s32.totalorder %s27, 1
      %p281 = por %p279, %p280
      %p283 = scmp.ne.s32.totalorder %s268, %s282
      %p284 = scmp.eq.s32.totalorder %s27, 0
      %p285 = por %p283, %p284
      %s286 = ssub.s32 %s21, %s28
      %p287 = scmp.eq.s32.totalorder %s286, 0
      %s289 = sadd.s32 %s288, 1
      %s290 = scalar_select %p287, %s288, %s289
      %p293 = pneg %p287
      %p294 = scmp.eq.s32.totalorder %s21, 1
      %p295 = por %p293, %p294
      %p296 = scmp.ne.s32.totalorder %s288, %s291
      %p297 = scmp.eq.s32.totalorder %s21, 0
      %p298 = por %p296, %p297
      %p299 = scmp.ne.s32.totalorder %s288, %s291
      %p300 = scmp.eq.s32.totalorder %s26, 1
      %p301 = por %p299, %p300
      %p302 = scmp.ne.s32.totalorder %s291, %s292
      %p303 = scmp.eq.s32.totalorder %s26, 0
      %p304 = por %p302, %p303
      %p305 = scmp.ne.s32.totalorder %s291, %s292
      %p306 = scmp.eq.s32.totalorder %s27, 1
      %p307 = por %p305, %p306
      %p309 = scmp.ne.s32.totalorder %s292, %s308
      %p310 = scmp.eq.s32.totalorder %s27, 0
      %p311 = por %p309, %p310
      %p312 = scmp.le.s32.totalorder 1, %s21
      %p313 = scmp.lt.s32.totalorder %s21, 3
      %p314 = pnand %p312, %p313
      %p315 = pneg %p314
      // Predicated region
      $region9: #{tpu_custom_call.1} parent=5 // pred_check
        _
      $region10: #{tpu_custom_call.1} parent=5 // pred_check_branch
        %317 = sbr.rel (%p314) target = $region12
      $region11: #{tpu_custom_call.1} parent=5 // pred_region
        %s318 = ssub.s32 %s21, 1
        // Predicated region
        $region13: #{tpu_custom_call.1} parent=11 // pred_check
          %p319 = pneg %p68
        $region14: #{tpu_custom_call.1} parent=11 // pred_check_branch
          %321 = sbr.rel (%p319) target = $region16
        $region15: #{tpu_custom_call.1} parent=11 // pred_region
          _
        $region16: #{tpu_custom_call.1} parent=11 // pred_fallthru
          _
        // Predicated region
        $region17: #{tpu_custom_call.1} parent=11 // pred_check
          %p322 = pneg %p89
        $region18: #{tpu_custom_call.1} parent=11 // pred_check_branch
          %324 = sbr.rel (%p322) target = $region20
        $region19: #{tpu_custom_call.1} parent=11 // pred_region
          _
        $region20: #{tpu_custom_call.1} parent=11 // pred_fallthru
          _
        // Predicated region
        $region21: #{tpu_custom_call.1} parent=11 // pred_check
          %p325 = pneg %p110
        $region22: #{tpu_custom_call.1} parent=11 // pred_check_branch
          %327 = sbr.rel (%p325) target = $region24
        $region23: #{tpu_custom_call.1} parent=11 // pred_region
          _
        $region24: #{tpu_custom_call.1} parent=11 // pred_fallthru
          _
        // Predicated region
        $region25: #{tpu_custom_call.1} parent=11 // pred_check
          %p328 = pneg %p131
        $region26: #{tpu_custom_call.1} parent=11 // pred_check_branch
          %330 = sbr.rel (%p328) target = $region28
        $region27: #{tpu_custom_call.1} parent=11 // pred_region
          _
        $region28: #{tpu_custom_call.1} parent=11 // pred_fallthru
          _
        // Predicated region
        $region29: #{tpu_custom_call.1} parent=11 // pred_check
          %p331 = pneg %p152
        $region30: #{tpu_custom_call.1} parent=11 // pred_check_branch
          %333 = sbr.rel (%p331) target = $region32
        $region31: #{tpu_custom_call.1} parent=11 // pred_region
          _
        $region32: #{tpu_custom_call.1} parent=11 // pred_fallthru
          _
        // Predicated region
        $region33: #{tpu_custom_call.1} parent=11 // pred_check
          %p334 = pneg %p173
        $region34: #{tpu_custom_call.1} parent=11 // pred_check_branch
          %336 = sbr.rel (%p334) target = $region36
        $region35: #{tpu_custom_call.1} parent=11 // pred_region
          _
        $region36: #{tpu_custom_call.1} parent=11 // pred_fallthru
          _
        // Predicated region
        $region37: #{tpu_custom_call.1} parent=11 // pred_check
          %p337 = pneg %p194
        $region38: #{tpu_custom_call.1} parent=11 // pred_check_branch
          %339 = sbr.rel (%p337) target = $region40
        $region39: #{tpu_custom_call.1} parent=11 // pred_region
          _
        $region40: #{tpu_custom_call.1} parent=11 // pred_fallthru
          _
        // Predicated region
        $region41: #{tpu_custom_call.1} parent=11 // pred_check
          %p340 = pneg %p215
        $region42: #{tpu_custom_call.1} parent=11 // pred_check_branch
          %342 = sbr.rel (%p340) target = $region44
        $region43: #{tpu_custom_call.1} parent=11 // pred_region
          _
        $region44: #{tpu_custom_call.1} parent=11 // pred_fallthru
          _
        // Predicated region
        $region45: #{tpu_custom_call.1} parent=11 // pred_check
          %p343 = pneg %p236
        $region46: #{tpu_custom_call.1} parent=11 // pred_check_branch
          %345 = sbr.rel (%p343) target = $region48
        $region47: #{tpu_custom_call.1} parent=11 // pred_region
          _
        $region48: #{tpu_custom_call.1} parent=11 // pred_fallthru
          _
        // Predicated region
        $region49: #{tpu_custom_call.1} parent=11 // pred_check
          %p346 = pneg %p257
        $region50: #{tpu_custom_call.1} parent=11 // pred_check_branch
          %348 = sbr.rel (%p346) target = $region52
        $region51: #{tpu_custom_call.1} parent=11 // pred_region
          _
        $region52: #{tpu_custom_call.1} parent=11 // pred_fallthru
          _
        // Predicated region
        $region53: #{tpu_custom_call.1} parent=11 // pred_check
          %p349 = pneg %p278
        $region54: #{tpu_custom_call.1} parent=11 // pred_check_branch
          %351 = sbr.rel (%p349) target = $region56
        $region55: #{tpu_custom_call.1} parent=11 // pred_region
          _
        $region56: #{tpu_custom_call.1} parent=11 // pred_fallthru
          _
      $region12: #{tpu_custom_call.1} parent=5 // pred_fallthru
        _
      %p352 = scmp.lt.s32.totalorder %s21, 2
      // Predicated region
      $region57: #{tpu_custom_call.1} parent=5 // pred_check
        %p353 = pneg %p352
      $region58: #{tpu_custom_call.1} parent=5 // pred_check_branch
        %355 = sbr.rel (%p353) target = $region60
      $region59: #{tpu_custom_call.1} parent=5 // pred_region
        // Predicated region
        $region61: #{tpu_custom_call.1} parent=59 // pred_check
          %p356 = pneg %p41
        $region62: #{tpu_custom_call.1} parent=59 // pred_check_branch
          %358 = sbr.rel (%p356) target = $region64
        $region63: #{tpu_custom_call.1} parent=59 // pred_region
          %s359 = sand.u32 %s31, 1
          %s360 = scalar_lea.sflag [#allocation5], %s359
          %s361 = sand.u32 %s31, 1
          %s362 = smul.addr %s361, 256
          %s363 = scalar_lea.vmem [#allocation4], %s362
          %365 = vsyncadd %s360, 0
          %s366 = smul.addr %s21, 32
          %s367 = smul.addr %s366, 8
          %s368 = scalar_lea.hbm %s0, %s367
          %s369 = sshll.u32 %s368, 4
          %s370 = int_to_ptr.hbm [resolvable:$true] %s369
          %s371 = sshll.u32 %s363, 4
          %s372 = int_to_ptr.vmem [resolvable:$true] %s371
          %377 = dma.hbm_to_vmem [thread:$0]  %s370, 4096, %s372, %s360, 128, 128, 8
        $region64: #{tpu_custom_call.1} parent=59 // pred_fallthru
          _
      $region60: #{tpu_custom_call.1} parent=5 // pred_fallthru
        _
      %p378 = scmp.le.s32.totalorder 1, %s21
      %p379 = scmp.lt.s32.totalorder %s21, 3
      %p380 = pnand %p378, %p379
      %p381 = pneg %p380
      // Predicated region
      $region65: #{tpu_custom_call.1} parent=5 // pred_check
        _
      $region66: #{tpu_custom_call.1} parent=5 // pred_check_branch
        %383 = sbr.rel (%p380) target = $region68
      $region67: #{tpu_custom_call.1} parent=5 // pred_region
        %s384 = ssub.s32 %s21, 1
        %s385 = sand.u32 %s34, 1
        %s386 = scalar_lea.sflag [#allocation5], %s385
        %s387 = sand.u32 %s34, 1
        %s388 = smul.addr %s387, 256
        %s389 = scalar_lea.vmem [#allocation4], %s388
        // Predicated region
        $region69: #{tpu_custom_call.1} parent=67 // pred_check
          %p390 = pneg %p47
        $region70: #{tpu_custom_call.1} parent=67 // pred_check_branch
          %392 = sbr.rel (%p390) target = $region72
        $region71: #{tpu_custom_call.1} parent=67 // pred_region
          %394 = dma.done %s386, 4096
        $region72: #{tpu_custom_call.1} parent=67 // pred_fallthru
          _
        %s395 = sand.u32 %s34, 1
        %s396 = scalar_lea.sflag [#allocation5], %s395
        %s397 = sand.u32 %s34, 1
        %s398 = smul.addr %s397, 256
        %s399 = scalar_lea.vmem [#allocation4], %s398
        %p400 = pneg %p47
        %p401 = pneg %p44
        %p402 = pneg %p68
        %p403 = pneg %p65
        %p404 = pneg %p89
        %p405 = pneg %p86
        %p406 = pneg %p110
        %p407 = pneg %p107
        %p408 = pneg %p131
        %p409 = pneg %p128
        %p410 = pneg %p152
        %p411 = pneg %p149
        %p412 = pneg %p173
        %p413 = pneg %p170
        %p414 = pneg %p194
        %p415 = pneg %p191
        %p416 = pneg %p215
        %p417 = pneg %p212
        %p418 = pneg %p236
        %p419 = pneg %p233
        %p420 = pneg %p257
        %p421 = pneg %p254
        %p422 = pneg %p278
        %p423 = pneg %p275
        %p424 = pneg %p304
        %p425 = pneg %p301
        %p426 = scmp.lt.s32.totalorder %s26, 1
        %s427 = scalar_select %p426, %s26, 1
        %s428 = smul.addr %s427, 8
        %s429 = smul.addr %s428, 8
        %s430 = scalar_lea.vmem %s12, %s429
        %p431 = scmp.lt.s32.totalorder %s26, 1
        %s432 = scalar_select %p431, %s26, 1
        %s433 = smul.addr %s432, 8
        %s434 = smul.addr %s433, 8
        %s435 = scalar_lea.vmem %s12, %s434
        %v436 = vld [vmem:[%s389] sm:$0xff]
        %v437 = vld [vmem:[%s389 + $0x8] sm:$0xff]
        %v438 = vld [vmem:[%s389 + $0x10] sm:$0xff]
        %v439 = vld [vmem:[%s389 + $0x18] sm:$0xff]
        %v440 = vld [vmem:[%s389 + $0x20] sm:$0xff]
        %v441 = vld [vmem:[%s389 + $0x28] sm:$0xff]
        %v442 = vld [vmem:[%s389 + $0x30] sm:$0xff]
        %v443 = vld [vmem:[%s389 + $0x38] sm:$0xff]
        %v444 = vld [vmem:[%s389 + $0x40] sm:$0xff]
        %v445 = vld [vmem:[%s389 + $0x48] sm:$0xff]
        %v446 = vld [vmem:[%s389 + $0x50] sm:$0xff]
        %v447 = vld [vmem:[%s389 + $0x58] sm:$0xff]
        %v448 = vld [vmem:[%s389 + $0x60] sm:$0xff]
        %v449 = vld [vmem:[%s389 + $0x68] sm:$0xff]
        %v450 = vld [vmem:[%s389 + $0x70] sm:$0xff]
        %v451 = vld [vmem:[%s389 + $0x78] sm:$0xff]
        %v452 = vld [vmem:[%s389 + $0x80] sm:$0xff]
        %v453 = vld [vmem:[%s389 + $0x88] sm:$0xff]
        %v454 = vld [vmem:[%s389 + $0x90] sm:$0xff]
        %v455 = vld [vmem:[%s389 + $0x98] sm:$0xff]
        %v456 = vld [vmem:[%s389 + $0xa0] sm:$0xff]
        %v457 = vld [vmem:[%s389 + $0xa8] sm:$0xff]
        %v458 = vld [vmem:[%s389 + $0xb0] sm:$0xff]
        %v459 = vld [vmem:[%s389 + $0xb8] sm:$0xff]
        %v460 = vld [vmem:[%s389 + $0xc0] sm:$0xff]
        %v461 = vld [vmem:[%s389 + $0xc8] sm:$0xff]
        %v462 = vld [vmem:[%s389 + $0xd0] sm:$0xff]
        %v463 = vld [vmem:[%s389 + $0xd8] sm:$0xff]
        %v464 = vld [vmem:[%s389 + $0xe0] sm:$0xff]
        %v465 = vld [vmem:[%s389 + $0xe8] sm:$0xff]
        %v466 = vld [vmem:[%s389 + $0xf0] sm:$0xff]
        %v467 = vld [vmem:[%s389 + $0xf8] sm:$0xff]
        %v468 = vld [vmem:[%s1] sm:$0x1]
        %v470 = vperm.slane %v468, 0
        %v472 = vmul.f32 %v436, %v470
        %v473 = vmul.f32 %v437, %v470
        %v474 = vmul.f32 %v438, %v470
        %v475 = vmul.f32 %v439, %v470
        %v476 = vmul.f32 %v440, %v470
        %v477 = vmul.f32 %v441, %v470
        %v478 = vmul.f32 %v442, %v470
        %v479 = vmul.f32 %v443, %v470
        %v480 = vmul.f32 %v444, %v470
        %v481 = vmul.f32 %v445, %v470
        %v482 = vmul.f32 %v446, %v470
        %v483 = vmul.f32 %v447, %v470
        %v484 = vmul.f32 %v448, %v470
        %v485 = vmul.f32 %v449, %v470
        %v486 = vmul.f32 %v450, %v470
        %v487 = vmul.f32 %v451, %v470
        %v488 = vmul.f32 %v452, %v470
        %v489 = vmul.f32 %v453, %v470
        %v490 = vmul.f32 %v454, %v470
        %v491 = vmul.f32 %v455, %v470
        %v492 = vmul.f32 %v456, %v470
        %v493 = vmul.f32 %v457, %v470
        %v494 = vmul.f32 %v458, %v470
        %v495 = vmul.f32 %v459, %v470
        %v496 = vmul.f32 %v460, %v470
        %v497 = vmul.f32 %v461, %v470
        %v498 = vmul.f32 %v462, %v470
        %v499 = vmul.f32 %v463, %v470
        %v500 = vmul.f32 %v464, %v470
        %v501 = vmul.f32 %v465, %v470
        %v502 = vmul.f32 %v466, %v470
        %v503 = vmul.f32 %v467, %v470
        %v504 = vld [vmem:[%s2] sm:$0x1]
        %v506 = vperm.slane %v504, 0
        %v508 = vadd.f32 %v472, %v506
        %v509 = vadd.f32 %v473, %v506
        %v510 = vadd.f32 %v474, %v506
        %v511 = vadd.f32 %v475, %v506
        %v512 = vadd.f32 %v476, %v506
        %v513 = vadd.f32 %v477, %v506
        %v514 = vadd.f32 %v478, %v506
        %v515 = vadd.f32 %v479, %v506
        %v516 = vadd.f32 %v480, %v506
        %v517 = vadd.f32 %v481, %v506
        %v518 = vadd.f32 %v482, %v506
        %v519 = vadd.f32 %v483, %v506
        %v520 = vadd.f32 %v484, %v506
        %v521 = vadd.f32 %v485, %v506
        %v522 = vadd.f32 %v486, %v506
        %v523 = vadd.f32 %v487, %v506
        %v524 = vadd.f32 %v488, %v506
        %v525 = vadd.f32 %v489, %v506
        %v526 = vadd.f32 %v490, %v506
        %v527 = vadd.f32 %v491, %v506
        %v528 = vadd.f32 %v492, %v506
        %v529 = vadd.f32 %v493, %v506
        %v530 = vadd.f32 %v494, %v506
        %v531 = vadd.f32 %v495, %v506
        %v532 = vadd.f32 %v496, %v506
        %v533 = vadd.f32 %v497, %v506
        %v534 = vadd.f32 %v498, %v506
        %v535 = vadd.f32 %v499, %v506
        %v536 = vadd.f32 %v500, %v506
        %v537 = vadd.f32 %v501, %v506
        %v538 = vadd.f32 %v502, %v506
        %v539 = vadd.f32 %v503, %v506
        %vm540 = vcmask 130048
        %541 = vst.msk [vmem:[#allocation2] sm:$0xff] %vm540, 0.0
        %542 = vst.msk [vmem:[#allocation2 + $0x8] sm:$0xff] %vm540, 0.0
        %vm543 = vcmask 123904
        %544 = vst.msk [vmem:[#allocation2 + $0x10] sm:$0x3] %vm543, 0.0
        %s545 = scalar_lea.vmem [#allocation2], 408
        %546 = vst.msk [vmem:[%s545] sm:$0xff] %vm540, 0.0
        %547 = vst.msk [vmem:[%s545 + $0x8] sm:$0xff] %vm540, 0.0
        %548 = vst.msk [vmem:[%s545 + $0x10] sm:$0x3] %vm543, 0.0
        %vm549 = vcmask 122880
        %550 = vst.msk [vmem:[#allocation2] sm:$0x1] %vm549, 0.0
        %551 = vst.msk [vmem:[#allocation2 + $0x18] sm:$0x1] %vm549, 0.0
        %552 = vst.msk [vmem:[#allocation2 + $0x30] sm:$0x1] %vm549, 0.0
        %553 = vst.msk [vmem:[#allocation2 + $0x48] sm:$0x1] %vm549, 0.0
        %554 = vst.msk [vmem:[#allocation2 + $0x60] sm:$0x1] %vm549, 0.0
        %555 = vst.msk [vmem:[#allocation2 + $0x78] sm:$0x1] %vm549, 0.0
        %556 = vst.msk [vmem:[#allocation2 + $0x90] sm:$0x1] %vm549, 0.0
        %557 = vst.msk [vmem:[#allocation2 + $0xa8] sm:$0x1] %vm549, 0.0
        %558 = vst.msk [vmem:[#allocation2 + $0xc0] sm:$0x1] %vm549, 0.0
        %559 = vst.msk [vmem:[#allocation2 + $0xd8] sm:$0x1] %vm549, 0.0
        %560 = vst.msk [vmem:[#allocation2 + $0xf0] sm:$0x1] %vm549, 0.0
        %561 = vst.msk [vmem:[#allocation2 + $0x108] sm:$0x1] %vm549, 0.0
        %562 = vst.msk [vmem:[#allocation2 + $0x120] sm:$0x1] %vm549, 0.0
        %563 = vst.msk [vmem:[#allocation2 + $0x138] sm:$0x1] %vm549, 0.0
        %564 = vst.msk [vmem:[#allocation2 + $0x150] sm:$0x1] %vm549, 0.0
        %565 = vst.msk [vmem:[#allocation2 + $0x168] sm:$0x1] %vm549, 0.0
        %566 = vst.msk [vmem:[#allocation2 + $0x180] sm:$0x1] %vm549, 0.0
        %567 = vst.msk [vmem:[#allocation2 + $0x198] sm:$0x1] %vm549, 0.0
        %568 = vst.msk [vmem:[#allocation2 + $0x11] sm:$0x1] %vm549, 0.0
        %569 = vst.msk [vmem:[#allocation2 + $0x29] sm:$0x1] %vm549, 0.0
        %570 = vst.msk [vmem:[#allocation2 + $0x41] sm:$0x1] %vm549, 0.0
        %571 = vst.msk [vmem:[#allocation2 + $0x59] sm:$0x1] %vm549, 0.0
        %572 = vst.msk [vmem:[#allocation2 + $0x71] sm:$0x1] %vm549, 0.0
        %573 = vst.msk [vmem:[#allocation2 + $0x89] sm:$0x1] %vm549, 0.0
        %574 = vst.msk [vmem:[#allocation2 + $0xa1] sm:$0x1] %vm549, 0.0
        %575 = vst.msk [vmem:[#allocation2 + $0xb9] sm:$0x1] %vm549, 0.0
        %576 = vst.msk [vmem:[#allocation2 + $0xd1] sm:$0x1] %vm549, 0.0
        %577 = vst.msk [vmem:[#allocation2 + $0xe9] sm:$0x1] %vm549, 0.0
        %578 = vst.msk [vmem:[#allocation2 + $0x101] sm:$0x1] %vm549, 0.0
        %579 = vst.msk [vmem:[#allocation2 + $0x119] sm:$0x1] %vm549, 0.0
        %580 = vst.msk [vmem:[#allocation2 + $0x131] sm:$0x1] %vm549, 0.0
        %581 = vst.msk [vmem:[#allocation2 + $0x149] sm:$0x1] %vm549, 0.0
        %582 = vst.msk [vmem:[#allocation2 + $0x161] sm:$0x1] %vm549, 0.0
        %583 = vst.msk [vmem:[#allocation2 + $0x179] sm:$0x1] %vm549, 0.0
        %584 = vst.msk [vmem:[#allocation2 + $0x191] sm:$0x1] %vm549, 0.0
        %585 = vst.msk [vmem:[#allocation2 + $0x1a9] sm:$0x1] %vm549, 0.0
        %s586 = scalar_lea.vmem [#allocation2], 24
        %587 = vst.msk [vmem:[%s586 + $0x1] sm:$0xff] %vm540, %v508
        %588 = vst.msk [vmem:[%s586 + $0x9] sm:$0xff] %vm540, %v509
        %589 = vst.msk [vmem:[%s586 + $0x19] sm:$0xff] %vm540, %v510
        %590 = vst.msk [vmem:[%s586 + $0x21] sm:$0xff] %vm540, %v511
        %591 = vst.msk [vmem:[%s586 + $0x31] sm:$0xff] %vm540, %v512
        %592 = vst.msk [vmem:[%s586 + $0x39] sm:$0xff] %vm540, %v513
        %593 = vst.msk [vmem:[%s586 + $0x49] sm:$0xff] %vm540, %v514
        %594 = vst.msk [vmem:[%s586 + $0x51] sm:$0xff] %vm540, %v515
        %595 = vst.msk [vmem:[%s586 + $0x61] sm:$0xff] %vm540, %v516
        %596 = vst.msk [vmem:[%s586 + $0x69] sm:$0xff] %vm540, %v517
        %597 = vst.msk [vmem:[%s586 + $0x79] sm:$0xff] %vm540, %v518
        %598 = vst.msk [vmem:[%s586 + $0x81] sm:$0xff] %vm540, %v519
        %599 = vst.msk [vmem:[%s586 + $0x91] sm:$0xff] %vm540, %v520
        %600 = vst.msk [vmem:[%s586 + $0x99] sm:$0xff] %vm540, %v521
        %601 = vst.msk [vmem:[%s586 + $0xa9] sm:$0xff] %vm540, %v522
        %602 = vst.msk [vmem:[%s586 + $0xb1] sm:$0xff] %vm540, %v523
        %603 = vst.msk [vmem:[%s586 + $0xc1] sm:$0xff] %vm540, %v524
        %604 = vst.msk [vmem:[%s586 + $0xc9] sm:$0xff] %vm540, %v525
        %605 = vst.msk [vmem:[%s586 + $0xd9] sm:$0xff] %vm540, %v526
        %606 = vst.msk [vmem:[%s586 + $0xe1] sm:$0xff] %vm540, %v527
        %607 = vst.msk [vmem:[%s586 + $0xf1] sm:$0xff] %vm540, %v528
        %608 = vst.msk [vmem:[%s586 + $0xf9] sm:$0xff] %vm540, %v529
        %609 = vst.msk [vmem:[%s586 + $0x109] sm:$0xff] %vm540, %v530
        %610 = vst.msk [vmem:[%s586 + $0x111] sm:$0xff] %vm540, %v531
        %611 = vst.msk [vmem:[%s586 + $0x121] sm:$0xff] %vm540, %v532
        %612 = vst.msk [vmem:[%s586 + $0x129] sm:$0xff] %vm540, %v533
        %613 = vst.msk [vmem:[%s586 + $0x139] sm:$0xff] %vm540, %v534
        %614 = vst.msk [vmem:[%s586 + $0x141] sm:$0xff] %vm540, %v535
        %615 = vst.msk [vmem:[%s586 + $0x151] sm:$0xff] %vm540, %v536
        %616 = vst.msk [vmem:[%s586 + $0x159] sm:$0xff] %vm540, %v537
        %617 = vst.msk [vmem:[%s586 + $0x169] sm:$0xff] %vm540, %v538
        %618 = vst.msk [vmem:[%s586 + $0x171] sm:$0xff] %vm540, %v539
        %v619 = vld [vmem:[#allocation2] sm:$0xff]
        %v620 = vld [vmem:[#allocation2 + $0x8] sm:$0xff]
        %v621 = vld [vmem:[#allocation2 + $0x18] sm:$0xff]
        %v622 = vld [vmem:[#allocation2 + $0x20] sm:$0xff]
        %v623 = vld [vmem:[#allocation2 + $0x30] sm:$0xff]
        %v624 = vld [vmem:[#allocation2 + $0x38] sm:$0xff]
        %v625 = vld [vmem:[#allocation2 + $0x48] sm:$0xff]
        %v626 = vld [vmem:[#allocation2 + $0x50] sm:$0xff]
        %v627 = vld [vmem:[#allocation2 + $0x60] sm:$0xff]
        %v628 = vld [vmem:[#allocation2 + $0x68] sm:$0xff]
        %v629 = vld [vmem:[#allocation2 + $0x78] sm:$0xff]
        %v630 = vld [vmem:[#allocation2 + $0x80] sm:$0xff]
        %v631 = vld [vmem:[#allocation2 + $0x90] sm:$0xff]
        %v632 = vld [vmem:[#allocation2 + $0x98] sm:$0xff]
        %v633 = vld [vmem:[#allocation2 + $0xa8] sm:$0xff]
        %v634 = vld [vmem:[#allocation2 + $0xb0] sm:$0xff]
        %v635 = vld [vmem:[#allocation2 + $0xc0] sm:$0xff]
        %v636 = vld [vmem:[#allocation2 + $0xc8] sm:$0xff]
        %v637 = vld [vmem:[#allocation2 + $0xd8] sm:$0xff]
        %v638 = vld [vmem:[#allocation2 + $0xe0] sm:$0xff]
        %v639 = vld [vmem:[#allocation2 + $0xf0] sm:$0xff]
        %v640 = vld [vmem:[#allocation2 + $0xf8] sm:$0xff]
        %v641 = vld [vmem:[#allocation2 + $0x108] sm:$0xff]
        %v642 = vld [vmem:[#allocation2 + $0x110] sm:$0xff]
        %v643 = vld [vmem:[#allocation2 + $0x120] sm:$0xff]
        %v644 = vld [vmem:[#allocation2 + $0x128] sm:$0xff]
        %v645 = vld [vmem:[#allocation2 + $0x138] sm:$0xff]
        %v646 = vld [vmem:[#allocation2 + $0x140] sm:$0xff]
        %v647 = vld [vmem:[#allocation2 + $0x150] sm:$0xff]
        %v648 = vld [vmem:[#allocation2 + $0x158] sm:$0xff]
        %v649 = vld [vmem:[#allocation2 + $0x168] sm:$0xff]
        %v650 = vld [vmem:[#allocation2 + $0x170] sm:$0xff]
        %v651 = vld [vmem:[#allocation2 + $0x1] sm:$0xff]
        %v652 = vld [vmem:[#allocation2 + $0x9] sm:$0xff]
        %v653 = vld [vmem:[#allocation2 + $0x19] sm:$0xff]
        %v654 = vld [vmem:[#allocation2 + $0x21] sm:$0xff]
        %v655 = vld [vmem:[#allocation2 + $0x31] sm:$0xff]
        %v656 = vld [vmem:[#allocation2 + $0x39] sm:$0xff]
        %v657 = vld [vmem:[#allocation2 + $0x49] sm:$0xff]
        %v658 = vld [vmem:[#allocation2 + $0x51] sm:$0xff]
        %v659 = vld [vmem:[#allocation2 + $0x61] sm:$0xff]
        %v660 = vld [vmem:[#allocation2 + $0x69] sm:$0xff]
        %v661 = vld [vmem:[#allocation2 + $0x79] sm:$0xff]
        %v662 = vld [vmem:[#allocation2 + $0x81] sm:$0xff]
        %v663 = vld [vmem:[#allocation2 + $0x91] sm:$0xff]
        %v664 = vld [vmem:[#allocation2 + $0x99] sm:$0xff]
        %v665 = vld [vmem:[#allocation2 + $0xa9] sm:$0xff]
        %v666 = vld [vmem:[#allocation2 + $0xb1] sm:$0xff]
        %v667 = vld [vmem:[#allocation2 + $0xc1] sm:$0xff]
        %v668 = vld [vmem:[#allocation2 + $0xc9] sm:$0xff]
        %v669 = vld [vmem:[#allocation2 + $0xd9] sm:$0xff]
        %v670 = vld [vmem:[#allocation2 + $0xe1] sm:$0xff]
        %v671 = vld [vmem:[#allocation2 + $0xf1] sm:$0xff]
        %v672 = vld [vmem:[#allocation2 + $0xf9] sm:$0xff]
        %v673 = vld [vmem:[#allocation2 + $0x109] sm:$0xff]
        %v674 = vld [vmem:[#allocation2 + $0x111] sm:$0xff]
        %v675 = vld [vmem:[#allocation2 + $0x121] sm:$0xff]
        %v676 = vld [vmem:[#allocation2 + $0x129] sm:$0xff]
        %v677 = vld [vmem:[#allocation2 + $0x139] sm:$0xff]
        %v678 = vld [vmem:[#allocation2 + $0x141] sm:$0xff]
        %v679 = vld [vmem:[#allocation2 + $0x151] sm:$0xff]
        %v680 = vld [vmem:[#allocation2 + $0x159] sm:$0xff]
        %v681 = vld [vmem:[#allocation2 + $0x169] sm:$0xff]
        %v682 = vld [vmem:[#allocation2 + $0x171] sm:$0xff]
        %v683 = vld [vmem:[#allocation2 + $0x2] sm:$0xff]
        %v684 = vld [vmem:[#allocation2 + $0xa] sm:$0xff]
        %v685 = vld [vmem:[#allocation2 + $0x1a] sm:$0xff]
        %v686 = vld [vmem:[#allocation2 + $0x22] sm:$0xff]
        %v687 = vld [vmem:[#allocation2 + $0x32] sm:$0xff]
        %v688 = vld [vmem:[#allocation2 + $0x3a] sm:$0xff]
        %v689 = vld [vmem:[#allocation2 + $0x4a] sm:$0xff]
        %v690 = vld [vmem:[#allocation2 + $0x52] sm:$0xff]
        %v691 = vld [vmem:[#allocation2 + $0x62] sm:$0xff]
        %v692 = vld [vmem:[#allocation2 + $0x6a] sm:$0xff]
        %v693 = vld [vmem:[#allocation2 + $0x7a] sm:$0xff]
        %v694 = vld [vmem:[#allocation2 + $0x82] sm:$0xff]
        %v695 = vld [vmem:[#allocation2 + $0x92] sm:$0xff]
        %v696 = vld [vmem:[#allocation2 + $0x9a] sm:$0xff]
        %v697 = vld [vmem:[#allocation2 + $0xaa] sm:$0xff]
        %v698 = vld [vmem:[#allocation2 + $0xb2] sm:$0xff]
        %v699 = vld [vmem:[#allocation2 + $0xc2] sm:$0xff]
        %v700 = vld [vmem:[#allocation2 + $0xca] sm:$0xff]
        %v701 = vld [vmem:[#allocation2 + $0xda] sm:$0xff]
        %v702 = vld [vmem:[#allocation2 + $0xe2] sm:$0xff]
        %v703 = vld [vmem:[#allocation2 + $0xf2] sm:$0xff]
        %v704 = vld [vmem:[#allocation2 + $0xfa] sm:$0xff]
        %v705 = vld [vmem:[#allocation2 + $0x10a] sm:$0xff]
        %v706 = vld [vmem:[#allocation2 + $0x112] sm:$0xff]
        %v707 = vld [vmem:[#allocation2 + $0x122] sm:$0xff]
        %v708 = vld [vmem:[#allocation2 + $0x12a] sm:$0xff]
        %v709 = vld [vmem:[#allocation2 + $0x13a] sm:$0xff]
        %v710 = vld [vmem:[#allocation2 + $0x142] sm:$0xff]
        %v711 = vld [vmem:[#allocation2 + $0x152] sm:$0xff]
        %v712 = vld [vmem:[#allocation2 + $0x15a] sm:$0xff]
        %v713 = vld [vmem:[#allocation2 + $0x16a] sm:$0xff]
        %v714 = vld [vmem:[#allocation2 + $0x172] sm:$0xff]
        %v715 = vld [vmem:[%s586] sm:$0xff]
        %v716 = vld [vmem:[%s586 + $0x8] sm:$0xff]
        %v717 = vld [vmem:[%s586 + $0x18] sm:$0xff]
        %v718 = vld [vmem:[%s586 + $0x20] sm:$0xff]
        %v719 = vld [vmem:[%s586 + $0x30] sm:$0xff]
        %v720 = vld [vmem:[%s586 + $0x38] sm:$0xff]
        %v721 = vld [vmem:[%s586 + $0x48] sm:$0xff]
        %v722 = vld [vmem:[%s586 + $0x50] sm:$0xff]
        %v723 = vld [vmem:[%s586 + $0x60] sm:$0xff]
        %v724 = vld [vmem:[%s586 + $0x68] sm:$0xff]
        %v725 = vld [vmem:[%s586 + $0x78] sm:$0xff]
        %v726 = vld [vmem:[%s586 + $0x80] sm:$0xff]
        %v727 = vld [vmem:[%s586 + $0x90] sm:$0xff]
        %v728 = vld [vmem:[%s586 + $0x98] sm:$0xff]
        %v729 = vld [vmem:[%s586 + $0xa8] sm:$0xff]
        %v730 = vld [vmem:[%s586 + $0xb0] sm:$0xff]
        %v731 = vld [vmem:[%s586 + $0xc0] sm:$0xff]
        %v732 = vld [vmem:[%s586 + $0xc8] sm:$0xff]
        %v733 = vld [vmem:[%s586 + $0xd8] sm:$0xff]
        %v734 = vld [vmem:[%s586 + $0xe0] sm:$0xff]
        %v735 = vld [vmem:[%s586 + $0xf0] sm:$0xff]
        %v736 = vld [vmem:[%s586 + $0xf8] sm:$0xff]
        %v737 = vld [vmem:[%s586 + $0x108] sm:$0xff]
        %v738 = vld [vmem:[%s586 + $0x110] sm:$0xff]
        %v739 = vld [vmem:[%s586 + $0x120] sm:$0xff]
        %v740 = vld [vmem:[%s586 + $0x128] sm:$0xff]
        %v741 = vld [vmem:[%s586 + $0x138] sm:$0xff]
        %v742 = vld [vmem:[%s586 + $0x140] sm:$0xff]
        %v743 = vld [vmem:[%s586 + $0x150] sm:$0xff]
        %v744 = vld [vmem:[%s586 + $0x158] sm:$0xff]
        %v745 = vld [vmem:[%s586 + $0x168] sm:$0xff]
        %v746 = vld [vmem:[%s586 + $0x170] sm:$0xff]
        %v747 = vld [vmem:[%s586 + $0x1] sm:$0xff]
        %v748 = vld [vmem:[%s586 + $0x9] sm:$0xff]
        %v749 = vld [vmem:[%s586 + $0x19] sm:$0xff]
        %v750 = vld [vmem:[%s586 + $0x21] sm:$0xff]
        %v751 = vld [vmem:[%s586 + $0x31] sm:$0xff]
        %v752 = vld [vmem:[%s586 + $0x39] sm:$0xff]
        %v753 = vld [vmem:[%s586 + $0x49] sm:$0xff]
        %v754 = vld [vmem:[%s586 + $0x51] sm:$0xff]
        %v755 = vld [vmem:[%s586 + $0x61] sm:$0xff]
        %v756 = vld [vmem:[%s586 + $0x69] sm:$0xff]
        %v757 = vld [vmem:[%s586 + $0x79] sm:$0xff]
        %v758 = vld [vmem:[%s586 + $0x81] sm:$0xff]
        %v759 = vld [vmem:[%s586 + $0x91] sm:$0xff]
        %v760 = vld [vmem:[%s586 + $0x99] sm:$0xff]
        %v761 = vld [vmem:[%s586 + $0xa9] sm:$0xff]
        %v762 = vld [vmem:[%s586 + $0xb1] sm:$0xff]
        %v763 = vld [vmem:[%s586 + $0xc1] sm:$0xff]
        %v764 = vld [vmem:[%s586 + $0xc9] sm:$0xff]
        %v765 = vld [vmem:[%s586 + $0xd9] sm:$0xff]
        %v766 = vld [vmem:[%s586 + $0xe1] sm:$0xff]
        %v767 = vld [vmem:[%s586 + $0xf1] sm:$0xff]
        %v768 = vld [vmem:[%s586 + $0xf9] sm:$0xff]
        %v769 = vld [vmem:[%s586 + $0x109] sm:$0xff]
        %v770 = vld [vmem:[%s586 + $0x111] sm:$0xff]
        %v771 = vld [vmem:[%s586 + $0x121] sm:$0xff]
        %v772 = vld [vmem:[%s586 + $0x129] sm:$0xff]
        %v773 = vld [vmem:[%s586 + $0x139] sm:$0xff]
        %v774 = vld [vmem:[%s586 + $0x141] sm:$0xff]
        %v775 = vld [vmem:[%s586 + $0x151] sm:$0xff]
        %v776 = vld [vmem:[%s586 + $0x159] sm:$0xff]
        %v777 = vld [vmem:[%s586 + $0x169] sm:$0xff]
        %v778 = vld [vmem:[%s586 + $0x171] sm:$0xff]
        %v779 = vld [vmem:[%s586 + $0x2] sm:$0xff]
        %v780 = vld [vmem:[%s586 + $0xa] sm:$0xff]
        %v781 = vld [vmem:[%s586 + $0x1a] sm:$0xff]
        %v782 = vld [vmem:[%s586 + $0x22] sm:$0xff]
        %v783 = vld [vmem:[%s586 + $0x32] sm:$0xff]
        %v784 = vld [vmem:[%s586 + $0x3a] sm:$0xff]
        %v785 = vld [vmem:[%s586 + $0x4a] sm:$0xff]
        %v786 = vld [vmem:[%s586 + $0x52] sm:$0xff]
        %v787 = vld [vmem:[%s586 + $0x62] sm:$0xff]
        %v788 = vld [vmem:[%s586 + $0x6a] sm:$0xff]
        %v789 = vld [vmem:[%s586 + $0x7a] sm:$0xff]
        %v790 = vld [vmem:[%s586 + $0x82] sm:$0xff]
        %v791 = vld [vmem:[%s586 + $0x92] sm:$0xff]
        %v792 = vld [vmem:[%s586 + $0x9a] sm:$0xff]
        %v793 = vld [vmem:[%s586 + $0xaa] sm:$0xff]
        %v794 = vld [vmem:[%s586 + $0xb2] sm:$0xff]
        %v795 = vld [vmem:[%s586 + $0xc2] sm:$0xff]
        %v796 = vld [vmem:[%s586 + $0xca] sm:$0xff]
        %v797 = vld [vmem:[%s586 + $0xda] sm:$0xff]
        %v798 = vld [vmem:[%s586 + $0xe2] sm:$0xff]
        %v799 = vld [vmem:[%s586 + $0xf2] sm:$0xff]
        %v800 = vld [vmem:[%s586 + $0xfa] sm:$0xff]
        %v801 = vld [vmem:[%s586 + $0x10a] sm:$0xff]
        %v802 = vld [vmem:[%s586 + $0x112] sm:$0xff]
        %v803 = vld [vmem:[%s586 + $0x122] sm:$0xff]
        %v804 = vld [vmem:[%s586 + $0x12a] sm:$0xff]
        %v805 = vld [vmem:[%s586 + $0x13a] sm:$0xff]
        %v806 = vld [vmem:[%s586 + $0x142] sm:$0xff]
        %v807 = vld [vmem:[%s586 + $0x152] sm:$0xff]
        %v808 = vld [vmem:[%s586 + $0x15a] sm:$0xff]
        %v809 = vld [vmem:[%s586 + $0x16a] sm:$0xff]
        %v810 = vld [vmem:[%s586 + $0x172] sm:$0xff]
        %s811 = scalar_lea.vmem [#allocation2], 48
        %v812 = vld [vmem:[%s811] sm:$0xff]
        %v813 = vld [vmem:[%s811 + $0x8] sm:$0xff]
        %v814 = vld [vmem:[%s811 + $0x18] sm:$0xff]
        %v815 = vld [vmem:[%s811 + $0x20] sm:$0xff]
        %v816 = vld [vmem:[%s811 + $0x30] sm:$0xff]
        %v817 = vld [vmem:[%s811 + $0x38] sm:$0xff]
        %v818 = vld [vmem:[%s811 + $0x48] sm:$0xff]
        %v819 = vld [vmem:[%s811 + $0x50] sm:$0xff]
        %v820 = vld [vmem:[%s811 + $0x60] sm:$0xff]
        %v821 = vld [vmem:[%s811 + $0x68] sm:$0xff]
        %v822 = vld [vmem:[%s811 + $0x78] sm:$0xff]
        %v823 = vld [vmem:[%s811 + $0x80] sm:$0xff]
        %v824 = vld [vmem:[%s811 + $0x90] sm:$0xff]
        %v825 = vld [vmem:[%s811 + $0x98] sm:$0xff]
        %v826 = vld [vmem:[%s811 + $0xa8] sm:$0xff]
        %v827 = vld [vmem:[%s811 + $0xb0] sm:$0xff]
        %v828 = vld [vmem:[%s811 + $0xc0] sm:$0xff]
        %v829 = vld [vmem:[%s811 + $0xc8] sm:$0xff]
        %v830 = vld [vmem:[%s811 + $0xd8] sm:$0xff]
        %v831 = vld [vmem:[%s811 + $0xe0] sm:$0xff]
        %v832 = vld [vmem:[%s811 + $0xf0] sm:$0xff]
        %v833 = vld [vmem:[%s811 + $0xf8] sm:$0xff]
        %v834 = vld [vmem:[%s811 + $0x108] sm:$0xff]
        %v835 = vld [vmem:[%s811 + $0x110] sm:$0xff]
        %v836 = vld [vmem:[%s811 + $0x120] sm:$0xff]
        %v837 = vld [vmem:[%s811 + $0x128] sm:$0xff]
        %v838 = vld [vmem:[%s811 + $0x138] sm:$0xff]
        %v839 = vld [vmem:[%s811 + $0x140] sm:$0xff]
        %v840 = vld [vmem:[%s811 + $0x150] sm:$0xff]
        %v841 = vld [vmem:[%s811 + $0x158] sm:$0xff]
        %v842 = vld [vmem:[%s811 + $0x168] sm:$0xff]
        %v843 = vld [vmem:[%s811 + $0x170] sm:$0xff]
        %v844 = vld [vmem:[%s811 + $0x1] sm:$0xff]
        %v845 = vld [vmem:[%s811 + $0x9] sm:$0xff]
        %v846 = vld [vmem:[%s811 + $0x19] sm:$0xff]
        %v847 = vld [vmem:[%s811 + $0x21] sm:$0xff]
        %v848 = vld [vmem:[%s811 + $0x31] sm:$0xff]
        %v849 = vld [vmem:[%s811 + $0x39] sm:$0xff]
        %v850 = vld [vmem:[%s811 + $0x49] sm:$0xff]
        %v851 = vld [vmem:[%s811 + $0x51] sm:$0xff]
        %v852 = vld [vmem:[%s811 + $0x61] sm:$0xff]
        %v853 = vld [vmem:[%s811 + $0x69] sm:$0xff]
        %v854 = vld [vmem:[%s811 + $0x79] sm:$0xff]
        %v855 = vld [vmem:[%s811 + $0x81] sm:$0xff]
        %v856 = vld [vmem:[%s811 + $0x91] sm:$0xff]
        %v857 = vld [vmem:[%s811 + $0x99] sm:$0xff]
        %v858 = vld [vmem:[%s811 + $0xa9] sm:$0xff]
        %v859 = vld [vmem:[%s811 + $0xb1] sm:$0xff]
        %v860 = vld [vmem:[%s811 + $0xc1] sm:$0xff]
        %v861 = vld [vmem:[%s811 + $0xc9] sm:$0xff]
        %v862 = vld [vmem:[%s811 + $0xd9] sm:$0xff]
        %v863 = vld [vmem:[%s811 + $0xe1] sm:$0xff]
        %v864 = vld [vmem:[%s811 + $0xf1] sm:$0xff]
        %v865 = vld [vmem:[%s811 + $0xf9] sm:$0xff]
        %v866 = vld [vmem:[%s811 + $0x109] sm:$0xff]
        %v867 = vld [vmem:[%s811 + $0x111] sm:$0xff]
        %v868 = vld [vmem:[%s811 + $0x121] sm:$0xff]
        %v869 = vld [vmem:[%s811 + $0x129] sm:$0xff]
        %v870 = vld [vmem:[%s811 + $0x139] sm:$0xff]
        %v871 = vld [vmem:[%s811 + $0x141] sm:$0xff]
        %v872 = vld [vmem:[%s811 + $0x151] sm:$0xff]
        %v873 = vld [vmem:[%s811 + $0x159] sm:$0xff]
        %v874 = vld [vmem:[%s811 + $0x169] sm:$0xff]
        %v875 = vld [vmem:[%s811 + $0x171] sm:$0xff]
        %v876 = vld [vmem:[%s811 + $0x2] sm:$0xff]
        %v877 = vld [vmem:[%s811 + $0xa] sm:$0xff]
        %v878 = vld [vmem:[%s811 + $0x1a] sm:$0xff]
        %v879 = vld [vmem:[%s811 + $0x22] sm:$0xff]
        %v880 = vld [vmem:[%s811 + $0x32] sm:$0xff]
        %v881 = vld [vmem:[%s811 + $0x3a] sm:$0xff]
        %v882 = vld [vmem:[%s811 + $0x4a] sm:$0xff]
        %v883 = vld [vmem:[%s811 + $0x52] sm:$0xff]
        %v884 = vld [vmem:[%s811 + $0x62] sm:$0xff]
        %v885 = vld [vmem:[%s811 + $0x6a] sm:$0xff]
        %v886 = vld [vmem:[%s811 + $0x7a] sm:$0xff]
        %v887 = vld [vmem:[%s811 + $0x82] sm:$0xff]
        %v888 = vld [vmem:[%s811 + $0x92] sm:$0xff]
        %v889 = vld [vmem:[%s811 + $0x9a] sm:$0xff]
        %v890 = vld [vmem:[%s811 + $0xaa] sm:$0xff]
        %v891 = vld [vmem:[%s811 + $0xb2] sm:$0xff]
        %v892 = vld [vmem:[%s811 + $0xc2] sm:$0xff]
        %v893 = vld [vmem:[%s811 + $0xca] sm:$0xff]
        %v894 = vld [vmem:[%s811 + $0xda] sm:$0xff]
        %v895 = vld [vmem:[%s811 + $0xe2] sm:$0xff]
        %v896 = vld [vmem:[%s811 + $0xf2] sm:$0xff]
        %v897 = vld [vmem:[%s811 + $0xfa] sm:$0xff]
        %v898 = vld [vmem:[%s811 + $0x10a] sm:$0xff]
        %v899 = vld [vmem:[%s811 + $0x112] sm:$0xff]
        %v900 = vld [vmem:[%s811 + $0x122] sm:$0xff]
        %v901 = vld [vmem:[%s811 + $0x12a] sm:$0xff]
        %v902 = vld [vmem:[%s811 + $0x13a] sm:$0xff]
        %v903 = vld [vmem:[%s811 + $0x142] sm:$0xff]
        %v904 = vld [vmem:[%s811 + $0x152] sm:$0xff]
        %v905 = vld [vmem:[%s811 + $0x15a] sm:$0xff]
        %v906 = vld [vmem:[%s811 + $0x16a] sm:$0xff]
        %v907 = vld [vmem:[%s811 + $0x172] sm:$0xff]
        %940 = vrot.lane.b32.xlu0 %v651, 16
        %v941 = vpop.permute.xlu0 %940
        %942 = vrot.lane.b32.xlu0 %v652, 16
        %v943 = vpop.permute.xlu0 %942
        %944 = vrot.lane.b32.xlu0 %v653, 16
        %v945 = vpop.permute.xlu0 %944
        %946 = vrot.lane.b32.xlu0 %v654, 16
        %v947 = vpop.permute.xlu0 %946
        %948 = vrot.lane.b32.xlu0 %v655, 16
        %v949 = vpop.permute.xlu0 %948
        %950 = vrot.lane.b32.xlu0 %v656, 16
        %v951 = vpop.permute.xlu0 %950
        %952 = vrot.lane.b32.xlu0 %v657, 16
        %v953 = vpop.permute.xlu0 %952
        %954 = vrot.lane.b32.xlu0 %v658, 16
        %v955 = vpop.permute.xlu0 %954
        %956 = vrot.lane.b32.xlu0 %v659, 16
        %v957 = vpop.permute.xlu0 %956
        %958 = vrot.lane.b32.xlu0 %v660, 16
        %v959 = vpop.permute.xlu0 %958
        %960 = vrot.lane.b32.xlu0 %v661, 16
        %v961 = vpop.permute.xlu0 %960
        %962 = vrot.lane.b32.xlu0 %v662, 16
        %v963 = vpop.permute.xlu0 %962
        %964 = vrot.lane.b32.xlu0 %v663, 16
        %v965 = vpop.permute.xlu0 %964
        %966 = vrot.lane.b32.xlu0 %v664, 16
        %v967 = vpop.permute.xlu0 %966
        %968 = vrot.lane.b32.xlu0 %v665, 16
        %v969 = vpop.permute.xlu0 %968
        %970 = vrot.lane.b32.xlu0 %v666, 16
        %v971 = vpop.permute.xlu0 %970
        %972 = vrot.lane.b32.xlu0 %v667, 16
        %v973 = vpop.permute.xlu0 %972
        %974 = vrot.lane.b32.xlu0 %v668, 16
        %v975 = vpop.permute.xlu0 %974
        %976 = vrot.lane.b32.xlu0 %v669, 16
        %v977 = vpop.permute.xlu0 %976
        %978 = vrot.lane.b32.xlu0 %v670, 16
        %v979 = vpop.permute.xlu0 %978
        %980 = vrot.lane.b32.xlu0 %v671, 16
        %v981 = vpop.permute.xlu0 %980
        %982 = vrot.lane.b32.xlu0 %v672, 16
        %v983 = vpop.permute.xlu0 %982
        %984 = vrot.lane.b32.xlu0 %v673, 16
        %v985 = vpop.permute.xlu0 %984
        %986 = vrot.lane.b32.xlu0 %v674, 16
        %v987 = vpop.permute.xlu0 %986
        %988 = vrot.lane.b32.xlu0 %v675, 16
        %v989 = vpop.permute.xlu0 %988
        %990 = vrot.lane.b32.xlu0 %v676, 16
        %v991 = vpop.permute.xlu0 %990
        %992 = vrot.lane.b32.xlu0 %v677, 16
        %v993 = vpop.permute.xlu0 %992
        %994 = vrot.lane.b32.xlu0 %v678, 16
        %v995 = vpop.permute.xlu0 %994
        %996 = vrot.lane.b32.xlu0 %v679, 16
        %v997 = vpop.permute.xlu0 %996
        %998 = vrot.lane.b32.xlu0 %v680, 16
        %v999 = vpop.permute.xlu0 %998
        %1000 = vrot.lane.b32.xlu0 %v681, 16
        %v1001 = vpop.permute.xlu0 %1000
        %1002 = vrot.lane.b32.xlu0 %v682, 16
        %v1003 = vpop.permute.xlu0 %1002
        %1068 = vrot.lane.b32.xlu0 %v683, 32
        %v1069 = vpop.permute.xlu0 %1068
        %1070 = vrot.lane.b32.xlu0 %v684, 32
        %v1071 = vpop.permute.xlu0 %1070
        %1072 = vrot.lane.b32.xlu0 %v685, 32
        %v1073 = vpop.permute.xlu0 %1072
        %1074 = vrot.lane.b32.xlu0 %v686, 32
        %v1075 = vpop.permute.xlu0 %1074
        %1076 = vrot.lane.b32.xlu0 %v687, 32
        %v1077 = vpop.permute.xlu0 %1076
        %1078 = vrot.lane.b32.xlu0 %v688, 32
        %v1079 = vpop.permute.xlu0 %1078
        %1080 = vrot.lane.b32.xlu0 %v689, 32
        %v1081 = vpop.permute.xlu0 %1080
        %1082 = vrot.lane.b32.xlu0 %v690, 32
        %v1083 = vpop.permute.xlu0 %1082
        %1084 = vrot.lane.b32.xlu0 %v691, 32
        %v1085 = vpop.permute.xlu0 %1084
        %1086 = vrot.lane.b32.xlu0 %v692, 32
        %v1087 = vpop.permute.xlu0 %1086
        %1088 = vrot.lane.b32.xlu0 %v693, 32
        %v1089 = vpop.permute.xlu0 %1088
        %1090 = vrot.lane.b32.xlu0 %v694, 32
        %v1091 = vpop.permute.xlu0 %1090
        %1092 = vrot.lane.b32.xlu0 %v695, 32
        %v1093 = vpop.permute.xlu0 %1092
        %1094 = vrot.lane.b32.xlu0 %v696, 32
        %v1095 = vpop.permute.xlu0 %1094
        %1096 = vrot.lane.b32.xlu0 %v697, 32
        %v1097 = vpop.permute.xlu0 %1096
        %1098 = vrot.lane.b32.xlu0 %v698, 32
        %v1099 = vpop.permute.xlu0 %1098
        %1100 = vrot.lane.b32.xlu0 %v699, 32
        %v1101 = vpop.permute.xlu0 %1100
        %1102 = vrot.lane.b32.xlu0 %v700, 32
        %v1103 = vpop.permute.xlu0 %1102
        %1104 = vrot.lane.b32.xlu0 %v701, 32
        %v1105 = vpop.permute.xlu0 %1104
        %1106 = vrot.lane.b32.xlu0 %v702, 32
        %v1107 = vpop.permute.xlu0 %1106
        %1108 = vrot.lane.b32.xlu0 %v703, 32
        %v1109 = vpop.permute.xlu0 %1108
        %1110 = vrot.lane.b32.xlu0 %v704, 32
        %v1111 = vpop.permute.xlu0 %1110
        %1112 = vrot.lane.b32.xlu0 %v705, 32
        %v1113 = vpop.permute.xlu0 %1112
        %1114 = vrot.lane.b32.xlu0 %v706, 32
        %v1115 = vpop.permute.xlu0 %1114
        %1116 = vrot.lane.b32.xlu0 %v707, 32
        %v1117 = vpop.permute.xlu0 %1116
        %1118 = vrot.lane.b32.xlu0 %v708, 32
        %v1119 = vpop.permute.xlu0 %1118
        %1120 = vrot.lane.b32.xlu0 %v709, 32
        %v1121 = vpop.permute.xlu0 %1120
        %1122 = vrot.lane.b32.xlu0 %v710, 32
        %v1123 = vpop.permute.xlu0 %1122
        %1124 = vrot.lane.b32.xlu0 %v711, 32
        %v1125 = vpop.permute.xlu0 %1124
        %1126 = vrot.lane.b32.xlu0 %v712, 32
        %v1127 = vpop.permute.xlu0 %1126
        %1128 = vrot.lane.b32.xlu0 %v713, 32
        %v1129 = vpop.permute.xlu0 %1128
        %1130 = vrot.lane.b32.xlu0 %v714, 32
        %v1131 = vpop.permute.xlu0 %1130
        %1196 = vrot.lane.b32.xlu0 %v715, 48
        %v1197 = vpop.permute.xlu0 %1196
        %1198 = vrot.lane.b32.xlu0 %v716, 48
        %v1199 = vpop.permute.xlu0 %1198
        %1200 = vrot.lane.b32.xlu0 %v717, 48
        %v1201 = vpop.permute.xlu0 %1200
        %1202 = vrot.lane.b32.xlu0 %v718, 48
        %v1203 = vpop.permute.xlu0 %1202
        %1204 = vrot.lane.b32.xlu0 %v719, 48
        %v1205 = vpop.permute.xlu0 %1204
        %1206 = vrot.lane.b32.xlu0 %v720, 48
        %v1207 = vpop.permute.xlu0 %1206
        %1208 = vrot.lane.b32.xlu0 %v721, 48
        %v1209 = vpop.permute.xlu0 %1208
        %1210 = vrot.lane.b32.xlu0 %v722, 48
        %v1211 = vpop.permute.xlu0 %1210
        %1212 = vrot.lane.b32.xlu0 %v723, 48
        %v1213 = vpop.permute.xlu0 %1212
        %1214 = vrot.lane.b32.xlu0 %v724, 48
        %v1215 = vpop.permute.xlu0 %1214
        %1216 = vrot.lane.b32.xlu0 %v725, 48
        %v1217 = vpop.permute.xlu0 %1216
        %1218 = vrot.lane.b32.xlu0 %v726, 48
        %v1219 = vpop.permute.xlu0 %1218
        %1220 = vrot.lane.b32.xlu0 %v727, 48
        %v1221 = vpop.permute.xlu0 %1220
        %1222 = vrot.lane.b32.xlu0 %v728, 48
        %v1223 = vpop.permute.xlu0 %1222
        %1224 = vrot.lane.b32.xlu0 %v729, 48
        %v1225 = vpop.permute.xlu0 %1224
        %1226 = vrot.lane.b32.xlu0 %v730, 48
        %v1227 = vpop.permute.xlu0 %1226
        %1228 = vrot.lane.b32.xlu0 %v731, 48
        %v1229 = vpop.permute.xlu0 %1228
        %1230 = vrot.lane.b32.xlu0 %v732, 48
        %v1231 = vpop.permute.xlu0 %1230
        %1232 = vrot.lane.b32.xlu0 %v733, 48
        %v1233 = vpop.permute.xlu0 %1232
        %1234 = vrot.lane.b32.xlu0 %v734, 48
        %v1235 = vpop.permute.xlu0 %1234
        %1236 = vrot.lane.b32.xlu0 %v735, 48
        %v1237 = vpop.permute.xlu0 %1236
        %1238 = vrot.lane.b32.xlu0 %v736, 48
        %v1239 = vpop.permute.xlu0 %1238
        %1240 = vrot.lane.b32.xlu0 %v737, 48
        %v1241 = vpop.permute.xlu0 %1240
        %1242 = vrot.lane.b32.xlu0 %v738, 48
        %v1243 = vpop.permute.xlu0 %1242
        %1244 = vrot.lane.b32.xlu0 %v739, 48
        %v1245 = vpop.permute.xlu0 %1244
        %1246 = vrot.lane.b32.xlu0 %v740, 48
        %v1247 = vpop.permute.xlu0 %1246
        %1248 = vrot.lane.b32.xlu0 %v741, 48
        %v1249 = vpop.permute.xlu0 %1248
        %1250 = vrot.lane.b32.xlu0 %v742, 48
        %v1251 = vpop.permute.xlu0 %1250
        %1252 = vrot.lane.b32.xlu0 %v743, 48
        %v1253 = vpop.permute.xlu0 %1252
        %1254 = vrot.lane.b32.xlu0 %v744, 48
        %v1255 = vpop.permute.xlu0 %1254
        %1256 = vrot.lane.b32.xlu0 %v745, 48
        %v1257 = vpop.permute.xlu0 %1256
        %1258 = vrot.lane.b32.xlu0 %v746, 48
        %v1259 = vpop.permute.xlu0 %1258
        %1324 = vrot.lane.b32.xlu0 %v747, 64
        %v1325 = vpop.permute.xlu0 %1324
        %1326 = vrot.lane.b32.xlu0 %v748, 64
        %v1327 = vpop.permute.xlu0 %1326
        %1328 = vrot.lane.b32.xlu0 %v749, 64
        %v1329 = vpop.permute.xlu0 %1328
        %1330 = vrot.lane.b32.xlu0 %v750, 64
        %v1331 = vpop.permute.xlu0 %1330
        %1332 = vrot.lane.b32.xlu0 %v751, 64
        %v1333 = vpop.permute.xlu0 %1332
        %1334 = vrot.lane.b32.xlu0 %v752, 64
        %v1335 = vpop.permute.xlu0 %1334
        %1336 = vrot.lane.b32.xlu0 %v753, 64
        %v1337 = vpop.permute.xlu0 %1336
        %1338 = vrot.lane.b32.xlu0 %v754, 64
        %v1339 = vpop.permute.xlu0 %1338
        %1340 = vrot.lane.b32.xlu0 %v755, 64
        %v1341 = vpop.permute.xlu0 %1340
        %1342 = vrot.lane.b32.xlu0 %v756, 64
        %v1343 = vpop.permute.xlu0 %1342
        %1344 = vrot.lane.b32.xlu0 %v757, 64
        %v1345 = vpop.permute.xlu0 %1344
        %1346 = vrot.lane.b32.xlu0 %v758, 64
        %v1347 = vpop.permute.xlu0 %1346
        %1348 = vrot.lane.b32.xlu0 %v759, 64
        %v1349 = vpop.permute.xlu0 %1348
        %1350 = vrot.lane.b32.xlu0 %v760, 64
        %v1351 = vpop.permute.xlu0 %1350
        %1352 = vrot.lane.b32.xlu0 %v761, 64
        %v1353 = vpop.permute.xlu0 %1352
        %1354 = vrot.lane.b32.xlu0 %v762, 64
        %v1355 = vpop.permute.xlu0 %1354
        %1356 = vrot.lane.b32.xlu0 %v763, 64
        %v1357 = vpop.permute.xlu0 %1356
        %1358 = vrot.lane.b32.xlu0 %v764, 64
        %v1359 = vpop.permute.xlu0 %1358
        %1360 = vrot.lane.b32.xlu0 %v765, 64
        %v1361 = vpop.permute.xlu0 %1360
        %1362 = vrot.lane.b32.xlu0 %v766, 64
        %v1363 = vpop.permute.xlu0 %1362
        %1364 = vrot.lane.b32.xlu0 %v767, 64
        %v1365 = vpop.permute.xlu0 %1364
        %1366 = vrot.lane.b32.xlu0 %v768, 64
        %v1367 = vpop.permute.xlu0 %1366
        %1368 = vrot.lane.b32.xlu0 %v769, 64
        %v1369 = vpop.permute.xlu0 %1368
        %1370 = vrot.lane.b32.xlu0 %v770, 64
        %v1371 = vpop.permute.xlu0 %1370
        %1372 = vrot.lane.b32.xlu0 %v771, 64
        %v1373 = vpop.permute.xlu0 %1372
        %1374 = vrot.lane.b32.xlu0 %v772, 64
        %v1375 = vpop.permute.xlu0 %1374
        %1376 = vrot.lane.b32.xlu0 %v773, 64
        %v1377 = vpop.permute.xlu0 %1376
        %1378 = vrot.lane.b32.xlu0 %v774, 64
        %v1379 = vpop.permute.xlu0 %1378
        %1380 = vrot.lane.b32.xlu0 %v775, 64
        %v1381 = vpop.permute.xlu0 %1380
        %1382 = vrot.lane.b32.xlu0 %v776, 64
        %v1383 = vpop.permute.xlu0 %1382
        %1384 = vrot.lane.b32.xlu0 %v777, 64
        %v1385 = vpop.permute.xlu0 %1384
        %1386 = vrot.lane.b32.xlu0 %v778, 64
        %v1387 = vpop.permute.xlu0 %1386
        %1452 = vrot.lane.b32.xlu0 %v779, 80
        %v1453 = vpop.permute.xlu0 %1452
        %1454 = vrot.lane.b32.xlu0 %v780, 80
        %v1455 = vpop.permute.xlu0 %1454
        %1456 = vrot.lane.b32.xlu0 %v781, 80
        %v1457 = vpop.permute.xlu0 %1456
        %1458 = vrot.lane.b32.xlu0 %v782, 80
        %v1459 = vpop.permute.xlu0 %1458
        %1460 = vrot.lane.b32.xlu0 %v783, 80
        %v1461 = vpop.permute.xlu0 %1460
        %1462 = vrot.lane.b32.xlu0 %v784, 80
        %v1463 = vpop.permute.xlu0 %1462
        %1464 = vrot.lane.b32.xlu0 %v785, 80
        %v1465 = vpop.permute.xlu0 %1464
        %1466 = vrot.lane.b32.xlu0 %v786, 80
        %v1467 = vpop.permute.xlu0 %1466
        %1468 = vrot.lane.b32.xlu0 %v787, 80
        %v1469 = vpop.permute.xlu0 %1468
        %1470 = vrot.lane.b32.xlu0 %v788, 80
        %v1471 = vpop.permute.xlu0 %1470
        %1472 = vrot.lane.b32.xlu0 %v789, 80
        %v1473 = vpop.permute.xlu0 %1472
        %1474 = vrot.lane.b32.xlu0 %v790, 80
        %v1475 = vpop.permute.xlu0 %1474
        %1476 = vrot.lane.b32.xlu0 %v791, 80
        %v1477 = vpop.permute.xlu0 %1476
        %1478 = vrot.lane.b32.xlu0 %v792, 80
        %v1479 = vpop.permute.xlu0 %1478
        %1480 = vrot.lane.b32.xlu0 %v793, 80
        %v1481 = vpop.permute.xlu0 %1480
        %1482 = vrot.lane.b32.xlu0 %v794, 80
        %v1483 = vpop.permute.xlu0 %1482
        %1484 = vrot.lane.b32.xlu0 %v795, 80
        %v1485 = vpop.permute.xlu0 %1484
        %1486 = vrot.lane.b32.xlu0 %v796, 80
        %v1487 = vpop.permute.xlu0 %1486
        %1488 = vrot.lane.b32.xlu0 %v797, 80
        %v1489 = vpop.permute.xlu0 %1488
        %1490 = vrot.lane.b32.xlu0 %v798, 80
        %v1491 = vpop.permute.xlu0 %1490
        %1492 = vrot.lane.b32.xlu0 %v799, 80
        %v1493 = vpop.permute.xlu0 %1492
        %1494 = vrot.lane.b32.xlu0 %v800, 80
        %v1495 = vpop.permute.xlu0 %1494
        %1496 = vrot.lane.b32.xlu0 %v801, 80
        %v1497 = vpop.permute.xlu0 %1496
        %1498 = vrot.lane.b32.xlu0 %v802, 80
        %v1499 = vpop.permute.xlu0 %1498
        %1500 = vrot.lane.b32.xlu0 %v803, 80
        %v1501 = vpop.permute.xlu0 %1500
        %1502 = vrot.lane.b32.xlu0 %v804, 80
        %v1503 = vpop.permute.xlu0 %1502
        %1504 = vrot.lane.b32.xlu0 %v805, 80
        %v1505 = vpop.permute.xlu0 %1504
        %1506 = vrot.lane.b32.xlu0 %v806, 80
        %v1507 = vpop.permute.xlu0 %1506
        %1508 = vrot.lane.b32.xlu0 %v807, 80
        %v1509 = vpop.permute.xlu0 %1508
        %1510 = vrot.lane.b32.xlu0 %v808, 80
        %v1511 = vpop.permute.xlu0 %1510
        %1512 = vrot.lane.b32.xlu0 %v809, 80
        %v1513 = vpop.permute.xlu0 %1512
        %1514 = vrot.lane.b32.xlu0 %v810, 80
        %v1515 = vpop.permute.xlu0 %1514
        %1580 = vrot.lane.b32.xlu0 %v812, 96
        %v1581 = vpop.permute.xlu0 %1580
        %1582 = vrot.lane.b32.xlu0 %v813, 96
        %v1583 = vpop.permute.xlu0 %1582
        %1584 = vrot.lane.b32.xlu0 %v814, 96
        %v1585 = vpop.permute.xlu0 %1584
        %1586 = vrot.lane.b32.xlu0 %v815, 96
        %v1587 = vpop.permute.xlu0 %1586
        %1588 = vrot.lane.b32.xlu0 %v816, 96
        %v1589 = vpop.permute.xlu0 %1588
        %1590 = vrot.lane.b32.xlu0 %v817, 96
        %v1591 = vpop.permute.xlu0 %1590
        %1592 = vrot.lane.b32.xlu0 %v818, 96
        %v1593 = vpop.permute.xlu0 %1592
        %1594 = vrot.lane.b32.xlu0 %v819, 96
        %v1595 = vpop.permute.xlu0 %1594
        %1596 = vrot.lane.b32.xlu0 %v820, 96
        %v1597 = vpop.permute.xlu0 %1596
        %1598 = vrot.lane.b32.xlu0 %v821, 96
        %v1599 = vpop.permute.xlu0 %1598
        %1600 = vrot.lane.b32.xlu0 %v822, 96
        %v1601 = vpop.permute.xlu0 %1600
        %1602 = vrot.lane.b32.xlu0 %v823, 96
        %v1603 = vpop.permute.xlu0 %1602
        %1604 = vrot.lane.b32.xlu0 %v824, 96
        %v1605 = vpop.permute.xlu0 %1604
        %1606 = vrot.lane.b32.xlu0 %v825, 96
        %v1607 = vpop.permute.xlu0 %1606
        %1608 = vrot.lane.b32.xlu0 %v826, 96
        %v1609 = vpop.permute.xlu0 %1608
        %1610 = vrot.lane.b32.xlu0 %v827, 96
        %v1611 = vpop.permute.xlu0 %1610
        %1612 = vrot.lane.b32.xlu0 %v828, 96
        %v1613 = vpop.permute.xlu0 %1612
        %1614 = vrot.lane.b32.xlu0 %v829, 96
        %v1615 = vpop.permute.xlu0 %1614
        %1616 = vrot.lane.b32.xlu0 %v830, 96
        %v1617 = vpop.permute.xlu0 %1616
        %1618 = vrot.lane.b32.xlu0 %v831, 96
        %v1619 = vpop.permute.xlu0 %1618
        %1620 = vrot.lane.b32.xlu0 %v832, 96
        %v1621 = vpop.permute.xlu0 %1620
        %1622 = vrot.lane.b32.xlu0 %v833, 96
        %v1623 = vpop.permute.xlu0 %1622
        %1624 = vrot.lane.b32.xlu0 %v834, 96
        %v1625 = vpop.permute.xlu0 %1624
        %1626 = vrot.lane.b32.xlu0 %v835, 96
        %v1627 = vpop.permute.xlu0 %1626
        %1628 = vrot.lane.b32.xlu0 %v836, 96
        %v1629 = vpop.permute.xlu0 %1628
        %1630 = vrot.lane.b32.xlu0 %v837, 96
        %v1631 = vpop.permute.xlu0 %1630
        %1632 = vrot.lane.b32.xlu0 %v838, 96
        %v1633 = vpop.permute.xlu0 %1632
        %1634 = vrot.lane.b32.xlu0 %v839, 96
        %v1635 = vpop.permute.xlu0 %1634
        %1636 = vrot.lane.b32.xlu0 %v840, 96
        %v1637 = vpop.permute.xlu0 %1636
        %1638 = vrot.lane.b32.xlu0 %v841, 96
        %v1639 = vpop.permute.xlu0 %1638
        %1640 = vrot.lane.b32.xlu0 %v842, 96
        %v1641 = vpop.permute.xlu0 %1640
        %1642 = vrot.lane.b32.xlu0 %v843, 96
        %v1643 = vpop.permute.xlu0 %1642
        %1708 = vrot.lane.b32.xlu0 %v844, 112
        %v1709 = vpop.permute.xlu0 %1708
        %1710 = vrot.lane.b32.xlu0 %v845, 112
        %v1711 = vpop.permute.xlu0 %1710
        %1712 = vrot.lane.b32.xlu0 %v846, 112
        %v1713 = vpop.permute.xlu0 %1712
        %1714 = vrot.lane.b32.xlu0 %v847, 112
        %v1715 = vpop.permute.xlu0 %1714
        %1716 = vrot.lane.b32.xlu0 %v848, 112
        %v1717 = vpop.permute.xlu0 %1716
        %1718 = vrot.lane.b32.xlu0 %v849, 112
        %v1719 = vpop.permute.xlu0 %1718
        %1720 = vrot.lane.b32.xlu0 %v850, 112
        %v1721 = vpop.permute.xlu0 %1720
        %1722 = vrot.lane.b32.xlu0 %v851, 112
        %v1723 = vpop.permute.xlu0 %1722
        %1724 = vrot.lane.b32.xlu0 %v852, 112
        %v1725 = vpop.permute.xlu0 %1724
        %1726 = vrot.lane.b32.xlu0 %v853, 112
        %v1727 = vpop.permute.xlu0 %1726
        %1728 = vrot.lane.b32.xlu0 %v854, 112
        %v1729 = vpop.permute.xlu0 %1728
        %1730 = vrot.lane.b32.xlu0 %v855, 112
        %v1731 = vpop.permute.xlu0 %1730
        %1732 = vrot.lane.b32.xlu0 %v856, 112
        %v1733 = vpop.permute.xlu0 %1732
        %1734 = vrot.lane.b32.xlu0 %v857, 112
        %v1735 = vpop.permute.xlu0 %1734
        %1736 = vrot.lane.b32.xlu0 %v858, 112
        %v1737 = vpop.permute.xlu0 %1736
        %1738 = vrot.lane.b32.xlu0 %v859, 112
        %v1739 = vpop.permute.xlu0 %1738
        %1740 = vrot.lane.b32.xlu0 %v860, 112
        %v1741 = vpop.permute.xlu0 %1740
        %1742 = vrot.lane.b32.xlu0 %v861, 112
        %v1743 = vpop.permute.xlu0 %1742
        %1744 = vrot.lane.b32.xlu0 %v862, 112
        %v1745 = vpop.permute.xlu0 %1744
        %1746 = vrot.lane.b32.xlu0 %v863, 112
        %v1747 = vpop.permute.xlu0 %1746
        %1748 = vrot.lane.b32.xlu0 %v864, 112
        %v1749 = vpop.permute.xlu0 %1748
        %1750 = vrot.lane.b32.xlu0 %v865, 112
        %v1751 = vpop.permute.xlu0 %1750
        %1752 = vrot.lane.b32.xlu0 %v866, 112
        %v1753 = vpop.permute.xlu0 %1752
        %1754 = vrot.lane.b32.xlu0 %v867, 112
        %v1755 = vpop.permute.xlu0 %1754
        %1756 = vrot.lane.b32.xlu0 %v868, 112
        %v1757 = vpop.permute.xlu0 %1756
        %1758 = vrot.lane.b32.xlu0 %v869, 112
        %v1759 = vpop.permute.xlu0 %1758
        %1760 = vrot.lane.b32.xlu0 %v870, 112
        %v1761 = vpop.permute.xlu0 %1760
        %1762 = vrot.lane.b32.xlu0 %v871, 112
        %v1763 = vpop.permute.xlu0 %1762
        %1764 = vrot.lane.b32.xlu0 %v872, 112
        %v1765 = vpop.permute.xlu0 %1764
        %1766 = vrot.lane.b32.xlu0 %v873, 112
        %v1767 = vpop.permute.xlu0 %1766
        %1768 = vrot.lane.b32.xlu0 %v874, 112
        %v1769 = vpop.permute.xlu0 %1768
        %1770 = vrot.lane.b32.xlu0 %v875, 112
        %v1771 = vpop.permute.xlu0 %1770
        %v1804 = vsel %vm540, %v619, %v941
        %v1805 = vsel %vm540, %v620, %v943
        %v1806 = vsel %vm540, %v621, %v945
        %v1807 = vsel %vm540, %v622, %v947
        %v1808 = vsel %vm540, %v623, %v949
        %v1809 = vsel %vm540, %v624, %v951
        %v1810 = vsel %vm540, %v625, %v953
        %v1811 = vsel %vm540, %v626, %v955
        %v1812 = vsel %vm540, %v627, %v957
        %v1813 = vsel %vm540, %v628, %v959
        %v1814 = vsel %vm540, %v629, %v961
        %v1815 = vsel %vm540, %v630, %v963
        %v1816 = vsel %vm540, %v631, %v965
        %v1817 = vsel %vm540, %v632, %v967
        %v1818 = vsel %vm540, %v633, %v969
        %v1819 = vsel %vm540, %v634, %v971
        %v1820 = vsel %vm540, %v635, %v973
        %v1821 = vsel %vm540, %v636, %v975
        %v1822 = vsel %vm540, %v637, %v977
        %v1823 = vsel %vm540, %v638, %v979
        %v1824 = vsel %vm540, %v639, %v981
        %v1825 = vsel %vm540, %v640, %v983
        %v1826 = vsel %vm540, %v641, %v985
        %v1827 = vsel %vm540, %v642, %v987
        %v1828 = vsel %vm540, %v643, %v989
        %v1829 = vsel %vm540, %v644, %v991
        %v1830 = vsel %vm540, %v645, %v993
        %v1831 = vsel %vm540, %v646, %v995
        %v1832 = vsel %vm540, %v647, %v997
        %v1833 = vsel %vm540, %v648, %v999
        %v1834 = vsel %vm540, %v649, %v1001
        %v1835 = vsel %vm540, %v650, %v1003
        %vm1836 = vcmask 261120
        %v1837 = vsel %vm1836, %v1804, %v1069
        %v1838 = vsel %vm1836, %v1805, %v1071
        %v1839 = vsel %vm1836, %v1806, %v1073
        %v1840 = vsel %vm1836, %v1807, %v1075
        %v1841 = vsel %vm1836, %v1808, %v1077
        %v1842 = vsel %vm1836, %v1809, %v1079
        %v1843 = vsel %vm1836, %v1810, %v1081
        %v1844 = vsel %vm1836, %v1811, %v1083
        %v1845 = vsel %vm1836, %v1812, %v1085
        %v1846 = vsel %vm1836, %v1813, %v1087
        %v1847 = vsel %vm1836, %v1814, %v1089
        %v1848 = vsel %vm1836, %v1815, %v1091
        %v1849 = vsel %vm1836, %v1816, %v1093
        %v1850 = vsel %vm1836, %v1817, %v1095
        %v1851 = vsel %vm1836, %v1818, %v1097
        %v1852 = vsel %vm1836, %v1819, %v1099
        %v1853 = vsel %vm1836, %v1820, %v1101
        %v1854 = vsel %vm1836, %v1821, %v1103
        %v1855 = vsel %vm1836, %v1822, %v1105
        %v1856 = vsel %vm1836, %v1823, %v1107
        %v1857 = vsel %vm1836, %v1824, %v1109
        %v1858 = vsel %vm1836, %v1825, %v1111
        %v1859 = vsel %vm1836, %v1826, %v1113
        %v1860 = vsel %vm1836, %v1827, %v1115
        %v1861 = vsel %vm1836, %v1828, %v1117
        %v1862 = vsel %vm1836, %v1829, %v1119
        %v1863 = vsel %vm1836, %v1830, %v1121
        %v1864 = vsel %vm1836, %v1831, %v1123
        %v1865 = vsel %vm1836, %v1832, %v1125
        %v1866 = vsel %vm1836, %v1833, %v1127
        %v1867 = vsel %vm1836, %v1834, %v1129
        %v1868 = vsel %vm1836, %v1835, %v1131
        %vm1869 = vcmask 392192
        %v1870 = vsel %vm1869, %v1837, %v1197
        %v1871 = vsel %vm1869, %v1838, %v1199
        %v1872 = vsel %vm1869, %v1839, %v1201
        %v1873 = vsel %vm1869, %v1840, %v1203
        %v1874 = vsel %vm1869, %v1841, %v1205
        %v1875 = vsel %vm1869, %v1842, %v1207
        %v1876 = vsel %vm1869, %v1843, %v1209
        %v1877 = vsel %vm1869, %v1844, %v1211
        %v1878 = vsel %vm1869, %v1845, %v1213
        %v1879 = vsel %vm1869, %v1846, %v1215
        %v1880 = vsel %vm1869, %v1847, %v1217
        %v1881 = vsel %vm1869, %v1848, %v1219
        %v1882 = vsel %vm1869, %v1849, %v1221
        %v1883 = vsel %vm1869, %v1850, %v1223
        %v1884 = vsel %vm1869, %v1851, %v1225
        %v1885 = vsel %vm1869, %v1852, %v1227
        %v1886 = vsel %vm1869, %v1853, %v1229
        %v1887 = vsel %vm1869, %v1854, %v1231
        %v1888 = vsel %vm1869, %v1855, %v1233
        %v1889 = vsel %vm1869, %v1856, %v1235
        %v1890 = vsel %vm1869, %v1857, %v1237
        %v1891 = vsel %vm1869, %v1858, %v1239
        %v1892 = vsel %vm1869, %v1859, %v1241
        %v1893 = vsel %vm1869, %v1860, %v1243
        %v1894 = vsel %vm1869, %v1861, %v1245
        %v1895 = vsel %vm1869, %v1862, %v1247
        %v1896 = vsel %vm1869, %v1863, %v1249
        %v1897 = vsel %vm1869, %v1864, %v1251
        %v1898 = vsel %vm1869, %v1865, %v1253
        %v1899 = vsel %vm1869, %v1866, %v1255
        %v1900 = vsel %vm1869, %v1867, %v1257
        %v1901 = vsel %vm1869, %v1868, %v1259
        %vm1902 = vcmask 523264
        %v1903 = vsel %vm1902, %v1870, %v1325
        %v1904 = vsel %vm1902, %v1871, %v1327
        %v1905 = vsel %vm1902, %v1872, %v1329
        %v1906 = vsel %vm1902, %v1873, %v1331
        %v1907 = vsel %vm1902, %v1874, %v1333
        %v1908 = vsel %vm1902, %v1875, %v1335
        %v1909 = vsel %vm1902, %v1876, %v1337
        %v1910 = vsel %vm1902, %v1877, %v1339
        %v1911 = vsel %vm1902, %v1878, %v1341
        %v1912 = vsel %vm1902, %v1879, %v1343
        %v1913 = vsel %vm1902, %v1880, %v1345
        %v1914 = vsel %vm1902, %v1881, %v1347
        %v1915 = vsel %vm1902, %v1882, %v1349
        %v1916 = vsel %vm1902, %v1883, %v1351
        %v1917 = vsel %vm1902, %v1884, %v1353
        %v1918 = vsel %vm1902, %v1885, %v1355
        %v1919 = vsel %vm1902, %v1886, %v1357
        %v1920 = vsel %vm1902, %v1887, %v1359
        %v1921 = vsel %vm1902, %v1888, %v1361
        %v1922 = vsel %vm1902, %v1889, %v1363
        %v1923 = vsel %vm1902, %v1890, %v1365
        %v1924 = vsel %vm1902, %v1891, %v1367
        %v1925 = vsel %vm1902, %v1892, %v1369
        %v1926 = vsel %vm1902, %v1893, %v1371
        %v1927 = vsel %vm1902, %v1894, %v1373
        %v1928 = vsel %vm1902, %v1895, %v1375
        %v1929 = vsel %vm1902, %v1896, %v1377
        %v1930 = vsel %vm1902, %v1897, %v1379
        %v1931 = vsel %vm1902, %v1898, %v1381
        %v1932 = vsel %vm1902, %v1899, %v1383
        %v1933 = vsel %vm1902, %v1900, %v1385
        %v1934 = vsel %vm1902, %v1901, %v1387
        %vm1935 = vcmask 654336
        %v1936 = vsel %vm1935, %v1903, %v1453
        %v1937 = vsel %vm1935, %v1904, %v1455
        %v1938 = vsel %vm1935, %v1905, %v1457
        %v1939 = vsel %vm1935, %v1906, %v1459
        %v1940 = vsel %vm1935, %v1907, %v1461
        %v1941 = vsel %vm1935, %v1908, %v1463
        %v1942 = vsel %vm1935, %v1909, %v1465
        %v1943 = vsel %vm1935, %v1910, %v1467
        %v1944 = vsel %vm1935, %v1911, %v1469
        %v1945 = vsel %vm1935, %v1912, %v1471
        %v1946 = vsel %vm1935, %v1913, %v1473
        %v1947 = vsel %vm1935, %v1914, %v1475
        %v1948 = vsel %vm1935, %v1915, %v1477
        %v1949 = vsel %vm1935, %v1916, %v1479
        %v1950 = vsel %vm1935, %v1917, %v1481
        %v1951 = vsel %vm1935, %v1918, %v1483
        %v1952 = vsel %vm1935, %v1919, %v1485
        %v1953 = vsel %vm1935, %v1920, %v1487
        %v1954 = vsel %vm1935, %v1921, %v1489
        %v1955 = vsel %vm1935, %v1922, %v1491
        %v1956 = vsel %vm1935, %v1923, %v1493
        %v1957 = vsel %vm1935, %v1924, %v1495
        %v1958 = vsel %vm1935, %v1925, %v1497
        %v1959 = vsel %vm1935, %v1926, %v1499
        %v1960 = vsel %vm1935, %v1927, %v1501
        %v1961 = vsel %vm1935, %v1928, %v1503
        %v1962 = vsel %vm1935, %v1929, %v1505
        %v1963 = vsel %vm1935, %v1930, %v1507
        %v1964 = vsel %vm1935, %v1931, %v1509
        %v1965 = vsel %vm1935, %v1932, %v1511
        %v1966 = vsel %vm1935, %v1933, %v1513
        %v1967 = vsel %vm1935, %v1934, %v1515
        %vm1968 = vcmask 785408
        %v1969 = vsel %vm1968, %v1936, %v1581
        %v1970 = vsel %vm1968, %v1937, %v1583
        %v1971 = vsel %vm1968, %v1938, %v1585
        %v1972 = vsel %vm1968, %v1939, %v1587
        %v1973 = vsel %vm1968, %v1940, %v1589
        %v1974 = vsel %vm1968, %v1941, %v1591
        %v1975 = vsel %vm1968, %v1942, %v1593
        %v1976 = vsel %vm1968, %v1943, %v1595
        %v1977 = vsel %vm1968, %v1944, %v1597
        %v1978 = vsel %vm1968, %v1945, %v1599
        %v1979 = vsel %vm1968, %v1946, %v1601
        %v1980 = vsel %vm1968, %v1947, %v1603
        %v1981 = vsel %vm1968, %v1948, %v1605
        %v1982 = vsel %vm1968, %v1949, %v1607
        %v1983 = vsel %vm1968, %v1950, %v1609
        %v1984 = vsel %vm1968, %v1951, %v1611
        %v1985 = vsel %vm1968, %v1952, %v1613
        %v1986 = vsel %vm1968, %v1953, %v1615
        %v1987 = vsel %vm1968, %v1954, %v1617
        %v1988 = vsel %vm1968, %v1955, %v1619
        %v1989 = vsel %vm1968, %v1956, %v1621
        %v1990 = vsel %vm1968, %v1957, %v1623
        %v1991 = vsel %vm1968, %v1958, %v1625
        %v1992 = vsel %vm1968, %v1959, %v1627
        %v1993 = vsel %vm1968, %v1960, %v1629
        %v1994 = vsel %vm1968, %v1961, %v1631
        %v1995 = vsel %vm1968, %v1962, %v1633
        %v1996 = vsel %vm1968, %v1963, %v1635
        %v1997 = vsel %vm1968, %v1964, %v1637
        %v1998 = vsel %vm1968, %v1965, %v1639
        %v1999 = vsel %vm1968, %v1966, %v1641
        %v2000 = vsel %vm1968, %v1967, %v1643
        %vm2001 = vcmask 916480
        %v2002 = vsel %vm2001, %v1969, %v1709
        %v2003 = vsel %vm2001, %v1970, %v1711
        %v2004 = vsel %vm2001, %v1971, %v1713
        %v2005 = vsel %vm2001, %v1972, %v1715
        %v2006 = vsel %vm2001, %v1973, %v1717
        %v2007 = vsel %vm2001, %v1974, %v1719
        %v2008 = vsel %vm2001, %v1975, %v1721
        %v2009 = vsel %vm2001, %v1976, %v1723
        %v2010 = vsel %vm2001, %v1977, %v1725
        %v2011 = vsel %vm2001, %v1978, %v1727
        %v2012 = vsel %vm2001, %v1979, %v1729
        %v2013 = vsel %vm2001, %v1980, %v1731
        %v2014 = vsel %vm2001, %v1981, %v1733
        %v2015 = vsel %vm2001, %v1982, %v1735
        %v2016 = vsel %vm2001, %v1983, %v1737
        %v2017 = vsel %vm2001, %v1984, %v1739
        %v2018 = vsel %vm2001, %v1985, %v1741
        %v2019 = vsel %vm2001, %v1986, %v1743
        %v2020 = vsel %vm2001, %v1987, %v1745
        %v2021 = vsel %vm2001, %v1988, %v1747
        %v2022 = vsel %vm2001, %v1989, %v1749
        %v2023 = vsel %vm2001, %v1990, %v1751
        %v2024 = vsel %vm2001, %v1991, %v1753
        %v2025 = vsel %vm2001, %v1992, %v1755
        %v2026 = vsel %vm2001, %v1993, %v1757
        %v2027 = vsel %vm2001, %v1994, %v1759
        %v2028 = vsel %vm2001, %v1995, %v1761
        %v2029 = vsel %vm2001, %v1996, %v1763
        %v2030 = vsel %vm2001, %v1997, %v1765
        %v2031 = vsel %vm2001, %v1998, %v1767
        %v2032 = vsel %vm2001, %v1999, %v1769
        %v2033 = vsel %vm2001, %v2000, %v1771
        %v2034 = vld [vmem:[%s3] sm:$0xff]
        %v2035 = vld [vmem:[%s3 + $0x8] sm:$0xff]
        %v2036 = vld [vmem:[%s3 + $0x10] sm:$0xff]
        %v2037 = vld [vmem:[%s3 + $0x18] sm:$0xff]
        %v2038 = vld [vmem:[%s3 + $0x20] sm:$0xff]
        %v2039 = vld [vmem:[%s3 + $0x28] sm:$0xff]
        %v2040 = vld [vmem:[%s3 + $0x30] sm:$0xff]
        %v2041 = vld [vmem:[%s3 + $0x38] sm:$0xff]
        %v2042 = vld [vmem:[%s3 + $0x40] sm:$0xff]
        %v2043 = vld [vmem:[%s3 + $0x48] sm:$0xff]
        %v2044 = vld [vmem:[%s3 + $0x50] sm:$0xff]
        %v2045 = vld [vmem:[%s3 + $0x58] sm:$0xff]
        %v2046 = vld [vmem:[%s3 + $0x60] sm:$0xff]
        %v2047 = vld [vmem:[%s3 + $0x68] sm:$0xff]
        %v2048 = vld [vmem:[%s3 + $0x70] sm:$0xff]
        %v2049 = vld [vmem:[%s3 + $0x78] sm:$0xff]
        %v2050 = vld [vmem:[%s3 + $0x80] sm:$0xff]
        %v2051 = vld [vmem:[%s3 + $0x88] sm:$0xff]
        %v2053 = vsel %vm540, %v876, 0
        %v2056 = vsel %vm540, %v877, 0
        %v2059 = vsel %vm540, %v878, 0
        %v2062 = vsel %vm540, %v879, 0
        %v2065 = vsel %vm540, %v880, 0
        %v2068 = vsel %vm540, %v881, 0
        %v2071 = vsel %vm540, %v882, 0
        %v2074 = vsel %vm540, %v883, 0
        %v2077 = vsel %vm540, %v884, 0
        %v2080 = vsel %vm540, %v885, 0
        %v2083 = vsel %vm540, %v886, 0
        %v2086 = vsel %vm540, %v887, 0
        %v2089 = vsel %vm540, %v888, 0
        %v2092 = vsel %vm540, %v889, 0
        %v2095 = vsel %vm540, %v890, 0
        %v2098 = vsel %vm540, %v891, 0
        %v2101 = vsel %vm540, %v892, 0
        %v2104 = vsel %vm540, %v893, 0
        %v2107 = vsel %vm540, %v894, 0
        %v2110 = vsel %vm540, %v895, 0
        %v2113 = vsel %vm540, %v896, 0
        %v2116 = vsel %vm540, %v897, 0
        %v2119 = vsel %vm540, %v898, 0
        %v2122 = vsel %vm540, %v899, 0
        %v2125 = vsel %vm540, %v900, 0
        %v2128 = vsel %vm540, %v901, 0
        %v2131 = vsel %vm540, %v902, 0
        %v2134 = vsel %vm540, %v903, 0
        %v2137 = vsel %vm540, %v904, 0
        %v2140 = vsel %vm540, %v905, 0
        %v2143 = vsel %vm540, %v906, 0
        %v2146 = vsel %vm540, %v907, 0
        %2148 = vmatpush.msra.mxu0 %v2049
        %2149 = vmatpush.msra.mxu0 %v2048
        %2150 = vmatpush.msra.mxu0 %v2047
        %2151 = vmatpush.msra.mxu0 %v2046
        %2152 = vmatpush.msra.mxu0 %v2045
        %2153 = vmatpush.msra.mxu0 %v2044
        %2154 = vmatpush.msra.mxu0 %v2043
        %2155 = vmatpush.msra.mxu0 %v2042
        %2156 = vmatpush.msra.mxu0 %v2041
        %2157 = vmatpush.msra.mxu0 %v2040
        %2158 = vmatpush.msra.mxu0 %v2039
        %2159 = vmatpush.msra.mxu0 %v2038
        %2160 = vmatpush.msra.mxu0 %v2037
        %2161 = vmatpush.msra.mxu0 %v2036
        %2162 = vmatpush.msra.mxu0 %v2035
        %2163 = vmatpush.msra.mxu0 %v2034
        %2164 = vmatmul.f32.gmra.mxu0 %v2002
        %v2165 = vpop.f32.mrf.mxu0
        %v2166 = vadd.f32 0.0, %v2165
        %2167 = vmatmul.f32.gmra.mxu0 %v2003
        %v2168 = vpop.f32.mrf.mxu0
        %v2169 = vadd.f32 0.0, %v2168
        %2170 = vmatmul.f32.gmra.mxu0 %v2004
        %v2171 = vpop.f32.mrf.mxu0
        %v2172 = vadd.f32 0.0, %v2171
        %2173 = vmatmul.f32.gmra.mxu0 %v2005
        %v2174 = vpop.f32.mrf.mxu0
        %v2175 = vadd.f32 0.0, %v2174
        %2176 = vmatmul.f32.gmra.mxu0 %v2006
        %v2177 = vpop.f32.mrf.mxu0
        %v2178 = vadd.f32 0.0, %v2177
        %2179 = vmatmul.f32.gmra.mxu0 %v2007
        %v2180 = vpop.f32.mrf.mxu0
        %v2181 = vadd.f32 0.0, %v2180
        %2182 = vmatmul.f32.gmra.mxu0 %v2008
        %v2183 = vpop.f32.mrf.mxu0
        %v2184 = vadd.f32 0.0, %v2183
        %2185 = vmatmul.f32.gmra.mxu0 %v2009
        %v2186 = vpop.f32.mrf.mxu0
        %v2187 = vadd.f32 0.0, %v2186
        %2188 = vmatmul.f32.gmra.mxu0 %v2010
        %v2189 = vpop.f32.mrf.mxu0
        %v2190 = vadd.f32 0.0, %v2189
        %2191 = vmatmul.f32.gmra.mxu0 %v2011
        %v2192 = vpop.f32.mrf.mxu0
        %v2193 = vadd.f32 0.0, %v2192
        %2194 = vmatmul.f32.gmra.mxu0 %v2012
        %v2195 = vpop.f32.mrf.mxu0
        %v2196 = vadd.f32 0.0, %v2195
        %2197 = vmatmul.f32.gmra.mxu0 %v2013
        %v2198 = vpop.f32.mrf.mxu0
        %v2199 = vadd.f32 0.0, %v2198
        %2200 = vmatmul.f32.gmra.mxu0 %v2014
        %v2201 = vpop.f32.mrf.mxu0
        %v2202 = vadd.f32 0.0, %v2201
        %2203 = vmatmul.f32.gmra.mxu0 %v2015
        %v2204 = vpop.f32.mrf.mxu0
        %v2205 = vadd.f32 0.0, %v2204
        %2206 = vmatmul.f32.gmra.mxu0 %v2016
        %v2207 = vpop.f32.mrf.mxu0
        %v2208 = vadd.f32 0.0, %v2207
        %2209 = vmatmul.f32.gmra.mxu0 %v2017
        %v2210 = vpop.f32.mrf.mxu0
        %v2211 = vadd.f32 0.0, %v2210
        %2212 = vmatmul.f32.gmra.mxu0 %v2018
        %v2213 = vpop.f32.mrf.mxu0
        %v2214 = vadd.f32 0.0, %v2213
        %2215 = vmatmul.f32.gmra.mxu0 %v2019
        %v2216 = vpop.f32.mrf.mxu0
        %v2217 = vadd.f32 0.0, %v2216
        %2218 = vmatmul.f32.gmra.mxu0 %v2020
        %v2219 = vpop.f32.mrf.mxu0
        %v2220 = vadd.f32 0.0, %v2219
        %2221 = vmatmul.f32.gmra.mxu0 %v2021
        %v2222 = vpop.f32.mrf.mxu0
        %v2223 = vadd.f32 0.0, %v2222
        %2224 = vmatmul.f32.gmra.mxu0 %v2022
        %v2225 = vpop.f32.mrf.mxu0
        %v2226 = vadd.f32 0.0, %v2225
        %2227 = vmatmul.f32.gmra.mxu0 %v2023
        %v2228 = vpop.f32.mrf.mxu0
        %v2229 = vadd.f32 0.0, %v2228
        %2230 = vmatmul.f32.gmra.mxu0 %v2024
        %v2231 = vpop.f32.mrf.mxu0
        %v2232 = vadd.f32 0.0, %v2231
        %2233 = vmatmul.f32.gmra.mxu0 %v2025
        %v2234 = vpop.f32.mrf.mxu0
        %v2235 = vadd.f32 0.0, %v2234
        %2236 = vmatmul.f32.gmra.mxu0 %v2026
        %v2237 = vpop.f32.mrf.mxu0
        %v2238 = vadd.f32 0.0, %v2237
        %2239 = vmatmul.f32.gmra.mxu0 %v2027
        %v2240 = vpop.f32.mrf.mxu0
        %v2241 = vadd.f32 0.0, %v2240
        %2242 = vmatmul.f32.gmra.mxu0 %v2028
        %v2243 = vpop.f32.mrf.mxu0
        %v2244 = vadd.f32 0.0, %v2243
        %2245 = vmatmul.f32.gmra.mxu0 %v2029
        %v2246 = vpop.f32.mrf.mxu0
        %v2247 = vadd.f32 0.0, %v2246
        %2248 = vmatmul.f32.gmra.mxu0 %v2030
        %v2249 = vpop.f32.mrf.mxu0
        %v2250 = vadd.f32 0.0, %v2249
        %2251 = vmatmul.f32.gmra.mxu0 %v2031
        %v2252 = vpop.f32.mrf.mxu0
        %v2253 = vadd.f32 0.0, %v2252
        %2254 = vmatmul.f32.gmra.mxu0 %v2032
        %v2255 = vpop.f32.mrf.mxu0
        %v2256 = vadd.f32 0.0, %v2255
        %2257 = vmatmul.f32.gmra.mxu0 %v2033
        %v2258 = vpop.f32.mrf.mxu0
        %v2259 = vadd.f32 0.0, %v2258
        %2260 = vdwg.mxu0
        %2261 = vmatpush.msra.mxu0 0.0
        %2262 = vmatpush.msra.mxu0 0.0
        %2263 = vmatpush.msra.mxu0 0.0
        %2264 = vmatpush.msra.mxu0 0.0
        %2265 = vmatpush.msra.mxu0 0.0
        %2266 = vmatpush.msra.mxu0 0.0
        %2267 = vmatpush.msra.mxu0 0.0
        %2268 = vmatpush.msra.mxu0 0.0
        %2269 = vmatpush.msra.mxu0 0.0
        %2270 = vmatpush.msra.mxu0 0.0
        %2271 = vmatpush.msra.mxu0 0.0
        %2272 = vmatpush.msra.mxu0 0.0
        %2273 = vmatpush.msra.mxu0 0.0
        %2274 = vmatpush.msra.mxu0 0.0
        %2275 = vmatpush.msra.mxu0 %v2051
        %2276 = vmatpush.msra.mxu0 %v2050
        %2277 = vmatmul.f32.gmra.mxu0 %v2053
        %v2278 = vpop.f32.mrf.mxu0
        %v2279 = vadd.f32 %v2166, %v2278
        %2280 = vmatmul.f32.gmra.mxu0 %v2056
        %v2281 = vpop.f32.mrf.mxu0
        %v2282 = vadd.f32 %v2169, %v2281
        %2283 = vmatmul.f32.gmra.mxu0 %v2059
        %v2284 = vpop.f32.mrf.mxu0
        %v2285 = vadd.f32 %v2172, %v2284
        %2286 = vmatmul.f32.gmra.mxu0 %v2062
        %v2287 = vpop.f32.mrf.mxu0
        %v2288 = vadd.f32 %v2175, %v2287
        %2289 = vmatmul.f32.gmra.mxu0 %v2065
        %v2290 = vpop.f32.mrf.mxu0
        %v2291 = vadd.f32 %v2178, %v2290
        %2292 = vmatmul.f32.gmra.mxu0 %v2068
        %v2293 = vpop.f32.mrf.mxu0
        %v2294 = vadd.f32 %v2181, %v2293
        %2295 = vmatmul.f32.gmra.mxu0 %v2071
        %v2296 = vpop.f32.mrf.mxu0
        %v2297 = vadd.f32 %v2184, %v2296
        %2298 = vmatmul.f32.gmra.mxu0 %v2074
        %v2299 = vpop.f32.mrf.mxu0
        %v2300 = vadd.f32 %v2187, %v2299
        %2301 = vmatmul.f32.gmra.mxu0 %v2077
        %v2302 = vpop.f32.mrf.mxu0
        %v2303 = vadd.f32 %v2190, %v2302
        %2304 = vmatmul.f32.gmra.mxu0 %v2080
        %v2305 = vpop.f32.mrf.mxu0
        %v2306 = vadd.f32 %v2193, %v2305
        %2307 = vmatmul.f32.gmra.mxu0 %v2083
        %v2308 = vpop.f32.mrf.mxu0
        %v2309 = vadd.f32 %v2196, %v2308
        %2310 = vmatmul.f32.gmra.mxu0 %v2086
        %v2311 = vpop.f32.mrf.mxu0
        %v2312 = vadd.f32 %v2199, %v2311
        %2313 = vmatmul.f32.gmra.mxu0 %v2089
        %v2314 = vpop.f32.mrf.mxu0
        %v2315 = vadd.f32 %v2202, %v2314
        %2316 = vmatmul.f32.gmra.mxu0 %v2092
        %v2317 = vpop.f32.mrf.mxu0
        %v2318 = vadd.f32 %v2205, %v2317
        %2319 = vmatmul.f32.gmra.mxu0 %v2095
        %v2320 = vpop.f32.mrf.mxu0
        %v2321 = vadd.f32 %v2208, %v2320
        %2322 = vmatmul.f32.gmra.mxu0 %v2098
        %v2323 = vpop.f32.mrf.mxu0
        %v2324 = vadd.f32 %v2211, %v2323
        %2325 = vmatmul.f32.gmra.mxu0 %v2101
        %v2326 = vpop.f32.mrf.mxu0
        %v2327 = vadd.f32 %v2214, %v2326
        %2328 = vmatmul.f32.gmra.mxu0 %v2104
        %v2329 = vpop.f32.mrf.mxu0
        %v2330 = vadd.f32 %v2217, %v2329
        %2331 = vmatmul.f32.gmra.mxu0 %v2107
        %v2332 = vpop.f32.mrf.mxu0
        %v2333 = vadd.f32 %v2220, %v2332
        %2334 = vmatmul.f32.gmra.mxu0 %v2110
        %v2335 = vpop.f32.mrf.mxu0
        %v2336 = vadd.f32 %v2223, %v2335
        %2337 = vmatmul.f32.gmra.mxu0 %v2113
        %v2338 = vpop.f32.mrf.mxu0
        %v2339 = vadd.f32 %v2226, %v2338
        %2340 = vmatmul.f32.gmra.mxu0 %v2116
        %v2341 = vpop.f32.mrf.mxu0
        %v2342 = vadd.f32 %v2229, %v2341
        %2343 = vmatmul.f32.gmra.mxu0 %v2119
        %v2344 = vpop.f32.mrf.mxu0
        %v2345 = vadd.f32 %v2232, %v2344
        %2346 = vmatmul.f32.gmra.mxu0 %v2122
        %v2347 = vpop.f32.mrf.mxu0
        %v2348 = vadd.f32 %v2235, %v2347
        %2349 = vmatmul.f32.gmra.mxu0 %v2125
        %v2350 = vpop.f32.mrf.mxu0
        %v2351 = vadd.f32 %v2238, %v2350
        %2352 = vmatmul.f32.gmra.mxu0 %v2128
        %v2353 = vpop.f32.mrf.mxu0
        %v2354 = vadd.f32 %v2241, %v2353
        %2355 = vmatmul.f32.gmra.mxu0 %v2131
        %v2356 = vpop.f32.mrf.mxu0
        %v2357 = vadd.f32 %v2244, %v2356
        %2358 = vmatmul.f32.gmra.mxu0 %v2134
        %v2359 = vpop.f32.mrf.mxu0
        %v2360 = vadd.f32 %v2247, %v2359
        %2361 = vmatmul.f32.gmra.mxu0 %v2137
        %v2362 = vpop.f32.mrf.mxu0
        %v2363 = vadd.f32 %v2250, %v2362
        %2364 = vmatmul.f32.gmra.mxu0 %v2140
        %v2365 = vpop.f32.mrf.mxu0
        %v2366 = vadd.f32 %v2253, %v2365
        %2367 = vmatmul.f32.gmra.mxu0 %v2143
        %v2368 = vpop.f32.mrf.mxu0
        %v2369 = vadd.f32 %v2256, %v2368
        %2370 = vmatmul.f32.gmra.mxu0 %v2146
        %v2371 = vpop.f32.mrf.mxu0
        %v2372 = vadd.f32 %v2259, %v2371
        %2373 = vdwg.mxu0
        %vm2374 = vcmp.gt.f32.partialorder %v2279, 0.0
        %vm2375 = vcmp.gt.f32.partialorder %v2282, 0.0
        %vm2376 = vcmp.gt.f32.partialorder %v2285, 0.0
        %vm2377 = vcmp.gt.f32.partialorder %v2288, 0.0
        %vm2378 = vcmp.gt.f32.partialorder %v2291, 0.0
        %vm2379 = vcmp.gt.f32.partialorder %v2294, 0.0
        %vm2380 = vcmp.gt.f32.partialorder %v2297, 0.0
        %vm2381 = vcmp.gt.f32.partialorder %v2300, 0.0
        %vm2382 = vcmp.gt.f32.partialorder %v2303, 0.0
        %vm2383 = vcmp.gt.f32.partialorder %v2306, 0.0
        %vm2384 = vcmp.gt.f32.partialorder %v2309, 0.0
        %vm2385 = vcmp.gt.f32.partialorder %v2312, 0.0
        %vm2386 = vcmp.gt.f32.partialorder %v2315, 0.0
        %vm2387 = vcmp.gt.f32.partialorder %v2318, 0.0
        %vm2388 = vcmp.gt.f32.partialorder %v2321, 0.0
        %vm2389 = vcmp.gt.f32.partialorder %v2324, 0.0
        %vm2390 = vcmp.gt.f32.partialorder %v2327, 0.0
        %vm2391 = vcmp.gt.f32.partialorder %v2330, 0.0
        %vm2392 = vcmp.gt.f32.partialorder %v2333, 0.0
        %vm2393 = vcmp.gt.f32.partialorder %v2336, 0.0
        %vm2394 = vcmp.gt.f32.partialorder %v2339, 0.0
        %vm2395 = vcmp.gt.f32.partialorder %v2342, 0.0
        %vm2396 = vcmp.gt.f32.partialorder %v2345, 0.0
        %vm2397 = vcmp.gt.f32.partialorder %v2348, 0.0
        %vm2398 = vcmp.gt.f32.partialorder %v2351, 0.0
        %vm2399 = vcmp.gt.f32.partialorder %v2354, 0.0
        %vm2400 = vcmp.gt.f32.partialorder %v2357, 0.0
        %vm2401 = vcmp.gt.f32.partialorder %v2360, 0.0
        %vm2402 = vcmp.gt.f32.partialorder %v2363, 0.0
        %vm2403 = vcmp.gt.f32.partialorder %v2366, 0.0
        %vm2404 = vcmp.gt.f32.partialorder %v2369, 0.0
        %vm2405 = vcmp.gt.f32.partialorder %v2372, 0.0
        %v2406 = vld [vmem:[%s4] sm:$0x1]
        %v2408 = vperm.slane %v2406, 0
        %v2410 = vmul.f32 %v2279, %v2408
        %v2411 = vmul.f32 %v2282, %v2408
        %v2412 = vmul.f32 %v2285, %v2408
        %v2413 = vmul.f32 %v2288, %v2408
        %v2414 = vmul.f32 %v2291, %v2408
        %v2415 = vmul.f32 %v2294, %v2408
        %v2416 = vmul.f32 %v2297, %v2408
        %v2417 = vmul.f32 %v2300, %v2408
        %v2418 = vmul.f32 %v2303, %v2408
        %v2419 = vmul.f32 %v2306, %v2408
        %v2420 = vmul.f32 %v2309, %v2408
        %v2421 = vmul.f32 %v2312, %v2408
        %v2422 = vmul.f32 %v2315, %v2408
        %v2423 = vmul.f32 %v2318, %v2408
        %v2424 = vmul.f32 %v2321, %v2408
        %v2425 = vmul.f32 %v2324, %v2408
        %v2426 = vmul.f32 %v2327, %v2408
        %v2427 = vmul.f32 %v2330, %v2408
        %v2428 = vmul.f32 %v2333, %v2408
        %v2429 = vmul.f32 %v2336, %v2408
        %v2430 = vmul.f32 %v2339, %v2408
        %v2431 = vmul.f32 %v2342, %v2408
        %v2432 = vmul.f32 %v2345, %v2408
        %v2433 = vmul.f32 %v2348, %v2408
        %v2434 = vmul.f32 %v2351, %v2408
        %v2435 = vmul.f32 %v2354, %v2408
        %v2436 = vmul.f32 %v2357, %v2408
        %v2437 = vmul.f32 %v2360, %v2408
        %v2438 = vmul.f32 %v2363, %v2408
        %v2439 = vmul.f32 %v2366, %v2408
        %v2440 = vmul.f32 %v2369, %v2408
        %v2441 = vmul.f32 %v2372, %v2408
        %v2442 = vsel %vm2374, %v2279, %v2410
        %v2443 = vsel %vm2375, %v2282, %v2411
        %v2444 = vsel %vm2376, %v2285, %v2412
        %v2445 = vsel %vm2377, %v2288, %v2413
        %v2446 = vsel %vm2378, %v2291, %v2414
        %v2447 = vsel %vm2379, %v2294, %v2415
        %v2448 = vsel %vm2380, %v2297, %v2416
        %v2449 = vsel %vm2381, %v2300, %v2417
        %v2450 = vsel %vm2382, %v2303, %v2418
        %v2451 = vsel %vm2383, %v2306, %v2419
        %v2452 = vsel %vm2384, %v2309, %v2420
        %v2453 = vsel %vm2385, %v2312, %v2421
        %v2454 = vsel %vm2386, %v2315, %v2422
        %v2455 = vsel %vm2387, %v2318, %v2423
        %v2456 = vsel %vm2388, %v2321, %v2424
        %v2457 = vsel %vm2389, %v2324, %v2425
        %v2458 = vsel %vm2390, %v2327, %v2426
        %v2459 = vsel %vm2391, %v2330, %v2427
        %v2460 = vsel %vm2392, %v2333, %v2428
        %v2461 = vsel %vm2393, %v2336, %v2429
        %v2462 = vsel %vm2394, %v2339, %v2430
        %v2463 = vsel %vm2395, %v2342, %v2431
        %v2464 = vsel %vm2396, %v2345, %v2432
        %v2465 = vsel %vm2397, %v2348, %v2433
        %v2466 = vsel %vm2398, %v2351, %v2434
        %v2467 = vsel %vm2399, %v2354, %v2435
        %v2468 = vsel %vm2400, %v2357, %v2436
        %v2469 = vsel %vm2401, %v2360, %v2437
        %v2470 = vsel %vm2402, %v2363, %v2438
        %v2471 = vsel %vm2403, %v2366, %v2439
        %v2472 = vsel %vm2404, %v2369, %v2440
        %v2473 = vsel %vm2405, %v2372, %v2441
        %2474 = vst.msk [vmem:[#allocation3] sm:$0xff] %vm1836, 0.0
        %2475 = vst.msk [vmem:[#allocation3 + $0x8] sm:$0xff] %vm1836, 0.0
        %vm2476 = vcmask 254976
        %2477 = vst.msk [vmem:[#allocation3 + $0x10] sm:$0x3] %vm2476, 0.0
        %s2478 = scalar_lea.vmem [#allocation3], 408
        %2479 = vst.msk [vmem:[%s2478] sm:$0xff] %vm1836, 0.0
        %2480 = vst.msk [vmem:[%s2478 + $0x8] sm:$0xff] %vm1836, 0.0
        %2481 = vst.msk [vmem:[%s2478 + $0x10] sm:$0x3] %vm2476, 0.0
        %vm2482 = vcmask 253952
        %2483 = vst.msk [vmem:[#allocation3] sm:$0x1] %vm2482, 0.0
        %2484 = vst.msk [vmem:[#allocation3 + $0x18] sm:$0x1] %vm2482, 0.0
        %2485 = vst.msk [vmem:[#allocation3 + $0x30] sm:$0x1] %vm2482, 0.0
        %2486 = vst.msk [vmem:[#allocation3 + $0x48] sm:$0x1] %vm2482, 0.0
        %2487 = vst.msk [vmem:[#allocation3 + $0x60] sm:$0x1] %vm2482, 0.0
        %2488 = vst.msk [vmem:[#allocation3 + $0x78] sm:$0x1] %vm2482, 0.0
        %2489 = vst.msk [vmem:[#allocation3 + $0x90] sm:$0x1] %vm2482, 0.0
        %2490 = vst.msk [vmem:[#allocation3 + $0xa8] sm:$0x1] %vm2482, 0.0
        %2491 = vst.msk [vmem:[#allocation3 + $0xc0] sm:$0x1] %vm2482, 0.0
        %2492 = vst.msk [vmem:[#allocation3 + $0xd8] sm:$0x1] %vm2482, 0.0
        %2493 = vst.msk [vmem:[#allocation3 + $0xf0] sm:$0x1] %vm2482, 0.0
        %2494 = vst.msk [vmem:[#allocation3 + $0x108] sm:$0x1] %vm2482, 0.0
        %2495 = vst.msk [vmem:[#allocation3 + $0x120] sm:$0x1] %vm2482, 0.0
        %2496 = vst.msk [vmem:[#allocation3 + $0x138] sm:$0x1] %vm2482, 0.0
        %2497 = vst.msk [vmem:[#allocation3 + $0x150] sm:$0x1] %vm2482, 0.0
        %2498 = vst.msk [vmem:[#allocation3 + $0x168] sm:$0x1] %vm2482, 0.0
        %2499 = vst.msk [vmem:[#allocation3 + $0x180] sm:$0x1] %vm2482, 0.0
        %2500 = vst.msk [vmem:[#allocation3 + $0x198] sm:$0x1] %vm2482, 0.0
        %2501 = vst.msk [vmem:[#allocation3 + $0x11] sm:$0x1] %vm2482, 0.0
        %2502 = vst.msk [vmem:[#allocation3 + $0x29] sm:$0x1] %vm2482, 0.0
        %2503 = vst.msk [vmem:[#allocation3 + $0x41] sm:$0x1] %vm2482, 0.0
        %2504 = vst.msk [vmem:[#allocation3 + $0x59] sm:$0x1] %vm2482, 0.0
        %2505 = vst.msk [vmem:[#allocation3 + $0x71] sm:$0x1] %vm2482, 0.0
        %2506 = vst.msk [vmem:[#allocation3 + $0x89] sm:$0x1] %vm2482, 0.0
        %2507 = vst.msk [vmem:[#allocation3 + $0xa1] sm:$0x1] %vm2482, 0.0
        %2508 = vst.msk [vmem:[#allocation3 + $0xb9] sm:$0x1] %vm2482, 0.0
        %2509 = vst.msk [vmem:[#allocation3 + $0xd1] sm:$0x1] %vm2482, 0.0
        %2510 = vst.msk [vmem:[#allocation3 + $0xe9] sm:$0x1] %vm2482, 0.0
        %2511 = vst.msk [vmem:[#allocation3 + $0x101] sm:$0x1] %vm2482, 0.0
        %2512 = vst.msk [vmem:[#allocation3 + $0x119] sm:$0x1] %vm2482, 0.0
        %2513 = vst.msk [vmem:[#allocation3 + $0x131] sm:$0x1] %vm2482, 0.0
        %2514 = vst.msk [vmem:[#allocation3 + $0x149] sm:$0x1] %vm2482, 0.0
        %2515 = vst.msk [vmem:[#allocation3 + $0x161] sm:$0x1] %vm2482, 0.0
        %2516 = vst.msk [vmem:[#allocation3 + $0x179] sm:$0x1] %vm2482, 0.0
        %2517 = vst.msk [vmem:[#allocation3 + $0x191] sm:$0x1] %vm2482, 0.0
        %2518 = vst.msk [vmem:[#allocation3 + $0x1a9] sm:$0x1] %vm2482, 0.0
        %s2519 = scalar_lea.vmem [#allocation3], 24
        %2520 = vst.msk [vmem:[%s2519 + $0x1] sm:$0xff] %vm1836, %v2442
        %2521 = vst.msk [vmem:[%s2519 + $0x9] sm:$0xff] %vm1836, %v2443
        %2522 = vst.msk [vmem:[%s2519 + $0x19] sm:$0xff] %vm1836, %v2444
        %2523 = vst.msk [vmem:[%s2519 + $0x21] sm:$0xff] %vm1836, %v2445
        %2524 = vst.msk [vmem:[%s2519 + $0x31] sm:$0xff] %vm1836, %v2446
        %2525 = vst.msk [vmem:[%s2519 + $0x39] sm:$0xff] %vm1836, %v2447
        %2526 = vst.msk [vmem:[%s2519 + $0x49] sm:$0xff] %vm1836, %v2448
        %2527 = vst.msk [vmem:[%s2519 + $0x51] sm:$0xff] %vm1836, %v2449
        %2528 = vst.msk [vmem:[%s2519 + $0x61] sm:$0xff] %vm1836, %v2450
        %2529 = vst.msk [vmem:[%s2519 + $0x69] sm:$0xff] %vm1836, %v2451
        %2530 = vst.msk [vmem:[%s2519 + $0x79] sm:$0xff] %vm1836, %v2452
        %2531 = vst.msk [vmem:[%s2519 + $0x81] sm:$0xff] %vm1836, %v2453
        %2532 = vst.msk [vmem:[%s2519 + $0x91] sm:$0xff] %vm1836, %v2454
        %2533 = vst.msk [vmem:[%s2519 + $0x99] sm:$0xff] %vm1836, %v2455
        %2534 = vst.msk [vmem:[%s2519 + $0xa9] sm:$0xff] %vm1836, %v2456
        %2535 = vst.msk [vmem:[%s2519 + $0xb1] sm:$0xff] %vm1836, %v2457
        %2536 = vst.msk [vmem:[%s2519 + $0xc1] sm:$0xff] %vm1836, %v2458
        %2537 = vst.msk [vmem:[%s2519 + $0xc9] sm:$0xff] %vm1836, %v2459
        %2538 = vst.msk [vmem:[%s2519 + $0xd9] sm:$0xff] %vm1836, %v2460
        %2539 = vst.msk [vmem:[%s2519 + $0xe1] sm:$0xff] %vm1836, %v2461
        %2540 = vst.msk [vmem:[%s2519 + $0xf1] sm:$0xff] %vm1836, %v2462
        %2541 = vst.msk [vmem:[%s2519 + $0xf9] sm:$0xff] %vm1836, %v2463
        %2542 = vst.msk [vmem:[%s2519 + $0x109] sm:$0xff] %vm1836, %v2464
        %2543 = vst.msk [vmem:[%s2519 + $0x111] sm:$0xff] %vm1836, %v2465
        %2544 = vst.msk [vmem:[%s2519 + $0x121] sm:$0xff] %vm1836, %v2466
        %2545 = vst.msk [vmem:[%s2519 + $0x129] sm:$0xff] %vm1836, %v2467
        %2546 = vst.msk [vmem:[%s2519 + $0x139] sm:$0xff] %vm1836, %v2468
        %2547 = vst.msk [vmem:[%s2519 + $0x141] sm:$0xff] %vm1836, %v2469
        %2548 = vst.msk [vmem:[%s2519 + $0x151] sm:$0xff] %vm1836, %v2470
        %2549 = vst.msk [vmem:[%s2519 + $0x159] sm:$0xff] %vm1836, %v2471
        %2550 = vst.msk [vmem:[%s2519 + $0x169] sm:$0xff] %vm1836, %v2472
        %2551 = vst.msk [vmem:[%s2519 + $0x171] sm:$0xff] %vm1836, %v2473
        %v2552 = vld [vmem:[#allocation3] sm:$0xff]
        %v2553 = vld [vmem:[#allocation3 + $0x8] sm:$0xff]
        %v2554 = vld [vmem:[#allocation3 + $0x18] sm:$0xff]
        %v2555 = vld [vmem:[#allocation3 + $0x20] sm:$0xff]
        %v2556 = vld [vmem:[#allocation3 + $0x30] sm:$0xff]
        %v2557 = vld [vmem:[#allocation3 + $0x38] sm:$0xff]
        %v2558 = vld [vmem:[#allocation3 + $0x48] sm:$0xff]
        %v2559 = vld [vmem:[#allocation3 + $0x50] sm:$0xff]
        %v2560 = vld [vmem:[#allocation3 + $0x60] sm:$0xff]
        %v2561 = vld [vmem:[#allocation3 + $0x68] sm:$0xff]
        %v2562 = vld [vmem:[#allocation3 + $0x78] sm:$0xff]
        %v2563 = vld [vmem:[#allocation3 + $0x80] sm:$0xff]
        %v2564 = vld [vmem:[#allocation3 + $0x90] sm:$0xff]
        %v2565 = vld [vmem:[#allocation3 + $0x98] sm:$0xff]
        %v2566 = vld [vmem:[#allocation3 + $0xa8] sm:$0xff]
        %v2567 = vld [vmem:[#allocation3 + $0xb0] sm:$0xff]
        %v2568 = vld [vmem:[#allocation3 + $0xc0] sm:$0xff]
        %v2569 = vld [vmem:[#allocation3 + $0xc8] sm:$0xff]
        %v2570 = vld [vmem:[#allocation3 + $0xd8] sm:$0xff]
        %v2571 = vld [vmem:[#allocation3 + $0xe0] sm:$0xff]
        %v2572 = vld [vmem:[#allocation3 + $0xf0] sm:$0xff]
        %v2573 = vld [vmem:[#allocation3 + $0xf8] sm:$0xff]
        %v2574 = vld [vmem:[#allocation3 + $0x108] sm:$0xff]
        %v2575 = vld [vmem:[#allocation3 + $0x110] sm:$0xff]
        %v2576 = vld [vmem:[#allocation3 + $0x120] sm:$0xff]
        %v2577 = vld [vmem:[#allocation3 + $0x128] sm:$0xff]
        %v2578 = vld [vmem:[#allocation3 + $0x138] sm:$0xff]
        %v2579 = vld [vmem:[#allocation3 + $0x140] sm:$0xff]
        %v2580 = vld [vmem:[#allocation3 + $0x150] sm:$0xff]
        %v2581 = vld [vmem:[#allocation3 + $0x158] sm:$0xff]
        %v2582 = vld [vmem:[#allocation3 + $0x168] sm:$0xff]
        %v2583 = vld [vmem:[#allocation3 + $0x170] sm:$0xff]
        %v2584 = vld [vmem:[#allocation3 + $0x1] sm:$0xff]
        %v2585 = vld [vmem:[#allocation3 + $0x9] sm:$0xff]
        %v2586 = vld [vmem:[#allocation3 + $0x19] sm:$0xff]
        %v2587 = vld [vmem:[#allocation3 + $0x21] sm:$0xff]
        %v2588 = vld [vmem:[#allocation3 + $0x31] sm:$0xff]
        %v2589 = vld [vmem:[#allocation3 + $0x39] sm:$0xff]
        %v2590 = vld [vmem:[#allocation3 + $0x49] sm:$0xff]
        %v2591 = vld [vmem:[#allocation3 + $0x51] sm:$0xff]
        %v2592 = vld [vmem:[#allocation3 + $0x61] sm:$0xff]
        %v2593 = vld [vmem:[#allocation3 + $0x69] sm:$0xff]
        %v2594 = vld [vmem:[#allocation3 + $0x79] sm:$0xff]
        %v2595 = vld [vmem:[#allocation3 + $0x81] sm:$0xff]
        %v2596 = vld [vmem:[#allocation3 + $0x91] sm:$0xff]
        %v2597 = vld [vmem:[#allocation3 + $0x99] sm:$0xff]
        %v2598 = vld [vmem:[#allocation3 + $0xa9] sm:$0xff]
        %v2599 = vld [vmem:[#allocation3 + $0xb1] sm:$0xff]
        %v2600 = vld [vmem:[#allocation3 + $0xc1] sm:$0xff]
        %v2601 = vld [vmem:[#allocation3 + $0xc9] sm:$0xff]
        %v2602 = vld [vmem:[#allocation3 + $0xd9] sm:$0xff]
        %v2603 = vld [vmem:[#allocation3 + $0xe1] sm:$0xff]
        %v2604 = vld [vmem:[#allocation3 + $0xf1] sm:$0xff]
        %v2605 = vld [vmem:[#allocation3 + $0xf9] sm:$0xff]
        %v2606 = vld [vmem:[#allocation3 + $0x109] sm:$0xff]
        %v2607 = vld [vmem:[#allocation3 + $0x111] sm:$0xff]
        %v2608 = vld [vmem:[#allocation3 + $0x121] sm:$0xff]
        %v2609 = vld [vmem:[#allocation3 + $0x129] sm:$0xff]
        %v2610 = vld [vmem:[#allocation3 + $0x139] sm:$0xff]
        %v2611 = vld [vmem:[#allocation3 + $0x141] sm:$0xff]
        %v2612 = vld [vmem:[#allocation3 + $0x151] sm:$0xff]
        %v2613 = vld [vmem:[#allocation3 + $0x159] sm:$0xff]
        %v2614 = vld [vmem:[#allocation3 + $0x169] sm:$0xff]
        %v2615 = vld [vmem:[#allocation3 + $0x171] sm:$0xff]
        %v2616 = vld [vmem:[#allocation3 + $0x2] sm:$0xff]
        %v2617 = vld [vmem:[#allocation3 + $0xa] sm:$0xff]
        %v2618 = vld [vmem:[#allocation3 + $0x1a] sm:$0xff]
        %v2619 = vld [vmem:[#allocation3 + $0x22] sm:$0xff]
        %v2620 = vld [vmem:[#allocation3 + $0x32] sm:$0xff]
        %v2621 = vld [vmem:[#allocation3 + $0x3a] sm:$0xff]
        %v2622 = vld [vmem:[#allocation3 + $0x4a] sm:$0xff]
        %v2623 = vld [vmem:[#allocation3 + $0x52] sm:$0xff]
        %v2624 = vld [vmem:[#allocation3 + $0x62] sm:$0xff]
        %v2625 = vld [vmem:[#allocation3 + $0x6a] sm:$0xff]
        %v2626 = vld [vmem:[#allocation3 + $0x7a] sm:$0xff]
        %v2627 = vld [vmem:[#allocation3 + $0x82] sm:$0xff]
        %v2628 = vld [vmem:[#allocation3 + $0x92] sm:$0xff]
        %v2629 = vld [vmem:[#allocation3 + $0x9a] sm:$0xff]
        %v2630 = vld [vmem:[#allocation3 + $0xaa] sm:$0xff]
        %v2631 = vld [vmem:[#allocation3 + $0xb2] sm:$0xff]
        %v2632 = vld [vmem:[#allocation3 + $0xc2] sm:$0xff]
        %v2633 = vld [vmem:[#allocation3 + $0xca] sm:$0xff]
        %v2634 = vld [vmem:[#allocation3 + $0xda] sm:$0xff]
        %v2635 = vld [vmem:[#allocation3 + $0xe2] sm:$0xff]
        %v2636 = vld [vmem:[#allocation3 + $0xf2] sm:$0xff]
        %v2637 = vld [vmem:[#allocation3 + $0xfa] sm:$0xff]
        %v2638 = vld [vmem:[#allocation3 + $0x10a] sm:$0xff]
        %v2639 = vld [vmem:[#allocation3 + $0x112] sm:$0xff]
        %v2640 = vld [vmem:[#allocation3 + $0x122] sm:$0xff]
        %v2641 = vld [vmem:[#allocation3 + $0x12a] sm:$0xff]
        %v2642 = vld [vmem:[#allocation3 + $0x13a] sm:$0xff]
        %v2643 = vld [vmem:[#allocation3 + $0x142] sm:$0xff]
        %v2644 = vld [vmem:[#allocation3 + $0x152] sm:$0xff]
        %v2645 = vld [vmem:[#allocation3 + $0x15a] sm:$0xff]
        %v2646 = vld [vmem:[#allocation3 + $0x16a] sm:$0xff]
        %v2647 = vld [vmem:[#allocation3 + $0x172] sm:$0xff]
        %v2648 = vld [vmem:[%s2519] sm:$0xff]
        %v2649 = vld [vmem:[%s2519 + $0x8] sm:$0xff]
        %v2650 = vld [vmem:[%s2519 + $0x18] sm:$0xff]
        %v2651 = vld [vmem:[%s2519 + $0x20] sm:$0xff]
        %v2652 = vld [vmem:[%s2519 + $0x30] sm:$0xff]
        %v2653 = vld [vmem:[%s2519 + $0x38] sm:$0xff]
        %v2654 = vld [vmem:[%s2519 + $0x48] sm:$0xff]
        %v2655 = vld [vmem:[%s2519 + $0x50] sm:$0xff]
        %v2656 = vld [vmem:[%s2519 + $0x60] sm:$0xff]
        %v2657 = vld [vmem:[%s2519 + $0x68] sm:$0xff]
        %v2658 = vld [vmem:[%s2519 + $0x78] sm:$0xff]
        %v2659 = vld [vmem:[%s2519 + $0x80] sm:$0xff]
        %v2660 = vld [vmem:[%s2519 + $0x90] sm:$0xff]
        %v2661 = vld [vmem:[%s2519 + $0x98] sm:$0xff]
        %v2662 = vld [vmem:[%s2519 + $0xa8] sm:$0xff]
        %v2663 = vld [vmem:[%s2519 + $0xb0] sm:$0xff]
        %v2664 = vld [vmem:[%s2519 + $0xc0] sm:$0xff]
        %v2665 = vld [vmem:[%s2519 + $0xc8] sm:$0xff]
        %v2666 = vld [vmem:[%s2519 + $0xd8] sm:$0xff]
        %v2667 = vld [vmem:[%s2519 + $0xe0] sm:$0xff]
        %v2668 = vld [vmem:[%s2519 + $0xf0] sm:$0xff]
        %v2669 = vld [vmem:[%s2519 + $0xf8] sm:$0xff]
        %v2670 = vld [vmem:[%s2519 + $0x108] sm:$0xff]
        %v2671 = vld [vmem:[%s2519 + $0x110] sm:$0xff]
        %v2672 = vld [vmem:[%s2519 + $0x120] sm:$0xff]
        %v2673 = vld [vmem:[%s2519 + $0x128] sm:$0xff]
        %v2674 = vld [vmem:[%s2519 + $0x138] sm:$0xff]
        %v2675 = vld [vmem:[%s2519 + $0x140] sm:$0xff]
        %v2676 = vld [vmem:[%s2519 + $0x150] sm:$0xff]
        %v2677 = vld [vmem:[%s2519 + $0x158] sm:$0xff]
        %v2678 = vld [vmem:[%s2519 + $0x168] sm:$0xff]
        %v2679 = vld [vmem:[%s2519 + $0x170] sm:$0xff]
        %v2680 = vld [vmem:[%s2519 + $0x1] sm:$0xff]
        %v2681 = vld [vmem:[%s2519 + $0x9] sm:$0xff]
        %v2682 = vld [vmem:[%s2519 + $0x19] sm:$0xff]
        %v2683 = vld [vmem:[%s2519 + $0x21] sm:$0xff]
        %v2684 = vld [vmem:[%s2519 + $0x31] sm:$0xff]
        %v2685 = vld [vmem:[%s2519 + $0x39] sm:$0xff]
        %v2686 = vld [vmem:[%s2519 + $0x49] sm:$0xff]
        %v2687 = vld [vmem:[%s2519 + $0x51] sm:$0xff]
        %v2688 = vld [vmem:[%s2519 + $0x61] sm:$0xff]
        %v2689 = vld [vmem:[%s2519 + $0x69] sm:$0xff]
        %v2690 = vld [vmem:[%s2519 + $0x79] sm:$0xff]
        %v2691 = vld [vmem:[%s2519 + $0x81] sm:$0xff]
        %v2692 = vld [vmem:[%s2519 + $0x91] sm:$0xff]
        %v2693 = vld [vmem:[%s2519 + $0x99] sm:$0xff]
        %v2694 = vld [vmem:[%s2519 + $0xa9] sm:$0xff]
        %v2695 = vld [vmem:[%s2519 + $0xb1] sm:$0xff]
        %v2696 = vld [vmem:[%s2519 + $0xc1] sm:$0xff]
        %v2697 = vld [vmem:[%s2519 + $0xc9] sm:$0xff]
        %v2698 = vld [vmem:[%s2519 + $0xd9] sm:$0xff]
        %v2699 = vld [vmem:[%s2519 + $0xe1] sm:$0xff]
        %v2700 = vld [vmem:[%s2519 + $0xf1] sm:$0xff]
        %v2701 = vld [vmem:[%s2519 + $0xf9] sm:$0xff]
        %v2702 = vld [vmem:[%s2519 + $0x109] sm:$0xff]
        %v2703 = vld [vmem:[%s2519 + $0x111] sm:$0xff]
        %v2704 = vld [vmem:[%s2519 + $0x121] sm:$0xff]
        %v2705 = vld [vmem:[%s2519 + $0x129] sm:$0xff]
        %v2706 = vld [vmem:[%s2519 + $0x139] sm:$0xff]
        %v2707 = vld [vmem:[%s2519 + $0x141] sm:$0xff]
        %v2708 = vld [vmem:[%s2519 + $0x151] sm:$0xff]
        %v2709 = vld [vmem:[%s2519 + $0x159] sm:$0xff]
        %v2710 = vld [vmem:[%s2519 + $0x169] sm:$0xff]
        %v2711 = vld [vmem:[%s2519 + $0x171] sm:$0xff]
        %v2712 = vld [vmem:[%s2519 + $0x2] sm:$0xff]
        %v2713 = vld [vmem:[%s2519 + $0xa] sm:$0xff]
        %v2714 = vld [vmem:[%s2519 + $0x1a] sm:$0xff]
        %v2715 = vld [vmem:[%s2519 + $0x22] sm:$0xff]
        %v2716 = vld [vmem:[%s2519 + $0x32] sm:$0xff]
        %v2717 = vld [vmem:[%s2519 + $0x3a] sm:$0xff]
        %v2718 = vld [vmem:[%s2519 + $0x4a] sm:$0xff]
        %v2719 = vld [vmem:[%s2519 + $0x52] sm:$0xff]
        %v2720 = vld [vmem:[%s2519 + $0x62] sm:$0xff]
        %v2721 = vld [vmem:[%s2519 + $0x6a] sm:$0xff]
        %v2722 = vld [vmem:[%s2519 + $0x7a] sm:$0xff]
        %v2723 = vld [vmem:[%s2519 + $0x82] sm:$0xff]
        %v2724 = vld [vmem:[%s2519 + $0x92] sm:$0xff]
        %v2725 = vld [vmem:[%s2519 + $0x9a] sm:$0xff]
        %v2726 = vld [vmem:[%s2519 + $0xaa] sm:$0xff]
        %v2727 = vld [vmem:[%s2519 + $0xb2] sm:$0xff]
        %v2728 = vld [vmem:[%s2519 + $0xc2] sm:$0xff]
        %v2729 = vld [vmem:[%s2519 + $0xca] sm:$0xff]
        %v2730 = vld [vmem:[%s2519 + $0xda] sm:$0xff]
        %v2731 = vld [vmem:[%s2519 + $0xe2] sm:$0xff]
        %v2732 = vld [vmem:[%s2519 + $0xf2] sm:$0xff]
        %v2733 = vld [vmem:[%s2519 + $0xfa] sm:$0xff]
        %v2734 = vld [vmem:[%s2519 + $0x10a] sm:$0xff]
        %v2735 = vld [vmem:[%s2519 + $0x112] sm:$0xff]
        %v2736 = vld [vmem:[%s2519 + $0x122] sm:$0xff]
        %v2737 = vld [vmem:[%s2519 + $0x12a] sm:$0xff]
        %v2738 = vld [vmem:[%s2519 + $0x13a] sm:$0xff]
        %v2739 = vld [vmem:[%s2519 + $0x142] sm:$0xff]
        %v2740 = vld [vmem:[%s2519 + $0x152] sm:$0xff]
        %v2741 = vld [vmem:[%s2519 + $0x15a] sm:$0xff]
        %v2742 = vld [vmem:[%s2519 + $0x16a] sm:$0xff]
        %v2743 = vld [vmem:[%s2519 + $0x172] sm:$0xff]
        %s2744 = scalar_lea.vmem [#allocation3], 48
        %v2745 = vld [vmem:[%s2744] sm:$0xff]
        %v2746 = vld [vmem:[%s2744 + $0x8] sm:$0xff]
        %v2747 = vld [vmem:[%s2744 + $0x18] sm:$0xff]
        %v2748 = vld [vmem:[%s2744 + $0x20] sm:$0xff]
        %v2749 = vld [vmem:[%s2744 + $0x30] sm:$0xff]
        %v2750 = vld [vmem:[%s2744 + $0x38] sm:$0xff]
        %v2751 = vld [vmem:[%s2744 + $0x48] sm:$0xff]
        %v2752 = vld [vmem:[%s2744 + $0x50] sm:$0xff]
        %v2753 = vld [vmem:[%s2744 + $0x60] sm:$0xff]
        %v2754 = vld [vmem:[%s2744 + $0x68] sm:$0xff]
        %v2755 = vld [vmem:[%s2744 + $0x78] sm:$0xff]
        %v2756 = vld [vmem:[%s2744 + $0x80] sm:$0xff]
        %v2757 = vld [vmem:[%s2744 + $0x90] sm:$0xff]
        %v2758 = vld [vmem:[%s2744 + $0x98] sm:$0xff]
        %v2759 = vld [vmem:[%s2744 + $0xa8] sm:$0xff]
        %v2760 = vld [vmem:[%s2744 + $0xb0] sm:$0xff]
        %v2761 = vld [vmem:[%s2744 + $0xc0] sm:$0xff]
        %v2762 = vld [vmem:[%s2744 + $0xc8] sm:$0xff]
        %v2763 = vld [vmem:[%s2744 + $0xd8] sm:$0xff]
        %v2764 = vld [vmem:[%s2744 + $0xe0] sm:$0xff]
        %v2765 = vld [vmem:[%s2744 + $0xf0] sm:$0xff]
        %v2766 = vld [vmem:[%s2744 + $0xf8] sm:$0xff]
        %v2767 = vld [vmem:[%s2744 + $0x108] sm:$0xff]
        %v2768 = vld [vmem:[%s2744 + $0x110] sm:$0xff]
        %v2769 = vld [vmem:[%s2744 + $0x120] sm:$0xff]
        %v2770 = vld [vmem:[%s2744 + $0x128] sm:$0xff]
        %v2771 = vld [vmem:[%s2744 + $0x138] sm:$0xff]
        %v2772 = vld [vmem:[%s2744 + $0x140] sm:$0xff]
        %v2773 = vld [vmem:[%s2744 + $0x150] sm:$0xff]
        %v2774 = vld [vmem:[%s2744 + $0x158] sm:$0xff]
        %v2775 = vld [vmem:[%s2744 + $0x168] sm:$0xff]
        %v2776 = vld [vmem:[%s2744 + $0x170] sm:$0xff]
        %v2777 = vld [vmem:[%s2744 + $0x1] sm:$0xff]
        %v2778 = vld [vmem:[%s2744 + $0x9] sm:$0xff]
        %v2779 = vld [vmem:[%s2744 + $0x19] sm:$0xff]
        %v2780 = vld [vmem:[%s2744 + $0x21] sm:$0xff]
        %v2781 = vld [vmem:[%s2744 + $0x31] sm:$0xff]
        %v2782 = vld [vmem:[%s2744 + $0x39] sm:$0xff]
        %v2783 = vld [vmem:[%s2744 + $0x49] sm:$0xff]
        %v2784 = vld [vmem:[%s2744 + $0x51] sm:$0xff]
        %v2785 = vld [vmem:[%s2744 + $0x61] sm:$0xff]
        %v2786 = vld [vmem:[%s2744 + $0x69] sm:$0xff]
        %v2787 = vld [vmem:[%s2744 + $0x79] sm:$0xff]
        %v2788 = vld [vmem:[%s2744 + $0x81] sm:$0xff]
        %v2789 = vld [vmem:[%s2744 + $0x91] sm:$0xff]
        %v2790 = vld [vmem:[%s2744 + $0x99] sm:$0xff]
        %v2791 = vld [vmem:[%s2744 + $0xa9] sm:$0xff]
        %v2792 = vld [vmem:[%s2744 + $0xb1] sm:$0xff]
        %v2793 = vld [vmem:[%s2744 + $0xc1] sm:$0xff]
        %v2794 = vld [vmem:[%s2744 + $0xc9] sm:$0xff]
        %v2795 = vld [vmem:[%s2744 + $0xd9] sm:$0xff]
        %v2796 = vld [vmem:[%s2744 + $0xe1] sm:$0xff]
        %v2797 = vld [vmem:[%s2744 + $0xf1] sm:$0xff]
        %v2798 = vld [vmem:[%s2744 + $0xf9] sm:$0xff]
        %v2799 = vld [vmem:[%s2744 + $0x109] sm:$0xff]
        %v2800 = vld [vmem:[%s2744 + $0x111] sm:$0xff]
        %v2801 = vld [vmem:[%s2744 + $0x121] sm:$0xff]
        %v2802 = vld [vmem:[%s2744 + $0x129] sm:$0xff]
        %v2803 = vld [vmem:[%s2744 + $0x139] sm:$0xff]
        %v2804 = vld [vmem:[%s2744 + $0x141] sm:$0xff]
        %v2805 = vld [vmem:[%s2744 + $0x151] sm:$0xff]
        %v2806 = vld [vmem:[%s2744 + $0x159] sm:$0xff]
        %v2807 = vld [vmem:[%s2744 + $0x169] sm:$0xff]
        %v2808 = vld [vmem:[%s2744 + $0x171] sm:$0xff]
        %v2809 = vld [vmem:[%s2744 + $0x2] sm:$0xff]
        %v2810 = vld [vmem:[%s2744 + $0xa] sm:$0xff]
        %v2811 = vld [vmem:[%s2744 + $0x1a] sm:$0xff]
        %v2812 = vld [vmem:[%s2744 + $0x22] sm:$0xff]
        %v2813 = vld [vmem:[%s2744 + $0x32] sm:$0xff]
        %v2814 = vld [vmem:[%s2744 + $0x3a] sm:$0xff]
        %v2815 = vld [vmem:[%s2744 + $0x4a] sm:$0xff]
        %v2816 = vld [vmem:[%s2744 + $0x52] sm:$0xff]
        %v2817 = vld [vmem:[%s2744 + $0x62] sm:$0xff]
        %v2818 = vld [vmem:[%s2744 + $0x6a] sm:$0xff]
        %v2819 = vld [vmem:[%s2744 + $0x7a] sm:$0xff]
        %v2820 = vld [vmem:[%s2744 + $0x82] sm:$0xff]
        %v2821 = vld [vmem:[%s2744 + $0x92] sm:$0xff]
        %v2822 = vld [vmem:[%s2744 + $0x9a] sm:$0xff]
        %v2823 = vld [vmem:[%s2744 + $0xaa] sm:$0xff]
        %v2824 = vld [vmem:[%s2744 + $0xb2] sm:$0xff]
        %v2825 = vld [vmem:[%s2744 + $0xc2] sm:$0xff]
        %v2826 = vld [vmem:[%s2744 + $0xca] sm:$0xff]
        %v2827 = vld [vmem:[%s2744 + $0xda] sm:$0xff]
        %v2828 = vld [vmem:[%s2744 + $0xe2] sm:$0xff]
        %v2829 = vld [vmem:[%s2744 + $0xf2] sm:$0xff]
        %v2830 = vld [vmem:[%s2744 + $0xfa] sm:$0xff]
        %v2831 = vld [vmem:[%s2744 + $0x10a] sm:$0xff]
        %v2832 = vld [vmem:[%s2744 + $0x112] sm:$0xff]
        %v2833 = vld [vmem:[%s2744 + $0x122] sm:$0xff]
        %v2834 = vld [vmem:[%s2744 + $0x12a] sm:$0xff]
        %v2835 = vld [vmem:[%s2744 + $0x13a] sm:$0xff]
        %v2836 = vld [vmem:[%s2744 + $0x142] sm:$0xff]
        %v2837 = vld [vmem:[%s2744 + $0x152] sm:$0xff]
        %v2838 = vld [vmem:[%s2744 + $0x15a] sm:$0xff]
        %v2839 = vld [vmem:[%s2744 + $0x16a] sm:$0xff]
        %v2840 = vld [vmem:[%s2744 + $0x172] sm:$0xff]
        %2873 = vrot.lane.b32.xlu0 %v2584, 32
        %v2874 = vpop.permute.xlu0 %2873
        %2875 = vrot.lane.b32.xlu0 %v2585, 32
        %v2876 = vpop.permute.xlu0 %2875
        %2877 = vrot.lane.b32.xlu0 %v2586, 32
        %v2878 = vpop.permute.xlu0 %2877
        %2879 = vrot.lane.b32.xlu0 %v2587, 32
        %v2880 = vpop.permute.xlu0 %2879
        %2881 = vrot.lane.b32.xlu0 %v2588, 32
        %v2882 = vpop.permute.xlu0 %2881
        %2883 = vrot.lane.b32.xlu0 %v2589, 32
        %v2884 = vpop.permute.xlu0 %2883
        %2885 = vrot.lane.b32.xlu0 %v2590, 32
        %v2886 = vpop.permute.xlu0 %2885
        %2887 = vrot.lane.b32.xlu0 %v2591, 32
        %v2888 = vpop.permute.xlu0 %2887
        %2889 = vrot.lane.b32.xlu0 %v2592, 32
        %v2890 = vpop.permute.xlu0 %2889
        %2891 = vrot.lane.b32.xlu0 %v2593, 32
        %v2892 = vpop.permute.xlu0 %2891
        %2893 = vrot.lane.b32.xlu0 %v2594, 32
        %v2894 = vpop.permute.xlu0 %2893
        %2895 = vrot.lane.b32.xlu0 %v2595, 32
        %v2896 = vpop.permute.xlu0 %2895
        %2897 = vrot.lane.b32.xlu0 %v2596, 32
        %v2898 = vpop.permute.xlu0 %2897
        %2899 = vrot.lane.b32.xlu0 %v2597, 32
        %v2900 = vpop.permute.xlu0 %2899
        %2901 = vrot.lane.b32.xlu0 %v2598, 32
        %v2902 = vpop.permute.xlu0 %2901
        %2903 = vrot.lane.b32.xlu0 %v2599, 32
        %v2904 = vpop.permute.xlu0 %2903
        %2905 = vrot.lane.b32.xlu0 %v2600, 32
        %v2906 = vpop.permute.xlu0 %2905
        %2907 = vrot.lane.b32.xlu0 %v2601, 32
        %v2908 = vpop.permute.xlu0 %2907
        %2909 = vrot.lane.b32.xlu0 %v2602, 32
        %v2910 = vpop.permute.xlu0 %2909
        %2911 = vrot.lane.b32.xlu0 %v2603, 32
        %v2912 = vpop.permute.xlu0 %2911
        %2913 = vrot.lane.b32.xlu0 %v2604, 32
        %v2914 = vpop.permute.xlu0 %2913
        %2915 = vrot.lane.b32.xlu0 %v2605, 32
        %v2916 = vpop.permute.xlu0 %2915
        %2917 = vrot.lane.b32.xlu0 %v2606, 32
        %v2918 = vpop.permute.xlu0 %2917
        %2919 = vrot.lane.b32.xlu0 %v2607, 32
        %v2920 = vpop.permute.xlu0 %2919
        %2921 = vrot.lane.b32.xlu0 %v2608, 32
        %v2922 = vpop.permute.xlu0 %2921
        %2923 = vrot.lane.b32.xlu0 %v2609, 32
        %v2924 = vpop.permute.xlu0 %2923
        %2925 = vrot.lane.b32.xlu0 %v2610, 32
        %v2926 = vpop.permute.xlu0 %2925
        %2927 = vrot.lane.b32.xlu0 %v2611, 32
        %v2928 = vpop.permute.xlu0 %2927
        %2929 = vrot.lane.b32.xlu0 %v2612, 32
        %v2930 = vpop.permute.xlu0 %2929
        %2931 = vrot.lane.b32.xlu0 %v2613, 32
        %v2932 = vpop.permute.xlu0 %2931
        %2933 = vrot.lane.b32.xlu0 %v2614, 32
        %v2934 = vpop.permute.xlu0 %2933
        %2935 = vrot.lane.b32.xlu0 %v2615, 32
        %v2936 = vpop.permute.xlu0 %2935
        %3001 = vrot.lane.b32.xlu0 %v2616, 64
        %v3002 = vpop.permute.xlu0 %3001
        %3003 = vrot.lane.b32.xlu0 %v2617, 64
        %v3004 = vpop.permute.xlu0 %3003
        %3005 = vrot.lane.b32.xlu0 %v2618, 64
        %v3006 = vpop.permute.xlu0 %3005
        %3007 = vrot.lane.b32.xlu0 %v2619, 64
        %v3008 = vpop.permute.xlu0 %3007
        %3009 = vrot.lane.b32.xlu0 %v2620, 64
        %v3010 = vpop.permute.xlu0 %3009
        %3011 = vrot.lane.b32.xlu0 %v2621, 64
        %v3012 = vpop.permute.xlu0 %3011
        %3013 = vrot.lane.b32.xlu0 %v2622, 64
        %v3014 = vpop.permute.xlu0 %3013
        %3015 = vrot.lane.b32.xlu0 %v2623, 64
        %v3016 = vpop.permute.xlu0 %3015
        %3017 = vrot.lane.b32.xlu0 %v2624, 64
        %v3018 = vpop.permute.xlu0 %3017
        %3019 = vrot.lane.b32.xlu0 %v2625, 64
        %v3020 = vpop.permute.xlu0 %3019
        %3021 = vrot.lane.b32.xlu0 %v2626, 64
        %v3022 = vpop.permute.xlu0 %3021
        %3023 = vrot.lane.b32.xlu0 %v2627, 64
        %v3024 = vpop.permute.xlu0 %3023
        %3025 = vrot.lane.b32.xlu0 %v2628, 64
        %v3026 = vpop.permute.xlu0 %3025
        %3027 = vrot.lane.b32.xlu0 %v2629, 64
        %v3028 = vpop.permute.xlu0 %3027
        %3029 = vrot.lane.b32.xlu0 %v2630, 64
        %v3030 = vpop.permute.xlu0 %3029
        %3031 = vrot.lane.b32.xlu0 %v2631, 64
        %v3032 = vpop.permute.xlu0 %3031
        %3033 = vrot.lane.b32.xlu0 %v2632, 64
        %v3034 = vpop.permute.xlu0 %3033
        %3035 = vrot.lane.b32.xlu0 %v2633, 64
        %v3036 = vpop.permute.xlu0 %3035
        %3037 = vrot.lane.b32.xlu0 %v2634, 64
        %v3038 = vpop.permute.xlu0 %3037
        %3039 = vrot.lane.b32.xlu0 %v2635, 64
        %v3040 = vpop.permute.xlu0 %3039
        %3041 = vrot.lane.b32.xlu0 %v2636, 64
        %v3042 = vpop.permute.xlu0 %3041
        %3043 = vrot.lane.b32.xlu0 %v2637, 64
        %v3044 = vpop.permute.xlu0 %3043
        %3045 = vrot.lane.b32.xlu0 %v2638, 64
        %v3046 = vpop.permute.xlu0 %3045
        %3047 = vrot.lane.b32.xlu0 %v2639, 64
        %v3048 = vpop.permute.xlu0 %3047
        %3049 = vrot.lane.b32.xlu0 %v2640, 64
        %v3050 = vpop.permute.xlu0 %3049
        %3051 = vrot.lane.b32.xlu0 %v2641, 64
        %v3052 = vpop.permute.xlu0 %3051
        %3053 = vrot.lane.b32.xlu0 %v2642, 64
        %v3054 = vpop.permute.xlu0 %3053
        %3055 = vrot.lane.b32.xlu0 %v2643, 64
        %v3056 = vpop.permute.xlu0 %3055
        %3057 = vrot.lane.b32.xlu0 %v2644, 64
        %v3058 = vpop.permute.xlu0 %3057
        %3059 = vrot.lane.b32.xlu0 %v2645, 64
        %v3060 = vpop.permute.xlu0 %3059
        %3061 = vrot.lane.b32.xlu0 %v2646, 64
        %v3062 = vpop.permute.xlu0 %3061
        %3063 = vrot.lane.b32.xlu0 %v2647, 64
        %v3064 = vpop.permute.xlu0 %3063
        %3129 = vrot.lane.b32.xlu0 %v2648, 96
        %v3130 = vpop.permute.xlu0 %3129
        %3131 = vrot.lane.b32.xlu0 %v2649, 96
        %v3132 = vpop.permute.xlu0 %3131
        %3133 = vrot.lane.b32.xlu0 %v2650, 96
        %v3134 = vpop.permute.xlu0 %3133
        %3135 = vrot.lane.b32.xlu0 %v2651, 96
        %v3136 = vpop.permute.xlu0 %3135
        %3137 = vrot.lane.b32.xlu0 %v2652, 96
        %v3138 = vpop.permute.xlu0 %3137
        %3139 = vrot.lane.b32.xlu0 %v2653, 96
        %v3140 = vpop.permute.xlu0 %3139
        %3141 = vrot.lane.b32.xlu0 %v2654, 96
        %v3142 = vpop.permute.xlu0 %3141
        %3143 = vrot.lane.b32.xlu0 %v2655, 96
        %v3144 = vpop.permute.xlu0 %3143
        %3145 = vrot.lane.b32.xlu0 %v2656, 96
        %v3146 = vpop.permute.xlu0 %3145
        %3147 = vrot.lane.b32.xlu0 %v2657, 96
        %v3148 = vpop.permute.xlu0 %3147
        %3149 = vrot.lane.b32.xlu0 %v2658, 96
        %v3150 = vpop.permute.xlu0 %3149
        %3151 = vrot.lane.b32.xlu0 %v2659, 96
        %v3152 = vpop.permute.xlu0 %3151
        %3153 = vrot.lane.b32.xlu0 %v2660, 96
        %v3154 = vpop.permute.xlu0 %3153
        %3155 = vrot.lane.b32.xlu0 %v2661, 96
        %v3156 = vpop.permute.xlu0 %3155
        %3157 = vrot.lane.b32.xlu0 %v2662, 96
        %v3158 = vpop.permute.xlu0 %3157
        %3159 = vrot.lane.b32.xlu0 %v2663, 96
        %v3160 = vpop.permute.xlu0 %3159
        %3161 = vrot.lane.b32.xlu0 %v2664, 96
        %v3162 = vpop.permute.xlu0 %3161
        %3163 = vrot.lane.b32.xlu0 %v2665, 96
        %v3164 = vpop.permute.xlu0 %3163
        %3165 = vrot.lane.b32.xlu0 %v2666, 96
        %v3166 = vpop.permute.xlu0 %3165
        %3167 = vrot.lane.b32.xlu0 %v2667, 96
        %v3168 = vpop.permute.xlu0 %3167
        %3169 = vrot.lane.b32.xlu0 %v2668, 96
        %v3170 = vpop.permute.xlu0 %3169
        %3171 = vrot.lane.b32.xlu0 %v2669, 96
        %v3172 = vpop.permute.xlu0 %3171
        %3173 = vrot.lane.b32.xlu0 %v2670, 96
        %v3174 = vpop.permute.xlu0 %3173
        %3175 = vrot.lane.b32.xlu0 %v2671, 96
        %v3176 = vpop.permute.xlu0 %3175
        %3177 = vrot.lane.b32.xlu0 %v2672, 96
        %v3178 = vpop.permute.xlu0 %3177
        %3179 = vrot.lane.b32.xlu0 %v2673, 96
        %v3180 = vpop.permute.xlu0 %3179
        %3181 = vrot.lane.b32.xlu0 %v2674, 96
        %v3182 = vpop.permute.xlu0 %3181
        %3183 = vrot.lane.b32.xlu0 %v2675, 96
        %v3184 = vpop.permute.xlu0 %3183
        %3185 = vrot.lane.b32.xlu0 %v2676, 96
        %v3186 = vpop.permute.xlu0 %3185
        %3187 = vrot.lane.b32.xlu0 %v2677, 96
        %v3188 = vpop.permute.xlu0 %3187
        %3189 = vrot.lane.b32.xlu0 %v2678, 96
        %v3190 = vpop.permute.xlu0 %3189
        %3191 = vrot.lane.b32.xlu0 %v2679, 96
        %v3192 = vpop.permute.xlu0 %3191
        %3257 = vrot.lane.b32.xlu0 %v2712, 32
        %v3258 = vpop.permute.xlu0 %3257
        %3259 = vrot.lane.b32.xlu0 %v2713, 32
        %v3260 = vpop.permute.xlu0 %3259
        %3261 = vrot.lane.b32.xlu0 %v2714, 32
        %v3262 = vpop.permute.xlu0 %3261
        %3263 = vrot.lane.b32.xlu0 %v2715, 32
        %v3264 = vpop.permute.xlu0 %3263
        %3265 = vrot.lane.b32.xlu0 %v2716, 32
        %v3266 = vpop.permute.xlu0 %3265
        %3267 = vrot.lane.b32.xlu0 %v2717, 32
        %v3268 = vpop.permute.xlu0 %3267
        %3269 = vrot.lane.b32.xlu0 %v2718, 32
        %v3270 = vpop.permute.xlu0 %3269
        %3271 = vrot.lane.b32.xlu0 %v2719, 32
        %v3272 = vpop.permute.xlu0 %3271
        %3273 = vrot.lane.b32.xlu0 %v2720, 32
        %v3274 = vpop.permute.xlu0 %3273
        %3275 = vrot.lane.b32.xlu0 %v2721, 32
        %v3276 = vpop.permute.xlu0 %3275
        %3277 = vrot.lane.b32.xlu0 %v2722, 32
        %v3278 = vpop.permute.xlu0 %3277
        %3279 = vrot.lane.b32.xlu0 %v2723, 32
        %v3280 = vpop.permute.xlu0 %3279
        %3281 = vrot.lane.b32.xlu0 %v2724, 32
        %v3282 = vpop.permute.xlu0 %3281
        %3283 = vrot.lane.b32.xlu0 %v2725, 32
        %v3284 = vpop.permute.xlu0 %3283
        %3285 = vrot.lane.b32.xlu0 %v2726, 32
        %v3286 = vpop.permute.xlu0 %3285
        %3287 = vrot.lane.b32.xlu0 %v2727, 32
        %v3288 = vpop.permute.xlu0 %3287
        %3289 = vrot.lane.b32.xlu0 %v2728, 32
        %v3290 = vpop.permute.xlu0 %3289
        %3291 = vrot.lane.b32.xlu0 %v2729, 32
        %v3292 = vpop.permute.xlu0 %3291
        %3293 = vrot.lane.b32.xlu0 %v2730, 32
        %v3294 = vpop.permute.xlu0 %3293
        %3295 = vrot.lane.b32.xlu0 %v2731, 32
        %v3296 = vpop.permute.xlu0 %3295
        %3297 = vrot.lane.b32.xlu0 %v2732, 32
        %v3298 = vpop.permute.xlu0 %3297
        %3299 = vrot.lane.b32.xlu0 %v2733, 32
        %v3300 = vpop.permute.xlu0 %3299
        %3301 = vrot.lane.b32.xlu0 %v2734, 32
        %v3302 = vpop.permute.xlu0 %3301
        %3303 = vrot.lane.b32.xlu0 %v2735, 32
        %v3304 = vpop.permute.xlu0 %3303
        %3305 = vrot.lane.b32.xlu0 %v2736, 32
        %v3306 = vpop.permute.xlu0 %3305
        %3307 = vrot.lane.b32.xlu0 %v2737, 32
        %v3308 = vpop.permute.xlu0 %3307
        %3309 = vrot.lane.b32.xlu0 %v2738, 32
        %v3310 = vpop.permute.xlu0 %3309
        %3311 = vrot.lane.b32.xlu0 %v2739, 32
        %v3312 = vpop.permute.xlu0 %3311
        %3313 = vrot.lane.b32.xlu0 %v2740, 32
        %v3314 = vpop.permute.xlu0 %3313
        %3315 = vrot.lane.b32.xlu0 %v2741, 32
        %v3316 = vpop.permute.xlu0 %3315
        %3317 = vrot.lane.b32.xlu0 %v2742, 32
        %v3318 = vpop.permute.xlu0 %3317
        %3319 = vrot.lane.b32.xlu0 %v2743, 32
        %v3320 = vpop.permute.xlu0 %3319
        %3385 = vrot.lane.b32.xlu0 %v2745, 64
        %v3386 = vpop.permute.xlu0 %3385
        %3387 = vrot.lane.b32.xlu0 %v2746, 64
        %v3388 = vpop.permute.xlu0 %3387
        %3389 = vrot.lane.b32.xlu0 %v2747, 64
        %v3390 = vpop.permute.xlu0 %3389
        %3391 = vrot.lane.b32.xlu0 %v2748, 64
        %v3392 = vpop.permute.xlu0 %3391
        %3393 = vrot.lane.b32.xlu0 %v2749, 64
        %v3394 = vpop.permute.xlu0 %3393
        %3395 = vrot.lane.b32.xlu0 %v2750, 64
        %v3396 = vpop.permute.xlu0 %3395
        %3397 = vrot.lane.b32.xlu0 %v2751, 64
        %v3398 = vpop.permute.xlu0 %3397
        %3399 = vrot.lane.b32.xlu0 %v2752, 64
        %v3400 = vpop.permute.xlu0 %3399
        %3401 = vrot.lane.b32.xlu0 %v2753, 64
        %v3402 = vpop.permute.xlu0 %3401
        %3403 = vrot.lane.b32.xlu0 %v2754, 64
        %v3404 = vpop.permute.xlu0 %3403
        %3405 = vrot.lane.b32.xlu0 %v2755, 64
        %v3406 = vpop.permute.xlu0 %3405
        %3407 = vrot.lane.b32.xlu0 %v2756, 64
        %v3408 = vpop.permute.xlu0 %3407
        %3409 = vrot.lane.b32.xlu0 %v2757, 64
        %v3410 = vpop.permute.xlu0 %3409
        %3411 = vrot.lane.b32.xlu0 %v2758, 64
        %v3412 = vpop.permute.xlu0 %3411
        %3413 = vrot.lane.b32.xlu0 %v2759, 64
        %v3414 = vpop.permute.xlu0 %3413
        %3415 = vrot.lane.b32.xlu0 %v2760, 64
        %v3416 = vpop.permute.xlu0 %3415
        %3417 = vrot.lane.b32.xlu0 %v2761, 64
        %v3418 = vpop.permute.xlu0 %3417
        %3419 = vrot.lane.b32.xlu0 %v2762, 64
        %v3420 = vpop.permute.xlu0 %3419
        %3421 = vrot.lane.b32.xlu0 %v2763, 64
        %v3422 = vpop.permute.xlu0 %3421
        %3423 = vrot.lane.b32.xlu0 %v2764, 64
        %v3424 = vpop.permute.xlu0 %3423
        %3425 = vrot.lane.b32.xlu0 %v2765, 64
        %v3426 = vpop.permute.xlu0 %3425
        %3427 = vrot.lane.b32.xlu0 %v2766, 64
        %v3428 = vpop.permute.xlu0 %3427
        %3429 = vrot.lane.b32.xlu0 %v2767, 64
        %v3430 = vpop.permute.xlu0 %3429
        %3431 = vrot.lane.b32.xlu0 %v2768, 64
        %v3432 = vpop.permute.xlu0 %3431
        %3433 = vrot.lane.b32.xlu0 %v2769, 64
        %v3434 = vpop.permute.xlu0 %3433
        %3435 = vrot.lane.b32.xlu0 %v2770, 64
        %v3436 = vpop.permute.xlu0 %3435
        %3437 = vrot.lane.b32.xlu0 %v2771, 64
        %v3438 = vpop.permute.xlu0 %3437
        %3439 = vrot.lane.b32.xlu0 %v2772, 64
        %v3440 = vpop.permute.xlu0 %3439
        %3441 = vrot.lane.b32.xlu0 %v2773, 64
        %v3442 = vpop.permute.xlu0 %3441
        %3443 = vrot.lane.b32.xlu0 %v2774, 64
        %v3444 = vpop.permute.xlu0 %3443
        %3445 = vrot.lane.b32.xlu0 %v2775, 64
        %v3446 = vpop.permute.xlu0 %3445
        %3447 = vrot.lane.b32.xlu0 %v2776, 64
        %v3448 = vpop.permute.xlu0 %3447
        %3513 = vrot.lane.b32.xlu0 %v2777, 96
        %v3514 = vpop.permute.xlu0 %3513
        %3515 = vrot.lane.b32.xlu0 %v2778, 96
        %v3516 = vpop.permute.xlu0 %3515
        %3517 = vrot.lane.b32.xlu0 %v2779, 96
        %v3518 = vpop.permute.xlu0 %3517
        %3519 = vrot.lane.b32.xlu0 %v2780, 96
        %v3520 = vpop.permute.xlu0 %3519
        %3521 = vrot.lane.b32.xlu0 %v2781, 96
        %v3522 = vpop.permute.xlu0 %3521
        %3523 = vrot.lane.b32.xlu0 %v2782, 96
        %v3524 = vpop.permute.xlu0 %3523
        %3525 = vrot.lane.b32.xlu0 %v2783, 96
        %v3526 = vpop.permute.xlu0 %3525
        %3527 = vrot.lane.b32.xlu0 %v2784, 96
        %v3528 = vpop.permute.xlu0 %3527
        %3529 = vrot.lane.b32.xlu0 %v2785, 96
        %v3530 = vpop.permute.xlu0 %3529
        %3531 = vrot.lane.b32.xlu0 %v2786, 96
        %v3532 = vpop.permute.xlu0 %3531
        %3533 = vrot.lane.b32.xlu0 %v2787, 96
        %v3534 = vpop.permute.xlu0 %3533
        %3535 = vrot.lane.b32.xlu0 %v2788, 96
        %v3536 = vpop.permute.xlu0 %3535
        %3537 = vrot.lane.b32.xlu0 %v2789, 96
        %v3538 = vpop.permute.xlu0 %3537
        %3539 = vrot.lane.b32.xlu0 %v2790, 96
        %v3540 = vpop.permute.xlu0 %3539
        %3541 = vrot.lane.b32.xlu0 %v2791, 96
        %v3542 = vpop.permute.xlu0 %3541
        %3543 = vrot.lane.b32.xlu0 %v2792, 96
        %v3544 = vpop.permute.xlu0 %3543
        %3545 = vrot.lane.b32.xlu0 %v2793, 96
        %v3546 = vpop.permute.xlu0 %3545
        %3547 = vrot.lane.b32.xlu0 %v2794, 96
        %v3548 = vpop.permute.xlu0 %3547
        %3549 = vrot.lane.b32.xlu0 %v2795, 96
        %v3550 = vpop.permute.xlu0 %3549
        %3551 = vrot.lane.b32.xlu0 %v2796, 96
        %v3552 = vpop.permute.xlu0 %3551
        %3553 = vrot.lane.b32.xlu0 %v2797, 96
        %v3554 = vpop.permute.xlu0 %3553
        %3555 = vrot.lane.b32.xlu0 %v2798, 96
        %v3556 = vpop.permute.xlu0 %3555
        %3557 = vrot.lane.b32.xlu0 %v2799, 96
        %v3558 = vpop.permute.xlu0 %3557
        %3559 = vrot.lane.b32.xlu0 %v2800, 96
        %v3560 = vpop.permute.xlu0 %3559
        %3561 = vrot.lane.b32.xlu0 %v2801, 96
        %v3562 = vpop.permute.xlu0 %3561
        %3563 = vrot.lane.b32.xlu0 %v2802, 96
        %v3564 = vpop.permute.xlu0 %3563
        %3565 = vrot.lane.b32.xlu0 %v2803, 96
        %v3566 = vpop.permute.xlu0 %3565
        %3567 = vrot.lane.b32.xlu0 %v2804, 96
        %v3568 = vpop.permute.xlu0 %3567
        %3569 = vrot.lane.b32.xlu0 %v2805, 96
        %v3570 = vpop.permute.xlu0 %3569
        %3571 = vrot.lane.b32.xlu0 %v2806, 96
        %v3572 = vpop.permute.xlu0 %3571
        %3573 = vrot.lane.b32.xlu0 %v2807, 96
        %v3574 = vpop.permute.xlu0 %3573
        %3575 = vrot.lane.b32.xlu0 %v2808, 96
        %v3576 = vpop.permute.xlu0 %3575
        %v3609 = vsel %vm1836, %v2552, %v2874
        %v3610 = vsel %vm1836, %v2553, %v2876
        %v3611 = vsel %vm1836, %v2554, %v2878
        %v3612 = vsel %vm1836, %v2555, %v2880
        %v3613 = vsel %vm1836, %v2556, %v2882
        %v3614 = vsel %vm1836, %v2557, %v2884
        %v3615 = vsel %vm1836, %v2558, %v2886
        %v3616 = vsel %vm1836, %v2559, %v2888
        %v3617 = vsel %vm1836, %v2560, %v2890
        %v3618 = vsel %vm1836, %v2561, %v2892
        %v3619 = vsel %vm1836, %v2562, %v2894
        %v3620 = vsel %vm1836, %v2563, %v2896
        %v3621 = vsel %vm1836, %v2564, %v2898
        %v3622 = vsel %vm1836, %v2565, %v2900
        %v3623 = vsel %vm1836, %v2566, %v2902
        %v3624 = vsel %vm1836, %v2567, %v2904
        %v3625 = vsel %vm1836, %v2568, %v2906
        %v3626 = vsel %vm1836, %v2569, %v2908
        %v3627 = vsel %vm1836, %v2570, %v2910
        %v3628 = vsel %vm1836, %v2571, %v2912
        %v3629 = vsel %vm1836, %v2572, %v2914
        %v3630 = vsel %vm1836, %v2573, %v2916
        %v3631 = vsel %vm1836, %v2574, %v2918
        %v3632 = vsel %vm1836, %v2575, %v2920
        %v3633 = vsel %vm1836, %v2576, %v2922
        %v3634 = vsel %vm1836, %v2577, %v2924
        %v3635 = vsel %vm1836, %v2578, %v2926
        %v3636 = vsel %vm1836, %v2579, %v2928
        %v3637 = vsel %vm1836, %v2580, %v2930
        %v3638 = vsel %vm1836, %v2581, %v2932
        %v3639 = vsel %vm1836, %v2582, %v2934
        %v3640 = vsel %vm1836, %v2583, %v2936
        %v3641 = vsel %vm1902, %v3609, %v3002
        %v3642 = vsel %vm1902, %v3610, %v3004
        %v3643 = vsel %vm1902, %v3611, %v3006
        %v3644 = vsel %vm1902, %v3612, %v3008
        %v3645 = vsel %vm1902, %v3613, %v3010
        %v3646 = vsel %vm1902, %v3614, %v3012
        %v3647 = vsel %vm1902, %v3615, %v3014
        %v3648 = vsel %vm1902, %v3616, %v3016
        %v3649 = vsel %vm1902, %v3617, %v3018
        %v3650 = vsel %vm1902, %v3618, %v3020
        %v3651 = vsel %vm1902, %v3619, %v3022
        %v3652 = vsel %vm1902, %v3620, %v3024
        %v3653 = vsel %vm1902, %v3621, %v3026
        %v3654 = vsel %vm1902, %v3622, %v3028
        %v3655 = vsel %vm1902, %v3623, %v3030
        %v3656 = vsel %vm1902, %v3624, %v3032
        %v3657 = vsel %vm1902, %v3625, %v3034
        %v3658 = vsel %vm1902, %v3626, %v3036
        %v3659 = vsel %vm1902, %v3627, %v3038
        %v3660 = vsel %vm1902, %v3628, %v3040
        %v3661 = vsel %vm1902, %v3629, %v3042
        %v3662 = vsel %vm1902, %v3630, %v3044
        %v3663 = vsel %vm1902, %v3631, %v3046
        %v3664 = vsel %vm1902, %v3632, %v3048
        %v3665 = vsel %vm1902, %v3633, %v3050
        %v3666 = vsel %vm1902, %v3634, %v3052
        %v3667 = vsel %vm1902, %v3635, %v3054
        %v3668 = vsel %vm1902, %v3636, %v3056
        %v3669 = vsel %vm1902, %v3637, %v3058
        %v3670 = vsel %vm1902, %v3638, %v3060
        %v3671 = vsel %vm1902, %v3639, %v3062
        %v3672 = vsel %vm1902, %v3640, %v3064
        %v3673 = vsel %vm1968, %v3641, %v3130
        %v3674 = vsel %vm1968, %v3642, %v3132
        %v3675 = vsel %vm1968, %v3643, %v3134
        %v3676 = vsel %vm1968, %v3644, %v3136
        %v3677 = vsel %vm1968, %v3645, %v3138
        %v3678 = vsel %vm1968, %v3646, %v3140
        %v3679 = vsel %vm1968, %v3647, %v3142
        %v3680 = vsel %vm1968, %v3648, %v3144
        %v3681 = vsel %vm1968, %v3649, %v3146
        %v3682 = vsel %vm1968, %v3650, %v3148
        %v3683 = vsel %vm1968, %v3651, %v3150
        %v3684 = vsel %vm1968, %v3652, %v3152
        %v3685 = vsel %vm1968, %v3653, %v3154
        %v3686 = vsel %vm1968, %v3654, %v3156
        %v3687 = vsel %vm1968, %v3655, %v3158
        %v3688 = vsel %vm1968, %v3656, %v3160
        %v3689 = vsel %vm1968, %v3657, %v3162
        %v3690 = vsel %vm1968, %v3658, %v3164
        %v3691 = vsel %vm1968, %v3659, %v3166
        %v3692 = vsel %vm1968, %v3660, %v3168
        %v3693 = vsel %vm1968, %v3661, %v3170
        %v3694 = vsel %vm1968, %v3662, %v3172
        %v3695 = vsel %vm1968, %v3663, %v3174
        %v3696 = vsel %vm1968, %v3664, %v3176
        %v3697 = vsel %vm1968, %v3665, %v3178
        %v3698 = vsel %vm1968, %v3666, %v3180
        %v3699 = vsel %vm1968, %v3667, %v3182
        %v3700 = vsel %vm1968, %v3668, %v3184
        %v3701 = vsel %vm1968, %v3669, %v3186
        %v3702 = vsel %vm1968, %v3670, %v3188
        %v3703 = vsel %vm1968, %v3671, %v3190
        %v3704 = vsel %vm1968, %v3672, %v3192
        %v3705 = vsel %vm1836, %v2680, %v3258
        %v3706 = vsel %vm1836, %v2681, %v3260
        %v3707 = vsel %vm1836, %v2682, %v3262
        %v3708 = vsel %vm1836, %v2683, %v3264
        %v3709 = vsel %vm1836, %v2684, %v3266
        %v3710 = vsel %vm1836, %v2685, %v3268
        %v3711 = vsel %vm1836, %v2686, %v3270
        %v3712 = vsel %vm1836, %v2687, %v3272
        %v3713 = vsel %vm1836, %v2688, %v3274
        %v3714 = vsel %vm1836, %v2689, %v3276
        %v3715 = vsel %vm1836, %v2690, %v3278
        %v3716 = vsel %vm1836, %v2691, %v3280
        %v3717 = vsel %vm1836, %v2692, %v3282
        %v3718 = vsel %vm1836, %v2693, %v3284
        %v3719 = vsel %vm1836, %v2694, %v3286
        %v3720 = vsel %vm1836, %v2695, %v3288
        %v3721 = vsel %vm1836, %v2696, %v3290
        %v3722 = vsel %vm1836, %v2697, %v3292
        %v3723 = vsel %vm1836, %v2698, %v3294
        %v3724 = vsel %vm1836, %v2699, %v3296
        %v3725 = vsel %vm1836, %v2700, %v3298
        %v3726 = vsel %vm1836, %v2701, %v3300
        %v3727 = vsel %vm1836, %v2702, %v3302
        %v3728 = vsel %vm1836, %v2703, %v3304
        %v3729 = vsel %vm1836, %v2704, %v3306
        %v3730 = vsel %vm1836, %v2705, %v3308
        %v3731 = vsel %vm1836, %v2706, %v3310
        %v3732 = vsel %vm1836, %v2707, %v3312
        %v3733 = vsel %vm1836, %v2708, %v3314
        %v3734 = vsel %vm1836, %v2709, %v3316
        %v3735 = vsel %vm1836, %v2710, %v3318
        %v3736 = vsel %vm1836, %v2711, %v3320
        %v3737 = vsel %vm1902, %v3705, %v3386
        %v3738 = vsel %vm1902, %v3706, %v3388
        %v3739 = vsel %vm1902, %v3707, %v3390
        %v3740 = vsel %vm1902, %v3708, %v3392
        %v3741 = vsel %vm1902, %v3709, %v3394
        %v3742 = vsel %vm1902, %v3710, %v3396
        %v3743 = vsel %vm1902, %v3711, %v3398
        %v3744 = vsel %vm1902, %v3712, %v3400
        %v3745 = vsel %vm1902, %v3713, %v3402
        %v3746 = vsel %vm1902, %v3714, %v3404
        %v3747 = vsel %vm1902, %v3715, %v3406
        %v3748 = vsel %vm1902, %v3716, %v3408
        %v3749 = vsel %vm1902, %v3717, %v3410
        %v3750 = vsel %vm1902, %v3718, %v3412
        %v3751 = vsel %vm1902, %v3719, %v3414
        %v3752 = vsel %vm1902, %v3720, %v3416
        %v3753 = vsel %vm1902, %v3721, %v3418
        %v3754 = vsel %vm1902, %v3722, %v3420
        %v3755 = vsel %vm1902, %v3723, %v3422
        %v3756 = vsel %vm1902, %v3724, %v3424
        %v3757 = vsel %vm1902, %v3725, %v3426
        %v3758 = vsel %vm1902, %v3726, %v3428
        %v3759 = vsel %vm1902, %v3727, %v3430
        %v3760 = vsel %vm1902, %v3728, %v3432
        %v3761 = vsel %vm1902, %v3729, %v3434
        %v3762 = vsel %vm1902, %v3730, %v3436
        %v3763 = vsel %vm1902, %v3731, %v3438
        %v3764 = vsel %vm1902, %v3732, %v3440
        %v3765 = vsel %vm1902, %v3733, %v3442
        %v3766 = vsel %vm1902, %v3734, %v3444
        %v3767 = vsel %vm1902, %v3735, %v3446
        %v3768 = vsel %vm1902, %v3736, %v3448
        %v3769 = vsel %vm1968, %v3737, %v3514
        %v3770 = vsel %vm1968, %v3738, %v3516
        %v3771 = vsel %vm1968, %v3739, %v3518
        %v3772 = vsel %vm1968, %v3740, %v3520
        %v3773 = vsel %vm1968, %v3741, %v3522
        %v3774 = vsel %vm1968, %v3742, %v3524
        %v3775 = vsel %vm1968, %v3743, %v3526
        %v3776 = vsel %vm1968, %v3744, %v3528
        %v3777 = vsel %vm1968, %v3745, %v3530
        %v3778 = vsel %vm1968, %v3746, %v3532
        %v3779 = vsel %vm1968, %v3747, %v3534
        %v3780 = vsel %vm1968, %v3748, %v3536
        %v3781 = vsel %vm1968, %v3749, %v3538
        %v3782 = vsel %vm1968, %v3750, %v3540
        %v3783 = vsel %vm1968, %v3751, %v3542
        %v3784 = vsel %vm1968, %v3752, %v3544
        %v3785 = vsel %vm1968, %v3753, %v3546
        %v3786 = vsel %vm1968, %v3754, %v3548
        %v3787 = vsel %vm1968, %v3755, %v3550
        %v3788 = vsel %vm1968, %v3756, %v3552
        %v3789 = vsel %vm1968, %v3757, %v3554
        %v3790 = vsel %vm1968, %v3758, %v3556
        %v3791 = vsel %vm1968, %v3759, %v3558
        %v3792 = vsel %vm1968, %v3760, %v3560
        %v3793 = vsel %vm1968, %v3761, %v3562
        %v3794 = vsel %vm1968, %v3762, %v3564
        %v3795 = vsel %vm1968, %v3763, %v3566
        %v3796 = vsel %vm1968, %v3764, %v3568
        %v3797 = vsel %vm1968, %v3765, %v3570
        %v3798 = vsel %vm1968, %v3766, %v3572
        %v3799 = vsel %vm1968, %v3767, %v3574
        %v3800 = vsel %vm1968, %v3768, %v3576
        %v3801 = vld [vmem:[%s5] sm:$0xff]
        %v3802 = vld [vmem:[%s5 + $0x8] sm:$0xff]
        %v3803 = vld [vmem:[%s5 + $0x10] sm:$0xff]
        %v3804 = vld [vmem:[%s5 + $0x18] sm:$0xff]
        %v3805 = vld [vmem:[%s5 + $0x20] sm:$0xff]
        %v3806 = vld [vmem:[%s5 + $0x28] sm:$0xff]
        %v3807 = vld [vmem:[%s5 + $0x30] sm:$0xff]
        %v3808 = vld [vmem:[%s5 + $0x38] sm:$0xff]
        %v3809 = vld [vmem:[%s5 + $0x40] sm:$0xff]
        %v3810 = vld [vmem:[%s5 + $0x48] sm:$0xff]
        %v3811 = vld [vmem:[%s5 + $0x50] sm:$0xff]
        %v3812 = vld [vmem:[%s5 + $0x58] sm:$0xff]
        %v3813 = vld [vmem:[%s5 + $0x60] sm:$0xff]
        %v3814 = vld [vmem:[%s5 + $0x68] sm:$0xff]
        %v3815 = vld [vmem:[%s5 + $0x70] sm:$0xff]
        %v3816 = vld [vmem:[%s5 + $0x78] sm:$0xff]
        %v3817 = vld [vmem:[%s5 + $0x80] sm:$0xff]
        %v3818 = vld [vmem:[%s5 + $0x88] sm:$0xff]
        %v3819 = vld [vmem:[%s5 + $0x90] sm:$0xff]
        %v3820 = vld [vmem:[%s5 + $0x98] sm:$0xff]
        %v3821 = vld [vmem:[%s5 + $0xa0] sm:$0xff]
        %v3822 = vld [vmem:[%s5 + $0xa8] sm:$0xff]
        %v3823 = vld [vmem:[%s5 + $0xb0] sm:$0xff]
        %v3824 = vld [vmem:[%s5 + $0xb8] sm:$0xff]
        %v3825 = vld [vmem:[%s5 + $0xc0] sm:$0xff]
        %v3826 = vld [vmem:[%s5 + $0xc8] sm:$0xff]
        %v3827 = vld [vmem:[%s5 + $0xd0] sm:$0xff]
        %v3828 = vld [vmem:[%s5 + $0xd8] sm:$0xff]
        %v3829 = vld [vmem:[%s5 + $0xe0] sm:$0xff]
        %v3830 = vld [vmem:[%s5 + $0xe8] sm:$0xff]
        %v3831 = vld [vmem:[%s5 + $0xf0] sm:$0xff]
        %v3832 = vld [vmem:[%s5 + $0xf8] sm:$0xff]
        %v3833 = vld [vmem:[%s5 + $0x100] sm:$0xff]
        %v3834 = vld [vmem:[%s5 + $0x108] sm:$0xff]
        %v3835 = vld [vmem:[%s5 + $0x110] sm:$0xff]
        %v3836 = vld [vmem:[%s5 + $0x118] sm:$0xff]
        %v3838 = vsel %vm1836, %v2809, 0
        %v3841 = vsel %vm1836, %v2810, 0
        %v3844 = vsel %vm1836, %v2811, 0
        %v3847 = vsel %vm1836, %v2812, 0
        %v3850 = vsel %vm1836, %v2813, 0
        %v3853 = vsel %vm1836, %v2814, 0
        %v3856 = vsel %vm1836, %v2815, 0
        %v3859 = vsel %vm1836, %v2816, 0
        %v3862 = vsel %vm1836, %v2817, 0
        %v3865 = vsel %vm1836, %v2818, 0
        %v3868 = vsel %vm1836, %v2819, 0
        %v3871 = vsel %vm1836, %v2820, 0
        %v3874 = vsel %vm1836, %v2821, 0
        %v3877 = vsel %vm1836, %v2822, 0
        %v3880 = vsel %vm1836, %v2823, 0
        %v3883 = vsel %vm1836, %v2824, 0
        %v3886 = vsel %vm1836, %v2825, 0
        %v3889 = vsel %vm1836, %v2826, 0
        %v3892 = vsel %vm1836, %v2827, 0
        %v3895 = vsel %vm1836, %v2828, 0
        %v3898 = vsel %vm1836, %v2829, 0
        %v3901 = vsel %vm1836, %v2830, 0
        %v3904 = vsel %vm1836, %v2831, 0
        %v3907 = vsel %vm1836, %v2832, 0
        %v3910 = vsel %vm1836, %v2833, 0
        %v3913 = vsel %vm1836, %v2834, 0
        %v3916 = vsel %vm1836, %v2835, 0
        %v3919 = vsel %vm1836, %v2836, 0
        %v3922 = vsel %vm1836, %v2837, 0
        %v3925 = vsel %vm1836, %v2838, 0
        %v3928 = vsel %vm1836, %v2839, 0
        %v3931 = vsel %vm1836, %v2840, 0
        %3933 = vmatpush.msra.mxu0 %v3816
        %3934 = vmatpush.msra.mxu0 %v3815
        %3935 = vmatpush.msra.mxu0 %v3814
        %3936 = vmatpush.msra.mxu0 %v3813
        %3937 = vmatpush.msra.mxu0 %v3812
        %3938 = vmatpush.msra.mxu0 %v3811
        %3939 = vmatpush.msra.mxu0 %v3810
        %3940 = vmatpush.msra.mxu0 %v3809
        %3941 = vmatpush.msra.mxu0 %v3808
        %3942 = vmatpush.msra.mxu0 %v3807
        %3943 = vmatpush.msra.mxu0 %v3806
        %3944 = vmatpush.msra.mxu0 %v3805
        %3945 = vmatpush.msra.mxu0 %v3804
        %3946 = vmatpush.msra.mxu0 %v3803
        %3947 = vmatpush.msra.mxu0 %v3802
        %3948 = vmatpush.msra.mxu0 %v3801
        %3949 = vmatmul.f32.gmra.mxu0 %v3673
        %v3950 = vpop.f32.mrf.mxu0
        %v3951 = vadd.f32 0.0, %v3950
        %3952 = vmatmul.f32.gmra.mxu0 %v3674
        %v3953 = vpop.f32.mrf.mxu0
        %v3954 = vadd.f32 0.0, %v3953
        %3955 = vmatmul.f32.gmra.mxu0 %v3675
        %v3956 = vpop.f32.mrf.mxu0
        %v3957 = vadd.f32 0.0, %v3956
        %3958 = vmatmul.f32.gmra.mxu0 %v3676
        %v3959 = vpop.f32.mrf.mxu0
        %v3960 = vadd.f32 0.0, %v3959
        %3961 = vmatmul.f32.gmra.mxu0 %v3677
        %v3962 = vpop.f32.mrf.mxu0
        %v3963 = vadd.f32 0.0, %v3962
        %3964 = vmatmul.f32.gmra.mxu0 %v3678
        %v3965 = vpop.f32.mrf.mxu0
        %v3966 = vadd.f32 0.0, %v3965
        %3967 = vmatmul.f32.gmra.mxu0 %v3679
        %v3968 = vpop.f32.mrf.mxu0
        %v3969 = vadd.f32 0.0, %v3968
        %3970 = vmatmul.f32.gmra.mxu0 %v3680
        %v3971 = vpop.f32.mrf.mxu0
        %v3972 = vadd.f32 0.0, %v3971
        %3973 = vmatmul.f32.gmra.mxu0 %v3681
        %v3974 = vpop.f32.mrf.mxu0
        %v3975 = vadd.f32 0.0, %v3974
        %3976 = vmatmul.f32.gmra.mxu0 %v3682
        %v3977 = vpop.f32.mrf.mxu0
        %v3978 = vadd.f32 0.0, %v3977
        %3979 = vmatmul.f32.gmra.mxu0 %v3683
        %v3980 = vpop.f32.mrf.mxu0
        %v3981 = vadd.f32 0.0, %v3980
        %3982 = vmatmul.f32.gmra.mxu0 %v3684
        %v3983 = vpop.f32.mrf.mxu0
        %v3984 = vadd.f32 0.0, %v3983
        %3985 = vmatmul.f32.gmra.mxu0 %v3685
        %v3986 = vpop.f32.mrf.mxu0
        %v3987 = vadd.f32 0.0, %v3986
        %3988 = vmatmul.f32.gmra.mxu0 %v3686
        %v3989 = vpop.f32.mrf.mxu0
        %v3990 = vadd.f32 0.0, %v3989
        %3991 = vmatmul.f32.gmra.mxu0 %v3687
        %v3992 = vpop.f32.mrf.mxu0
        %v3993 = vadd.f32 0.0, %v3992
        %3994 = vmatmul.f32.gmra.mxu0 %v3688
        %v3995 = vpop.f32.mrf.mxu0
        %v3996 = vadd.f32 0.0, %v3995
        %3997 = vmatmul.f32.gmra.mxu0 %v3689
        %v3998 = vpop.f32.mrf.mxu0
        %v3999 = vadd.f32 0.0, %v3998
        %4000 = vmatmul.f32.gmra.mxu0 %v3690
        %v4001 = vpop.f32.mrf.mxu0
        %v4002 = vadd.f32 0.0, %v4001
        %4003 = vmatmul.f32.gmra.mxu0 %v3691
        %v4004 = vpop.f32.mrf.mxu0
        %v4005 = vadd.f32 0.0, %v4004
        %4006 = vmatmul.f32.gmra.mxu0 %v3692
        %v4007 = vpop.f32.mrf.mxu0
        %v4008 = vadd.f32 0.0, %v4007
        %4009 = vmatmul.f32.gmra.mxu0 %v3693
        %v4010 = vpop.f32.mrf.mxu0
        %v4011 = vadd.f32 0.0, %v4010
        %4012 = vmatmul.f32.gmra.mxu0 %v3694
        %v4013 = vpop.f32.mrf.mxu0
        %v4014 = vadd.f32 0.0, %v4013
        %4015 = vmatmul.f32.gmra.mxu0 %v3695
        %v4016 = vpop.f32.mrf.mxu0
        %v4017 = vadd.f32 0.0, %v4016
        %4018 = vmatmul.f32.gmra.mxu0 %v3696
        %v4019 = vpop.f32.mrf.mxu0
        %v4020 = vadd.f32 0.0, %v4019
        %4021 = vmatmul.f32.gmra.mxu0 %v3697
        %v4022 = vpop.f32.mrf.mxu0
        %v4023 = vadd.f32 0.0, %v4022
        %4024 = vmatmul.f32.gmra.mxu0 %v3698
        %v4025 = vpop.f32.mrf.mxu0
        %v4026 = vadd.f32 0.0, %v4025
        %4027 = vmatmul.f32.gmra.mxu0 %v3699
        %v4028 = vpop.f32.mrf.mxu0
        %v4029 = vadd.f32 0.0, %v4028
        %4030 = vmatmul.f32.gmra.mxu0 %v3700
        %v4031 = vpop.f32.mrf.mxu0
        %v4032 = vadd.f32 0.0, %v4031
        %4033 = vmatmul.f32.gmra.mxu0 %v3701
        %v4034 = vpop.f32.mrf.mxu0
        %v4035 = vadd.f32 0.0, %v4034
        %4036 = vmatmul.f32.gmra.mxu0 %v3702
        %v4037 = vpop.f32.mrf.mxu0
        %v4038 = vadd.f32 0.0, %v4037
        %4039 = vmatmul.f32.gmra.mxu0 %v3703
        %v4040 = vpop.f32.mrf.mxu0
        %v4041 = vadd.f32 0.0, %v4040
        %4042 = vmatmul.f32.gmra.mxu0 %v3704
        %v4043 = vpop.f32.mrf.mxu0
        %v4044 = vadd.f32 0.0, %v4043
        %4045 = vdwg.mxu0
        %4046 = vmatpush.msra.mxu0 %v3832
        %4047 = vmatpush.msra.mxu0 %v3831
        %4048 = vmatpush.msra.mxu0 %v3830
        %4049 = vmatpush.msra.mxu0 %v3829
        %4050 = vmatpush.msra.mxu0 %v3828
        %4051 = vmatpush.msra.mxu0 %v3827
        %4052 = vmatpush.msra.mxu0 %v3826
        %4053 = vmatpush.msra.mxu0 %v3825
        %4054 = vmatpush.msra.mxu0 %v3824
        %4055 = vmatpush.msra.mxu0 %v3823
        %4056 = vmatpush.msra.mxu0 %v3822
        %4057 = vmatpush.msra.mxu0 %v3821
        %4058 = vmatpush.msra.mxu0 %v3820
        %4059 = vmatpush.msra.mxu0 %v3819
        %4060 = vmatpush.msra.mxu0 %v3818
        %4061 = vmatpush.msra.mxu0 %v3817
        %4062 = vmatmul.f32.gmra.mxu0 %v3769
        %v4063 = vpop.f32.mrf.mxu0
        %v4064 = vadd.f32 %v3951, %v4063
        %4065 = vmatmul.f32.gmra.mxu0 %v3770
        %v4066 = vpop.f32.mrf.mxu0
        %v4067 = vadd.f32 %v3954, %v4066
        %4068 = vmatmul.f32.gmra.mxu0 %v3771
        %v4069 = vpop.f32.mrf.mxu0
        %v4070 = vadd.f32 %v3957, %v4069
        %4071 = vmatmul.f32.gmra.mxu0 %v3772
        %v4072 = vpop.f32.mrf.mxu0
        %v4073 = vadd.f32 %v3960, %v4072
        %4074 = vmatmul.f32.gmra.mxu0 %v3773
        %v4075 = vpop.f32.mrf.mxu0
        %v4076 = vadd.f32 %v3963, %v4075
        %4077 = vmatmul.f32.gmra.mxu0 %v3774
        %v4078 = vpop.f32.mrf.mxu0
        %v4079 = vadd.f32 %v3966, %v4078
        %4080 = vmatmul.f32.gmra.mxu0 %v3775
        %v4081 = vpop.f32.mrf.mxu0
        %v4082 = vadd.f32 %v3969, %v4081
        %4083 = vmatmul.f32.gmra.mxu0 %v3776
        %v4084 = vpop.f32.mrf.mxu0
        %v4085 = vadd.f32 %v3972, %v4084
        %4086 = vmatmul.f32.gmra.mxu0 %v3777
        %v4087 = vpop.f32.mrf.mxu0
        %v4088 = vadd.f32 %v3975, %v4087
        %4089 = vmatmul.f32.gmra.mxu0 %v3778
        %v4090 = vpop.f32.mrf.mxu0
        %v4091 = vadd.f32 %v3978, %v4090
        %4092 = vmatmul.f32.gmra.mxu0 %v3779
        %v4093 = vpop.f32.mrf.mxu0
        %v4094 = vadd.f32 %v3981, %v4093
        %4095 = vmatmul.f32.gmra.mxu0 %v3780
        %v4096 = vpop.f32.mrf.mxu0
        %v4097 = vadd.f32 %v3984, %v4096
        %4098 = vmatmul.f32.gmra.mxu0 %v3781
        %v4099 = vpop.f32.mrf.mxu0
        %v4100 = vadd.f32 %v3987, %v4099
        %4101 = vmatmul.f32.gmra.mxu0 %v3782
        %v4102 = vpop.f32.mrf.mxu0
        %v4103 = vadd.f32 %v3990, %v4102
        %4104 = vmatmul.f32.gmra.mxu0 %v3783
        %v4105 = vpop.f32.mrf.mxu0
        %v4106 = vadd.f32 %v3993, %v4105
        %4107 = vmatmul.f32.gmra.mxu0 %v3784
        %v4108 = vpop.f32.mrf.mxu0
        %v4109 = vadd.f32 %v3996, %v4108
        %4110 = vmatmul.f32.gmra.mxu0 %v3785
        %v4111 = vpop.f32.mrf.mxu0
        %v4112 = vadd.f32 %v3999, %v4111
        %4113 = vmatmul.f32.gmra.mxu0 %v3786
        %v4114 = vpop.f32.mrf.mxu0
        %v4115 = vadd.f32 %v4002, %v4114
        %4116 = vmatmul.f32.gmra.mxu0 %v3787
        %v4117 = vpop.f32.mrf.mxu0
        %v4118 = vadd.f32 %v4005, %v4117
        %4119 = vmatmul.f32.gmra.mxu0 %v3788
        %v4120 = vpop.f32.mrf.mxu0
        %v4121 = vadd.f32 %v4008, %v4120
        %4122 = vmatmul.f32.gmra.mxu0 %v3789
        %v4123 = vpop.f32.mrf.mxu0
        %v4124 = vadd.f32 %v4011, %v4123
        %4125 = vmatmul.f32.gmra.mxu0 %v3790
        %v4126 = vpop.f32.mrf.mxu0
        %v4127 = vadd.f32 %v4014, %v4126
        %4128 = vmatmul.f32.gmra.mxu0 %v3791
        %v4129 = vpop.f32.mrf.mxu0
        %v4130 = vadd.f32 %v4017, %v4129
        %4131 = vmatmul.f32.gmra.mxu0 %v3792
        %v4132 = vpop.f32.mrf.mxu0
        %v4133 = vadd.f32 %v4020, %v4132
        %4134 = vmatmul.f32.gmra.mxu0 %v3793
        %v4135 = vpop.f32.mrf.mxu0
        %v4136 = vadd.f32 %v4023, %v4135
        %4137 = vmatmul.f32.gmra.mxu0 %v3794
        %v4138 = vpop.f32.mrf.mxu0
        %v4139 = vadd.f32 %v4026, %v4138
        %4140 = vmatmul.f32.gmra.mxu0 %v3795
        %v4141 = vpop.f32.mrf.mxu0
        %v4142 = vadd.f32 %v4029, %v4141
        %4143 = vmatmul.f32.gmra.mxu0 %v3796
        %v4144 = vpop.f32.mrf.mxu0
        %v4145 = vadd.f32 %v4032, %v4144
        %4146 = vmatmul.f32.gmra.mxu0 %v3797
        %v4147 = vpop.f32.mrf.mxu0
        %v4148 = vadd.f32 %v4035, %v4147
        %4149 = vmatmul.f32.gmra.mxu0 %v3798
        %v4150 = vpop.f32.mrf.mxu0
        %v4151 = vadd.f32 %v4038, %v4150
        %4152 = vmatmul.f32.gmra.mxu0 %v3799
        %v4153 = vpop.f32.mrf.mxu0
        %v4154 = vadd.f32 %v4041, %v4153
        %4155 = vmatmul.f32.gmra.mxu0 %v3800
        %v4156 = vpop.f32.mrf.mxu0
        %v4157 = vadd.f32 %v4044, %v4156
        %4158 = vdwg.mxu0
        %4159 = vmatpush.msra.mxu0 0.0
        %4160 = vmatpush.msra.mxu0 0.0
        %4161 = vmatpush.msra.mxu0 0.0
        %4162 = vmatpush.msra.mxu0 0.0
        %4163 = vmatpush.msra.mxu0 0.0
        %4164 = vmatpush.msra.mxu0 0.0
        %4165 = vmatpush.msra.mxu0 0.0
        %4166 = vmatpush.msra.mxu0 0.0
        %4167 = vmatpush.msra.mxu0 0.0
        %4168 = vmatpush.msra.mxu0 0.0
        %4169 = vmatpush.msra.mxu0 0.0
        %4170 = vmatpush.msra.mxu0 0.0
        %4171 = vmatpush.msra.mxu0 %v3836
        %4172 = vmatpush.msra.mxu0 %v3835
        %4173 = vmatpush.msra.mxu0 %v3834
        %4174 = vmatpush.msra.mxu0 %v3833
        %4175 = vmatmul.f32.gmra.mxu0 %v3838
        %v4176 = vpop.f32.mrf.mxu0
        %v4177 = vadd.f32 %v4064, %v4176
        %4178 = vmatmul.f32.gmra.mxu0 %v3841
        %v4179 = vpop.f32.mrf.mxu0
        %v4180 = vadd.f32 %v4067, %v4179
        %4181 = vmatmul.f32.gmra.mxu0 %v3844
        %v4182 = vpop.f32.mrf.mxu0
        %v4183 = vadd.f32 %v4070, %v4182
        %4184 = vmatmul.f32.gmra.mxu0 %v3847
        %v4185 = vpop.f32.mrf.mxu0
        %v4186 = vadd.f32 %v4073, %v4185
        %4187 = vmatmul.f32.gmra.mxu0 %v3850
        %v4188 = vpop.f32.mrf.mxu0
        %v4189 = vadd.f32 %v4076, %v4188
        %4190 = vmatmul.f32.gmra.mxu0 %v3853
        %v4191 = vpop.f32.mrf.mxu0
        %v4192 = vadd.f32 %v4079, %v4191
        %4193 = vmatmul.f32.gmra.mxu0 %v3856
        %v4194 = vpop.f32.mrf.mxu0
        %v4195 = vadd.f32 %v4082, %v4194
        %4196 = vmatmul.f32.gmra.mxu0 %v3859
        %v4197 = vpop.f32.mrf.mxu0
        %v4198 = vadd.f32 %v4085, %v4197
        %4199 = vmatmul.f32.gmra.mxu0 %v3862
        %v4200 = vpop.f32.mrf.mxu0
        %v4201 = vadd.f32 %v4088, %v4200
        %4202 = vmatmul.f32.gmra.mxu0 %v3865
        %v4203 = vpop.f32.mrf.mxu0
        %v4204 = vadd.f32 %v4091, %v4203
        %4205 = vmatmul.f32.gmra.mxu0 %v3868
        %v4206 = vpop.f32.mrf.mxu0
        %v4207 = vadd.f32 %v4094, %v4206
        %4208 = vmatmul.f32.gmra.mxu0 %v3871
        %v4209 = vpop.f32.mrf.mxu0
        %v4210 = vadd.f32 %v4097, %v4209
        %4211 = vmatmul.f32.gmra.mxu0 %v3874
        %v4212 = vpop.f32.mrf.mxu0
        %v4213 = vadd.f32 %v4100, %v4212
        %4214 = vmatmul.f32.gmra.mxu0 %v3877
        %v4215 = vpop.f32.mrf.mxu0
        %v4216 = vadd.f32 %v4103, %v4215
        %4217 = vmatmul.f32.gmra.mxu0 %v3880
        %v4218 = vpop.f32.mrf.mxu0
        %v4219 = vadd.f32 %v4106, %v4218
        %4220 = vmatmul.f32.gmra.mxu0 %v3883
        %v4221 = vpop.f32.mrf.mxu0
        %v4222 = vadd.f32 %v4109, %v4221
        %4223 = vmatmul.f32.gmra.mxu0 %v3886
        %v4224 = vpop.f32.mrf.mxu0
        %v4225 = vadd.f32 %v4112, %v4224
        %4226 = vmatmul.f32.gmra.mxu0 %v3889
        %v4227 = vpop.f32.mrf.mxu0
        %v4228 = vadd.f32 %v4115, %v4227
        %4229 = vmatmul.f32.gmra.mxu0 %v3892
        %v4230 = vpop.f32.mrf.mxu0
        %v4231 = vadd.f32 %v4118, %v4230
        %4232 = vmatmul.f32.gmra.mxu0 %v3895
        %v4233 = vpop.f32.mrf.mxu0
        %v4234 = vadd.f32 %v4121, %v4233
        %4235 = vmatmul.f32.gmra.mxu0 %v3898
        %v4236 = vpop.f32.mrf.mxu0
        %v4237 = vadd.f32 %v4124, %v4236
        %4238 = vmatmul.f32.gmra.mxu0 %v3901
        %v4239 = vpop.f32.mrf.mxu0
        %v4240 = vadd.f32 %v4127, %v4239
        %4241 = vmatmul.f32.gmra.mxu0 %v3904
        %v4242 = vpop.f32.mrf.mxu0
        %v4243 = vadd.f32 %v4130, %v4242
        %4244 = vmatmul.f32.gmra.mxu0 %v3907
        %v4245 = vpop.f32.mrf.mxu0
        %v4246 = vadd.f32 %v4133, %v4245
        %4247 = vmatmul.f32.gmra.mxu0 %v3910
        %v4248 = vpop.f32.mrf.mxu0
        %v4249 = vadd.f32 %v4136, %v4248
        %4250 = vmatmul.f32.gmra.mxu0 %v3913
        %v4251 = vpop.f32.mrf.mxu0
        %v4252 = vadd.f32 %v4139, %v4251
        %4253 = vmatmul.f32.gmra.mxu0 %v3916
        %v4254 = vpop.f32.mrf.mxu0
        %v4255 = vadd.f32 %v4142, %v4254
        %4256 = vmatmul.f32.gmra.mxu0 %v3919
        %v4257 = vpop.f32.mrf.mxu0
        %v4258 = vadd.f32 %v4145, %v4257
        %4259 = vmatmul.f32.gmra.mxu0 %v3922
        %v4260 = vpop.f32.mrf.mxu0
        %v4261 = vadd.f32 %v4148, %v4260
        %4262 = vmatmul.f32.gmra.mxu0 %v3925
        %v4263 = vpop.f32.mrf.mxu0
        %v4264 = vadd.f32 %v4151, %v4263
        %4265 = vmatmul.f32.gmra.mxu0 %v3928
        %v4266 = vpop.f32.mrf.mxu0
        %v4267 = vadd.f32 %v4154, %v4266
        %4268 = vmatmul.f32.gmra.mxu0 %v3931
        %v4269 = vpop.f32.mrf.mxu0
        %v4270 = vadd.f32 %v4157, %v4269
        %4271 = vdwg.mxu0
        %v4272 = vld [vmem:[%s9] sm:$0xff]
        %v4273 = vld [vmem:[%s9 + $0x8] sm:$0xff]
        %v4274 = vld [vmem:[%s9 + $0x10] sm:$0xff]
        %v4275 = vld [vmem:[%s9 + $0x18] sm:$0xff]
        %v4276 = vld [vmem:[%s9 + $0x20] sm:$0xff]
        %v4277 = vld [vmem:[%s9 + $0x28] sm:$0xff]
        %v4278 = vld [vmem:[%s9 + $0x30] sm:$0xff]
        %v4279 = vld [vmem:[%s9 + $0x38] sm:$0xff]
        %v4280 = vld [vmem:[%s9 + $0x40] sm:$0xff]
        %v4281 = vld [vmem:[%s9 + $0x48] sm:$0xff]
        %v4282 = vld [vmem:[%s9 + $0x50] sm:$0xff]
        %v4283 = vld [vmem:[%s9 + $0x58] sm:$0xff]
        %v4284 = vld [vmem:[%s9 + $0x60] sm:$0xff]
        %v4285 = vld [vmem:[%s9 + $0x68] sm:$0xff]
        %v4286 = vld [vmem:[%s9 + $0x70] sm:$0xff]
        %v4287 = vld [vmem:[%s9 + $0x78] sm:$0xff]
        %4288 = vmatpush.msra.mxu0 %v451
        %4289 = vmatpush.msra.mxu0 %v450
        %4290 = vmatpush.msra.mxu0 %v449
        %4291 = vmatpush.msra.mxu0 %v448
        %4292 = vmatpush.msra.mxu0 %v447
        %4293 = vmatpush.msra.mxu0 %v446
        %4294 = vmatpush.msra.mxu0 %v445
        %4295 = vmatpush.msra.mxu0 %v444
        %4296 = vmatpush.msra.mxu0 %v443
        %4297 = vmatpush.msra.mxu0 %v442
        %4298 = vmatpush.msra.mxu0 %v441
        %4299 = vmatpush.msra.mxu0 %v440
        %4300 = vmatpush.msra.mxu0 %v439
        %4301 = vmatpush.msra.mxu0 %v438
        %4302 = vmatpush.msra.mxu0 %v437
        %4303 = vmatpush.msra.mxu0 %v436
        %4304 = vmatmul.f32.gmra.mxu0 %v4272
        %v4305 = vpop.f32.mrf.mxu0
        %v4306 = vadd.f32 0.0, %v4305
        %4307 = vmatmul.f32.gmra.mxu0 %v4274
        %v4308 = vpop.f32.mrf.mxu0
        %v4309 = vadd.f32 0.0, %v4308
        %4310 = vmatmul.f32.gmra.mxu0 %v4276
        %v4311 = vpop.f32.mrf.mxu0
        %v4312 = vadd.f32 0.0, %v4311
        %4313 = vmatmul.f32.gmra.mxu0 %v4278
        %v4314 = vpop.f32.mrf.mxu0
        %v4315 = vadd.f32 0.0, %v4314
        %4316 = vmatmul.f32.gmra.mxu0 %v4280
        %v4317 = vpop.f32.mrf.mxu0
        %v4318 = vadd.f32 0.0, %v4317
        %4319 = vmatmul.f32.gmra.mxu0 %v4282
        %v4320 = vpop.f32.mrf.mxu0
        %v4321 = vadd.f32 0.0, %v4320
        %4322 = vmatmul.f32.gmra.mxu0 %v4284
        %v4323 = vpop.f32.mrf.mxu0
        %v4324 = vadd.f32 0.0, %v4323
        %4325 = vmatmul.f32.gmra.mxu0 %v4286
        %v4326 = vpop.f32.mrf.mxu0
        %v4327 = vadd.f32 0.0, %v4326
        %4328 = vdwg.mxu0
        %4329 = vmatpush.msra.mxu0 %v467
        %4330 = vmatpush.msra.mxu0 %v466
        %4331 = vmatpush.msra.mxu0 %v465
        %4332 = vmatpush.msra.mxu0 %v464
        %4333 = vmatpush.msra.mxu0 %v463
        %4334 = vmatpush.msra.mxu0 %v462
        %4335 = vmatpush.msra.mxu0 %v461
        %4336 = vmatpush.msra.mxu0 %v460
        %4337 = vmatpush.msra.mxu0 %v459
        %4338 = vmatpush.msra.mxu0 %v458
        %4339 = vmatpush.msra.mxu0 %v457
        %4340 = vmatpush.msra.mxu0 %v456
        %4341 = vmatpush.msra.mxu0 %v455
        %4342 = vmatpush.msra.mxu0 %v454
        %4343 = vmatpush.msra.mxu0 %v453
        %4344 = vmatpush.msra.mxu0 %v452
        %4345 = vmatmul.f32.gmra.mxu0 %v4273
        %v4346 = vpop.f32.mrf.mxu0
        %v4347 = vadd.f32 %v4306, %v4346
        %4348 = vmatmul.f32.gmra.mxu0 %v4275
        %v4349 = vpop.f32.mrf.mxu0
        %v4350 = vadd.f32 %v4309, %v4349
        %4351 = vmatmul.f32.gmra.mxu0 %v4277
        %v4352 = vpop.f32.mrf.mxu0
        %v4353 = vadd.f32 %v4312, %v4352
        %4354 = vmatmul.f32.gmra.mxu0 %v4279
        %v4355 = vpop.f32.mrf.mxu0
        %v4356 = vadd.f32 %v4315, %v4355
        %4357 = vmatmul.f32.gmra.mxu0 %v4281
        %v4358 = vpop.f32.mrf.mxu0
        %v4359 = vadd.f32 %v4318, %v4358
        %4360 = vmatmul.f32.gmra.mxu0 %v4283
        %v4361 = vpop.f32.mrf.mxu0
        %v4362 = vadd.f32 %v4321, %v4361
        %4363 = vmatmul.f32.gmra.mxu0 %v4285
        %v4364 = vpop.f32.mrf.mxu0
        %v4365 = vadd.f32 %v4324, %v4364
        %4366 = vmatmul.f32.gmra.mxu0 %v4287
        %v4367 = vpop.f32.mrf.mxu0
        %v4368 = vadd.f32 %v4327, %v4367
        %4369 = vdwg.mxu0
        %v4370 = vld [vmem:[%s6] sm:$0x1]
        %v4372 = vperm.slane %v4370, 0
        %4374 = vmatpush.msra.mxu0 %v4222
        %4375 = vmatpush.msra.mxu0 %v4219
        %4376 = vmatpush.msra.mxu0 %v4216
        %4377 = vmatpush.msra.mxu0 %v4213
        %4378 = vmatpush.msra.mxu0 %v4210
        %4379 = vmatpush.msra.mxu0 %v4207
        %4380 = vmatpush.msra.mxu0 %v4204
        %4381 = vmatpush.msra.mxu0 %v4201
        %4382 = vmatpush.msra.mxu0 %v4198
        %4383 = vmatpush.msra.mxu0 %v4195
        %4384 = vmatpush.msra.mxu0 %v4192
        %4385 = vmatpush.msra.mxu0 %v4189
        %4386 = vmatpush.msra.mxu0 %v4186
        %4387 = vmatpush.msra.mxu0 %v4183
        %4388 = vmatpush.msra.mxu0 %v4180
        %4389 = vmatpush.msra.mxu0 %v4177
        %4390 = vmatmul.f32.gmra.mxu0 %v4272
        %v4391 = vpop.f32.mrf.mxu0
        %v4392 = vadd.f32 %v4372, %v4391
        %4393 = vmatmul.f32.gmra.mxu0 %v4274
        %v4394 = vpop.f32.mrf.mxu0
        %v4395 = vadd.f32 %v4372, %v4394
        %4396 = vmatmul.f32.gmra.mxu0 %v4276
        %v4397 = vpop.f32.mrf.mxu0
        %v4398 = vadd.f32 %v4372, %v4397
        %4399 = vmatmul.f32.gmra.mxu0 %v4278
        %v4400 = vpop.f32.mrf.mxu0
        %v4401 = vadd.f32 %v4372, %v4400
        %4402 = vmatmul.f32.gmra.mxu0 %v4280
        %v4403 = vpop.f32.mrf.mxu0
        %v4404 = vadd.f32 %v4372, %v4403
        %4405 = vmatmul.f32.gmra.mxu0 %v4282
        %v4406 = vpop.f32.mrf.mxu0
        %v4407 = vadd.f32 %v4372, %v4406
        %4408 = vmatmul.f32.gmra.mxu0 %v4284
        %v4409 = vpop.f32.mrf.mxu0
        %v4410 = vadd.f32 %v4372, %v4409
        %4411 = vmatmul.f32.gmra.mxu0 %v4286
        %v4412 = vpop.f32.mrf.mxu0
        %v4413 = vadd.f32 %v4372, %v4412
        %4414 = vdwg.mxu0
        %4415 = vmatpush.msra.mxu0 %v4270
        %4416 = vmatpush.msra.mxu0 %v4267
        %4417 = vmatpush.msra.mxu0 %v4264
        %4418 = vmatpush.msra.mxu0 %v4261
        %4419 = vmatpush.msra.mxu0 %v4258
        %4420 = vmatpush.msra.mxu0 %v4255
        %4421 = vmatpush.msra.mxu0 %v4252
        %4422 = vmatpush.msra.mxu0 %v4249
        %4423 = vmatpush.msra.mxu0 %v4246
        %4424 = vmatpush.msra.mxu0 %v4243
        %4425 = vmatpush.msra.mxu0 %v4240
        %4426 = vmatpush.msra.mxu0 %v4237
        %4427 = vmatpush.msra.mxu0 %v4234
        %4428 = vmatpush.msra.mxu0 %v4231
        %4429 = vmatpush.msra.mxu0 %v4228
        %4430 = vmatpush.msra.mxu0 %v4225
        %4431 = vmatmul.f32.gmra.mxu0 %v4273
        %v4432 = vpop.f32.mrf.mxu0
        %v4433 = vadd.f32 %v4392, %v4432
        %4434 = vmatmul.f32.gmra.mxu0 %v4275
        %v4435 = vpop.f32.mrf.mxu0
        %v4436 = vadd.f32 %v4395, %v4435
        %4437 = vmatmul.f32.gmra.mxu0 %v4277
        %v4438 = vpop.f32.mrf.mxu0
        %v4439 = vadd.f32 %v4398, %v4438
        %4440 = vmatmul.f32.gmra.mxu0 %v4279
        %v4441 = vpop.f32.mrf.mxu0
        %v4442 = vadd.f32 %v4401, %v4441
        %4443 = vmatmul.f32.gmra.mxu0 %v4281
        %v4444 = vpop.f32.mrf.mxu0
        %v4445 = vadd.f32 %v4404, %v4444
        %4446 = vmatmul.f32.gmra.mxu0 %v4283
        %v4447 = vpop.f32.mrf.mxu0
        %v4448 = vadd.f32 %v4407, %v4447
        %4449 = vmatmul.f32.gmra.mxu0 %v4285
        %v4450 = vpop.f32.mrf.mxu0
        %v4451 = vadd.f32 %v4410, %v4450
        %4452 = vmatmul.f32.gmra.mxu0 %v4287
        %v4453 = vpop.f32.mrf.mxu0
        %v4454 = vadd.f32 %v4413, %v4453
        %4455 = vdwg.mxu0
        %v4456 = vsel %vm1836, %v4433, 0.0
        %v4457 = vsel %vm1836, %v4436, 0.0
        %v4458 = vadd.f32 %v4456, %v4457
        %v4459 = vsel %vm1836, %v4439, 0.0
        %v4460 = vadd.f32 %v4458, %v4459
        %v4461 = vsel %vm1836, %v4442, 0.0
        %v4462 = vadd.f32 %v4460, %v4461
        %v4463 = vsel %vm1836, %v4445, 0.0
        %v4464 = vadd.f32 %v4462, %v4463
        %v4465 = vsel %vm1836, %v4448, 0.0
        %v4466 = vadd.f32 %v4464, %v4465
        %v4467 = vsel %vm1836, %v4451, 0.0
        %v4468 = vadd.f32 %v4466, %v4467
        %v4469 = vsel %vm1836, %v4454, 0.0
        %v4470 = vadd.f32 %v4468, %v4469
        %v4471 = vrot.slane %v4470, 4
        %v4472 = vadd.f32 %v4470, %v4471
        %v4473 = vrot.slane %v4472, 2
        %v4474 = vadd.f32 %v4472, %v4473
        %v4475 = vrot.slane %v4474, 1
        %v4476 = vadd.f32 %v4474, %v4475
        %v4477 = vrcp.pop 64.0
        %v4478 = vmul.f32 64.0, %v4477
        %v4479 = vsub.f32 1.0, %v4478
        %v4480 = vmul.f32 %v4477, %v4479
        %v4481 = vadd.f32 %v4477, %v4480
        %vm4482 = vweird.f32 %v4477
        %v4483 = vsel %vm4482, %v4477, %v4481
        %v4484 = vmul.f32 %v4476, %v4483
        %v4485 = vld [vmem:[%s7] sm:$0xff]
        %v4486 = vld [vmem:[%s7 + $0x8] sm:$0xff]
        %v4487 = vld [vmem:[%s7 + $0x10] sm:$0xff]
        %v4488 = vld [vmem:[%s7 + $0x18] sm:$0xff]
        %v4490 = vsel %vm1836, %v4484, 0
        %4492 = vmatpush.msra.mxu0 0.0
        %4493 = vmatpush.msra.mxu0 0.0
        %4494 = vmatpush.msra.mxu0 0.0
        %4495 = vmatpush.msra.mxu0 0.0
        %4496 = vmatpush.msra.mxu0 0.0
        %4497 = vmatpush.msra.mxu0 0.0
        %4498 = vmatpush.msra.mxu0 0.0
        %4499 = vmatpush.msra.mxu0 0.0
        %4500 = vmatpush.msra.mxu0 0.0
        %4501 = vmatpush.msra.mxu0 0.0
        %4502 = vmatpush.msra.mxu0 0.0
        %4503 = vmatpush.msra.mxu0 0.0
        %4504 = vmatpush.msra.mxu0 %v4488
        %4505 = vmatpush.msra.mxu0 %v4487
        %4506 = vmatpush.msra.mxu0 %v4486
        %4507 = vmatpush.msra.mxu0 %v4485
        %4508 = vmatmul.f32.gmra.mxu0 %v4490
        %v4509 = vpop.f32.mrf.mxu0
        %v4510 = vadd.f32 0.0, %v4509
        %4511 = vdwg.mxu0
        %v4512 = vmax.f32 %v4510, 0.0
        %v4513 = vld [vmem:[%s8] sm:$0x3]
        %vm4514 = vcmask 15360
        %v4516 = vsel %vm4514, %v4512, 0
        %vm4518 = vcmask 1041408
        %v4520 = vsel %vm4518, %v4513, 0
        %4522 = vmatpush.msra.mxu0 0.0
        %4523 = vmatpush.msra.mxu0 0.0
        %4524 = vmatpush.msra.mxu0 0.0
        %4525 = vmatpush.msra.mxu0 0.0
        %4526 = vmatpush.msra.mxu0 0.0
        %4527 = vmatpush.msra.mxu0 0.0
        %4528 = vmatpush.msra.mxu0 0.0
        %4529 = vmatpush.msra.mxu0 0.0
        %4530 = vmatpush.msra.mxu0 0.0
        %4531 = vmatpush.msra.mxu0 0.0
        %4532 = vmatpush.msra.mxu0 0.0
        %4533 = vmatpush.msra.mxu0 0.0
        %4534 = vmatpush.msra.mxu0 0.0
        %4535 = vmatpush.msra.mxu0 0.0
        %4536 = vmatpush.msra.mxu0 0.0
        %4537 = vmatpush.msra.mxu0 %v4520
        %4538 = vmatmul.f32.gmra.mxu0 %v4516
        %v4539 = vpop.f32.mrf.mxu0
        %v4540 = vadd.f32 0.0, %v4539
        %4541 = vdwg.mxu0
        %v4542 = vxor.u32 %v4540, 2147483648
        %v4543 = vmul.f32 %v4542, 1.442695
        %v4544 = vpow.pop %v4543
        %v4545 = vadd.f32 %v4544, 1.0
        %v4546 = vrcp.pop %v4545
        %v4547 = vmul.f32 %v4545, %v4546
        %v4548 = vsub.f32 1.0, %v4547
        %v4549 = vmul.f32 %v4546, %v4548
        %v4550 = vadd.f32 %v4546, %v4549
        %vm4551 = vweird.f32 %v4545
        %vm4552 = vweird.f32 %v4546
        %vm4553 = vmor %vm4551, %vm4552
        %v4554 = vsel %vm4553, %v4546, %v4550
        %v4555 = vand.u32 2147483647, %v4545
        %vm4556 = vcmp.eq.f32.partialorder %v4555, 8.507059e+37
        %v4557 = vand.u32 %v4545, 2147483648
        %v4558 = vor.u32 1.1754944e-38, %v4557
        %v4559 = vsel %vm4556, %v4558, %v4554
        %v4560 = vmul.f32 1.0, %v4559
        %v4561 = vld [vmem:[%s10] sm:$0xff]
        %v4562 = vld [vmem:[%s10 + $0x8] sm:$0xff]
        %v4563 = vld [vmem:[%s11] sm:$0x1]
        %v4565 = vperm.slane %v4563, 0
        %v4568 = vsel %vm540, %v4347, 0
        %v4571 = vsel %vm540, %v4350, 0
        %v4574 = vsel %vm540, %v4353, 0
        %v4577 = vsel %vm540, %v4356, 0
        %v4580 = vsel %vm540, %v4359, 0
        %v4583 = vsel %vm540, %v4362, 0
        %v4586 = vsel %vm540, %v4365, 0
        %v4589 = vsel %vm540, %v4368, 0
        %4591 = vmatpush.msra.mxu0 0.0
        %4592 = vmatpush.msra.mxu0 0.0
        %4593 = vmatpush.msra.mxu0 0.0
        %4594 = vmatpush.msra.mxu0 0.0
        %4595 = vmatpush.msra.mxu0 0.0
        %4596 = vmatpush.msra.mxu0 0.0
        %4597 = vmatpush.msra.mxu0 0.0
        %4598 = vmatpush.msra.mxu0 0.0
        %4599 = vmatpush.msra.mxu0 0.0
        %4600 = vmatpush.msra.mxu0 0.0
        %4601 = vmatpush.msra.mxu0 0.0
        %4602 = vmatpush.msra.mxu0 0.0
        %4603 = vmatpush.msra.mxu0 0.0
        %4604 = vmatpush.msra.mxu0 0.0
        %4605 = vmatpush.msra.mxu0 %v4562
        %4606 = vmatpush.msra.mxu0 %v4561
        %4607 = vmatmul.f32.gmra.mxu0 %v4568
        %v4608 = vpop.f32.mrf.mxu0
        %v4609 = vadd.f32 %v4565, %v4608
        %4610 = vmatmul.f32.gmra.mxu0 %v4571
        %v4611 = vpop.f32.mrf.mxu0
        %v4612 = vadd.f32 %v4565, %v4611
        %4613 = vmatmul.f32.gmra.mxu0 %v4574
        %v4614 = vpop.f32.mrf.mxu0
        %v4615 = vadd.f32 %v4565, %v4614
        %4616 = vmatmul.f32.gmra.mxu0 %v4577
        %v4617 = vpop.f32.mrf.mxu0
        %v4618 = vadd.f32 %v4565, %v4617
        %4619 = vmatmul.f32.gmra.mxu0 %v4580
        %v4620 = vpop.f32.mrf.mxu0
        %v4621 = vadd.f32 %v4565, %v4620
        %4622 = vmatmul.f32.gmra.mxu0 %v4583
        %v4623 = vpop.f32.mrf.mxu0
        %v4624 = vadd.f32 %v4565, %v4623
        %4625 = vmatmul.f32.gmra.mxu0 %v4586
        %v4626 = vpop.f32.mrf.mxu0
        %v4627 = vadd.f32 %v4565, %v4626
        %4628 = vmatmul.f32.gmra.mxu0 %v4589
        %v4629 = vpop.f32.mrf.mxu0
        %v4630 = vadd.f32 %v4565, %v4629
        %4631 = vdwg.mxu0
        %v4632 = vperm.slane %v4560, 0
        %v4633 = vmul.f32 %v4433, %v4632
        %v4634 = vmul.f32 %v4436, %v4632
        %v4635 = vmul.f32 %v4439, %v4632
        %v4636 = vmul.f32 %v4442, %v4632
        %v4637 = vmul.f32 %v4445, %v4632
        %v4638 = vmul.f32 %v4448, %v4632
        %v4639 = vmul.f32 %v4451, %v4632
        %v4640 = vmul.f32 %v4454, %v4632
        %v4641 = vadd.f32 %v4633, %v4609
        %v4642 = vadd.f32 %v4634, %v4612
        %v4643 = vadd.f32 %v4635, %v4615
        %v4644 = vadd.f32 %v4636, %v4618
        %v4645 = vadd.f32 %v4637, %v4621
        %v4646 = vadd.f32 %v4638, %v4624
        %v4647 = vadd.f32 %v4639, %v4627
        %v4648 = vadd.f32 %v4640, %v4630
        %4649 = vst.msk [vmem:[%s435] sm:$0xff] %vm1836, %v4641
        %4650 = vst.msk [vmem:[%s435 + $0x8] sm:$0xff] %vm1836, %v4642
        %4651 = vst.msk [vmem:[%s435 + $0x10] sm:$0xff] %vm1836, %v4643
        %4652 = vst.msk [vmem:[%s435 + $0x18] sm:$0xff] %vm1836, %v4644
        %4653 = vst.msk [vmem:[%s435 + $0x20] sm:$0xff] %vm1836, %v4645
        %4654 = vst.msk [vmem:[%s435 + $0x28] sm:$0xff] %vm1836, %v4646
        %4655 = vst.msk [vmem:[%s435 + $0x30] sm:$0xff] %vm1836, %v4647
        %4656 = vst.msk [vmem:[%s435 + $0x38] sm:$0xff] %vm1836, %v4648
        %p4657 = scmp.lt.s32.totalorder %s26, 1
        %s4658 = scalar_select %p4657, %s26, 1
        %s4659 = smul.addr %s4658, 8
        %s4660 = smul.addr %s4659, 8
        %s4661 = scalar_lea.vmem %s12, %s4660
        // Predicated region
        $region73: #{tpu_custom_call.1} parent=67 // pred_check
          %p4662 = pneg %p301
        $region74: #{tpu_custom_call.1} parent=67 // pred_check_branch
          %4664 = sbr.rel (%p4662) target = $region76
        $region75: #{tpu_custom_call.1} parent=67 // pred_region
          _
        $region76: #{tpu_custom_call.1} parent=67 // pred_fallthru
          _
      $region68: #{tpu_custom_call.1} parent=5 // pred_fallthru
        _
      %p4665 = scmp.le.s32.totalorder 2, %s21
      // Predicated region
      $region77: #{tpu_custom_call.1} parent=5 // pred_check
        %p4666 = pneg %p4665
      $region78: #{tpu_custom_call.1} parent=5 // pred_check_branch
        %4668 = sbr.rel (%p4666) target = $region80
      $region79: #{tpu_custom_call.1} parent=5 // pred_region
        %s4669 = ssub.s32 %s21, 2
        // Predicated region
        $region81: #{tpu_custom_call.1} parent=79 // pred_check
          %p4670 = pneg %p307
        $region82: #{tpu_custom_call.1} parent=79 // pred_check_branch
          %4672 = sbr.rel (%p4670) target = $region84
        $region83: #{tpu_custom_call.1} parent=79 // pred_region
          %p4673 = scmp.lt.s32.totalorder %s27, 1
          %s4674 = scalar_select %p4673, %s27, 1
          %s4675 = smul.addr %s4674, 8
          %s4676 = smul.addr %s4675, 8
          %s4677 = scalar_lea.vmem %s12, %s4676
        $region84: #{tpu_custom_call.1} parent=79 // pred_fallthru
          _
      $region80: #{tpu_custom_call.1} parent=5 // pred_fallthru
        _
    $region6: #{tpu_custom_call.1} parent=1 // loop_footer
      %s25 = sadd.s32 1, %s21
    $region7: #{tpu_custom_call.1} parent=1 // loop_footer_branch
      %20 = sbr.rel target = $region3
    $region8: #{tpu_custom_call.1} parent=1 // loop_exit
      _
    %4678 = vsyncpa [#allocation5], 1
    %s4679 = scalar_lea.sflag [#allocation5], 1
    %4680 = vsyncpa %s4679, 1

</llo_original>
